<compile_context>
chip_gen: v7x
topology: tpu7x:2x2x1
jax: 0.10.0
libtpu: 0.0.40
codegen_flags: <defaults>
</compile_context>

<pallas_src>
import functools

import jax
import jax.numpy as jnp
from jax.experimental import pallas as pl
from jax.experimental.pallas import tpu as pltpu


H_RNN = 100          # torch rnn_hidden
HP = 128             # padded hidden (lane-dense)
GP = 4 * HP          # fused gate width (i|f|g|o)


# ----------------------------------------------------------------------------
# Pallas kernels
# ----------------------------------------------------------------------------
def _conv1_kernel(pT_ref, w_ref, b_ref, o_ref):
    # conv1: o = relu(W @ patches^T + b); (C_out, rows) layout -> lane-dense stores.
    acc = jnp.dot(w_ref[...], pT_ref[...], preferred_element_type=jnp.float32)
    o_ref[...] = jnp.maximum(acc + b_ref[...], 0.0)


def _fused_net_kernel(p2f_ref, xt_ref, w2b_ref, b2t_ref, w3b_ref, b3t_ref,
                      fc1p_ref, fc1b_ref, fc2w_ref, fc2b_ref,
                      wih_a_ref, wih_b_ref, blstm_ref, whh_ref, lw_ref, lb_ref,
                      o_ref, *, seq_len, batch):
    f32 = jnp.float32

    # conv2 (2->4, k=3x3, s2) + ReLU, as ONE block-diagonal GEMM over the
    # 9 output spatial positions (p2f lanes are ordered (hw, c_in, ki, kj)).
    t2 = jnp.dot(p2f_ref[...], w2b_ref[...], preferred_element_type=f32)
    t2 = jnp.maximum(t2 + b2t_ref[...], 0.0)                     # (N, 36) lanes (hw, c)

    # TODO(synk): Dropout(p=0.2) between conv2 and conv3 applied as identity (eval mode).

    # conv3 (4->4, 1x1) + ReLU, also block-diagonal over the 9 positions.
    t3 = jnp.dot(t2, w3b_ref[...], preferred_element_type=f32)
    t3 = jnp.maximum(t3 + b3t_ref[...], 0.0)                     # (N, 36) lanes (hw, c)

    # flatten (PyTorch channel-major) + fc1 + ReLU.
    # The (hw, c) -> (c, hw) permutation is pre-folded into fc1p's rows,
    # so no in-kernel transpose / relayout is needed.
    h1 = jnp.dot(t3, fc1p_ref[...], preferred_element_type=f32)
    h1 = jnp.maximum(h1 + fc1b_ref[...], 0.0)                    # (N, 16)

    # fc2 + ReLU
    h2 = jnp.dot(h1, fc2w_ref[...], preferred_element_type=f32)
    h2 = jnp.maximum(h2 + fc2b_ref[...], 0.0)                    # (N, 3)

    # LSTM input projection for all timesteps at once; concat([fc2_out, x_t])
    # is folded into two split W_ih matmuls (wih_a / wih_b). Bias already fused.
    xp = (jnp.dot(h2, wih_a_ref[...], preferred_element_type=f32)
          + jnp.dot(xt_ref[...], wih_b_ref[...], preferred_element_type=f32)
          + blstm_ref[...])                                      # (T*B, 4*HP)

    # LSTM recurrence (zero initial state), statically unrolled over T.
    # TODO(synk): W_hh could be kept resident in MXU weight regs via
    # pltpu.matmul_push_rhs/acc_lhs/pop; relying on Mosaic weight-load hoisting.
    whh = whh_ref[...]                                           # (HP, 4*HP), hoisted
    hp = whh.shape[0]
    h = jnp.zeros((batch, hp), f32)
    c = jnp.zeros((batch, hp), f32)
    hs = []
    for t in range(seq_len):
        g = xp[t * batch:(t + 1) * batch, :] + jnp.dot(
            h, whh, preferred_element_type=f32)                  # (B, 4*HP)
        i_g = jax.nn.sigmoid(g[:, 0 * hp:1 * hp])                # PyTorch gate order: i, f, g, o
        f_g = jax.nn.sigmoid(g[:, 1 * hp:2 * hp])
        g_g = jnp.tanh(g[:, 2 * hp:3 * hp])
        o_g = jax.nn.sigmoid(g[:, 3 * hp:4 * hp])
        c = f_g * c + i_g * g_g
        h = o_g * jnp.tanh(c)
        hs.append(h)                                             # keep h in vregs

    hseq = jnp.concatenate(hs, axis=0)                           # (T*B, HP), no VMEM scratch
    pred = jnp.dot(hseq, lw_ref[...], preferred_element_type=f32)
    o_ref[...] = pred + lb_ref[...]


# ----------------------------------------------------------------------------
# Plain-JAX glue (im2col) and one-time parameter preparation
# ----------------------------------------------------------------------------
def im2col(x, kh, kw, stride):
    """x: (N, C, H, W) -> patches (N*oh*ow, C*kh*kw) in PyTorch (C, kh, kw) order."""
    N, C, H, W = x.shape
    oh = (H - kh) // stride + 1
    ow = (W - kw) // stride + 1
    cols = []
    for i in range(kh):
        for j in range(kw):
            cols.append(x[:, :, i:i + stride * oh:stride, j:j + stride * ow:stride])
    p = jnp.stack(cols, axis=2)                      # (N, C, kh*kw, oh, ow)
    p = p.transpose(0, 3, 4, 1, 2)                   # (N, oh, ow, C, kh*kw)
    return p.reshape(N * oh * ow, C * kh * kw), oh, ow


def prep_lstm_weights(w_ih, w_hh, b_ih, b_hh, H=H_RNN, Hp=HP):
    """PyTorch LSTM params -> fused, transposed, zero-padded (100->128) layouts."""
    I = w_ih.shape[1]
    wih = w_ih.reshape(4, H, I).transpose(0, 2, 1)             # (4, I, H)
    wih = jnp.pad(wih, ((0, 0), (0, 0), (0, Hp - H)))          # (4, I, Hp)
    wih = wih.transpose(1, 0, 2).reshape(I, 4 * Hp)            # (I, 4Hp)  [i|f|g|o]
    whh = w_hh.reshape(4, H, H).transpose(0, 2, 1)             # (4, H_in, H_out)
    whh = jnp.pad(whh, ((0, 0), (0, Hp - H), (0, Hp - H)))     # (4, Hp, Hp)
    whh = whh.transpose(1, 0, 2).reshape(Hp, 4 * Hp)           # (Hp, 4Hp)
    b = (b_ih + b_hh).reshape(4, H)
    b = jnp.pad(b, ((0, 0), (0, Hp - H))).reshape(1, 4 * Hp)   # (1, 4Hp)
    return wih, whh, b


def init_params(key):
    ks = jax.random.split(key, 16)

    def nrm(k, shape, scale=0.1):
        return (scale * jax.random.normal(k, shape)).astype(jnp.float32)

    return {
        # conv weights flattened PyTorch-style: (C_out, C_in*kh*kw)
        "w1": nrm(ks[0], (2, 1 * 6 * 6)),  "b1": nrm(ks[1], (2,)),
        "w2": nrm(ks[2], (4, 2 * 3 * 3)),  "b2": nrm(ks[3], (4,)),
        "w3": nrm(ks[4], (4, 4)),          "b3": nrm(ks[5], (4,)),
        # dense layers in GEMM layout (in_features, out_features)
        "fc1_w": nrm(ks[6], (36, 16)),     "fc1_b": nrm(ks[7], (16,)),
        "fc2_w": nrm(ks[8], (16, 3)),      "fc2_b": nrm(ks[9], (3,)),
        # LSTM(input=6, hidden=100), PyTorch parameter shapes
        "w_ih": nrm(ks[10], (4 * H_RNN, 6)),
        "w_hh": nrm(ks[11], (4 * H_RNN, H_RNN)),
        "b_ih": nrm(ks[12], (4 * H_RNN,)),
        "b_hh": nrm(ks[13], (4 * H_RNN,)),
        # final Linear(100, 3) in GEMM layout (in, out)
        "lin_w": nrm(ks[14], (H_RNN, 3)),
        "lin_b": nrm(ks[15], (3,)),
    }


def prepare_params(p):
    """One-time (outside jit) re-layout of PyTorch-style params into kernel layouts."""
    eye9 = jnp.eye(9, dtype=jnp.float32)
    wih, whh, blstm = prep_lstm_weights(p["w_ih"], p["w_hh"], p["b_ih"], p["b_hh"])
    prepped = {
        # conv1
        "w1": p["w1"], "b1": p["b1"].reshape(2, 1),
        # conv2 / conv3 as block-diagonal GEMMs over the 9 output positions
        "w2b": jnp.kron(eye9, p["w2"].T),                         # (162, 36)
        "b2t": jnp.tile(p["b2"], 9).reshape(1, 36),
        "w3b": jnp.kron(eye9, p["w3"].T),                         # (36, 36)
        "b3t": jnp.tile(p["b3"], 9).reshape(1, 36),
        # fc1 with the channel-major flatten permutation folded into its rows
        "fc1p": p["fc1_w"].reshape(4, 9, 16).transpose(1, 0, 2).reshape(36, 16),
        "fc1b": p["fc1_b"].reshape(1, 16),
        "fc2w": p["fc2_w"], "fc2b": p["fc2_b"].reshape(1, 3),
        # LSTM (fused gates, padded 100 -> 128); concat split: [fc2_out | x_t]
        "wih_a": wih[0:3], "wih_b": wih[3:6],
        "blstm": blstm, "whh": whh,
        # final Linear, rows zero-padded 100 -> 128
        "linw": jnp.pad(p["lin_w"], ((0, HP - H_RNN), (0, 0))),
        "linb": p["lin_b"].reshape(1, 3),
    }
    return jax.tree_util.tree_map(lambda a: jnp.asarray(a, jnp.float32), prepped)


# ----------------------------------------------------------------------------
# Forward pass (2 pallas_call launches)
# ----------------------------------------------------------------------------
def conv_recurrent_forward(prep, x_w, x_t):
    """x_w: (T, B, conv_in=1, D=1, 20, 20); x_t: (T, B, 3) -> (T, B, 3)."""
    T, B = x_t.shape[0], x_t.shape[1]
    N = T * B
    x = x_w.reshape(N, 1, x_w.shape[-2], x_w.shape[-1])          # (N, 1, 20, 20)

    # ---- conv1: Conv3d(1->2, k=(1,6,6), s=2) + ReLU (im2col + transposed GEMM)
    # TODO(synk): conv1 im2col stays wrapper-side XLA (second-order win to fold in-kernel).
    p1, oh1, ow1 = im2col(x, 6, 6, 2)                            # (N*64, 36)
    p1T = p1.T                                                   # (36, N*64)
    M1 = p1T.shape[1]
    a1T = pl.pallas_call(
        _conv1_kernel,
        out_shape=jax.ShapeDtypeStruct((2, M1), jnp.float32),
        grid=(1,),                                               # no grid split: pure overhead at this size
        in_specs=[
            pl.BlockSpec((36, M1), lambda i: (0, 0)),
            pl.BlockSpec((2, 36), lambda i: (0, 0)),
            pl.BlockSpec((2, 1), lambda i: (0, 0)),
        ],
        out_specs=pl.BlockSpec((2, M1), lambda i: (0, 0)),
        compiler_params=pltpu.CompilerParams(dimension_semantics=("arbitrary",)),
    )(p1T, prep["w1"], prep["b1"])
    a1 = a1T.reshape(2, N, oh1, ow1).transpose(1, 0, 2, 3)       # (N, 2, 8, 8) NCHW

    # ---- conv2 patches, flattened per sample: lane order (hw, c_in, ki, kj)
    p2, oh2, ow2 = im2col(a1, 3, 3, 2)                           # (N*9, 18)
    p2f = p2.reshape(N, oh2 * ow2 * 18)                          # (N, 162)

    # ---- ONE fused kernel: conv2+conv3+flatten+fc1+fc2+concat+LSTM+Linear
    operands = (p2f, x_t.reshape(N, 3),
                prep["w2b"], prep["b2t"], prep["w3b"], prep["b3t"],
                prep["fc1p"], prep["fc1b"], prep["fc2w"], prep["fc2b"],
                prep["wih_a"], prep["wih_b"], prep["blstm"], prep["whh"],
                prep["linw"], prep["linb"])
    in_specs = [pl.BlockSpec(op.shape, lambda i: (0, 0)) for op in operands]

    pred = pl.pallas_call(
        functools.partial(_fused_net_kernel, seq_len=T, batch=B),
        out_shape=jax.ShapeDtypeStruct((N, 3), jnp.float32),
        grid=(1,),
        in_specs=in_specs,
        out_specs=pl.BlockSpec((N, 3), lambda i: (0, 0)),
        compiler_params=pltpu.CompilerParams(dimension_semantics=("arbitrary",)),
    )(*operands)

    return pred.reshape(T, B, 3)


if __name__ == "__main__":
    T, B = 8, 2
    key = jax.random.PRNGKey(0)
    k_w, k_t = jax.random.split(key)
    # weather cube input: (T, B, conv_input=1, cube_height=1, 20, 20)
    x_w = jax.random.normal(k_w, (T, B, 1, 1, 20, 20), dtype=jnp.float32)
    # auxiliary trajectory input: (T, B, 3)
    x_t = jax.random.normal(k_t, (T, B, 3), dtype=jnp.float32)

    params = init_params(jax.random.PRNGKey(42))
    prep = prepare_params(params)            # one-time weight re-layout, OUTSIDE jit

    forward = jax.jit(conv_recurrent_forward)
    out = forward(prep, x_w, x_t)
    out = jax.block_until_ready(out)
    assert out.shape == (T, B, 3)
    print("KERNEL_OK")
</pallas_src>

<mosaic_0001>
module attributes {stable_mosaic.version = 11 : i64} {
  func.func @_conv1_kernel(%arg0: i32, %arg1: memref<36x1024xf32, #tpu.memory_space<vmem>>, %arg2: memref<2x36xf32, #tpu.memory_space<vmem>>, %arg3: memref<2x1xf32, #tpu.memory_space<vmem>>, %arg4: memref<2x1024xf32, #tpu.memory_space<vmem>>) attributes {dimension_semantics = [#tpu.dimension_semantics<arbitrary>], iteration_bounds = array<i64: 1>, scalar_prefetch = 0 : i64, scratch_operands = 0 : i64, tpu.core_type = #tpu.core_type<tc>, window_params = [{pipeline_mode = #tpu.pipeline_mode<synchronous>, transform_indices = @transform_0, window_bounds = array<i64: 36, 1024>}, {pipeline_mode = #tpu.pipeline_mode<synchronous>, transform_indices = @transform_1, window_bounds = array<i64: 2, 36>}, {pipeline_mode = #tpu.pipeline_mode<synchronous>, transform_indices = @transform_2, window_bounds = array<i64: 2, 1>}, {pipeline_mode = #tpu.pipeline_mode<synchronous>, transform_indices = @transform_3, window_bounds = array<i64: 2, 1024>}]} {
    %c0 = arith.constant 0 : index
    %c0_0 = arith.constant 0 : index
    %0 = vector.load %arg2[%c0, %c0_0] : memref<2x36xf32, #tpu.memory_space<vmem>>, vector<2x36xf32>
    %c0_1 = arith.constant 0 : index
    %c0_2 = arith.constant 0 : index
    %1 = vector.load %arg1[%c0_1, %c0_2] : memref<36x1024xf32, #tpu.memory_space<vmem>>, vector<36x1024xf32>
    %cst = arith.constant dense<0.000000e+00> : vector<2x1024xf32>
    %2 = tpu.matmul %0, %1, %cst {dimension_numbers = #tpu.dot_dimension_numbers<[1], [0], [0], [1], [0, 0, 1, 1], [], []>} : vector<2x36xf32>, vector<36x1024xf32>, vector<2x1024xf32> -> vector<2x1024xf32>
    %c0_3 = arith.constant 0 : index
    %c0_4 = arith.constant 0 : index
    %3 = vector.load %arg3[%c0_3, %c0_4] : memref<2x1xf32, #tpu.memory_space<vmem>>, vector<2x1xf32>
    %4 = vector.broadcast %3 : vector<2x1xf32> to vector<2x1024xf32>
    %5 = arith.addf %2, %4 : vector<2x1024xf32>
    %cst_5 = arith.constant 0.000000e+00 : f32
    %6 = vector.broadcast %cst_5 : f32 to vector<2x1024xf32>
    %7 = arith.maximumf %5, %6 : vector<2x1024xf32>
    %c0_6 = arith.constant 0 : index
    %c0_7 = arith.constant 0 : index
    %8 = vector.load %arg4[%c0_6, %c0_7] : memref<2x1024xf32, #tpu.memory_space<vmem>>, vector<2x1024xf32>
    tpu.vector_store %arg4[%c0_6, %c0_7], %7 {strides = array<i32>} : memref<2x1024xf32, #tpu.memory_space<vmem>>, vector<2x1024xf32>,
    return
  }
  func.func @transform_0(%arg0: i32) -> (i32, i32) {
    %c0_i32 = arith.constant 0 : i32
    %c0_i32_0 = arith.constant 0 : i32
    %c0_i32_1 = arith.constant 0 : i32
    return %c0_i32, %c0_i32_0 : i32, i32
  }
  func.func @transform_1(%arg0: i32) -> (i32, i32) {
    %c0_i32 = arith.constant 0 : i32
    %c0_i32_0 = arith.constant 0 : i32
    %c0_i32_1 = arith.constant 0 : i32
    return %c0_i32, %c0_i32_0 : i32, i32
  }
  func.func @transform_2(%arg0: i32) -> (i32, i32) {
    %c0_i32 = arith.constant 0 : i32
    %c0_i32_0 = arith.constant 0 : i32
    %c0_i32_1 = arith.constant 0 : i32
    return %c0_i32, %c0_i32_0 : i32, i32
  }
  func.func @transform_3(%arg0: i32) -> (i32, i32) {
    %c0_i32 = arith.constant 0 : i32
    %c0_i32_0 = arith.constant 0 : i32
    %c0_i32_1 = arith.constant 0 : i32
    return %c0_i32, %c0_i32_0 : i32, i32
  }
}

module attributes {stable_mosaic.version = 11 : i64} {
  func.func @_fused_net_kernel(%arg0: i32, %arg1: memref<16x162xf32, #tpu.memory_space<vmem>>, %arg2: memref<16x3xf32, #tpu.memory_space<vmem>>, %arg3: memref<162x36xf32, #tpu.memory_space<vmem>>, %arg4: memref<1x36xf32, #tpu.memory_space<vmem>>, %arg5: memref<36x36xf32, #tpu.memory_space<vmem>>, %arg6: memref<1x36xf32, #tpu.memory_space<vmem>>, %arg7: memref<36x16xf32, #tpu.memory_space<vmem>>, %arg8: memref<1x16xf32, #tpu.memory_space<vmem>>, %arg9: memref<16x3xf32, #tpu.memory_space<vmem>>, %arg10: memref<1x3xf32, #tpu.memory_space<vmem>>, %arg11: memref<3x512xf32, #tpu.memory_space<vmem>>, %arg12: memref<3x512xf32, #tpu.memory_space<vmem>>, %arg13: memref<1x512xf32, #tpu.memory_space<vmem>>, %arg14: memref<128x512xf32, #tpu.memory_space<vmem>>, %arg15: memref<128x3xf32, #tpu.memory_space<vmem>>, %arg16: memref<1x3xf32, #tpu.memory_space<vmem>>, %arg17: memref<16x3xf32, #tpu.memory_space<vmem>>) attributes {dimension_semantics = [#tpu.dimension_semantics<arbitrary>], iteration_bounds = array<i64: 1>, scalar_prefetch = 0 : i64, scratch_operands = 0 : i64, tpu.core_type = #tpu.core_type<tc>, window_params = [{pipeline_mode = #tpu.pipeline_mode<synchronous>, transform_indices = @transform_0, window_bounds = array<i64: 16, 162>}, {pipeline_mode = #tpu.pipeline_mode<synchronous>, transform_indices = @transform_1, window_bounds = array<i64: 16, 3>}, {pipeline_mode = #tpu.pipeline_mode<synchronous>, transform_indices = @transform_2, window_bounds = array<i64: 162, 36>}, {pipeline_mode = #tpu.pipeline_mode<synchronous>, transform_indices = @transform_3, window_bounds = array<i64: 1, 36>}, {pipeline_mode = #tpu.pipeline_mode<synchronous>, transform_indices = @transform_4, window_bounds = array<i64: 36, 36>}, {pipeline_mode = #tpu.pipeline_mode<synchronous>, transform_indices = @transform_5, window_bounds = array<i64: 1, 36>}, {pipeline_mode = #tpu.pipeline_mode<synchronous>, transform_indices = @transform_6, window_bounds = array<i64: 36, 16>}, {pipeline_mode = #tpu.pipeline_mode<synchronous>, transform_indices = @transform_7, window_bounds = array<i64: 1, 16>}, {pipeline_mode = #tpu.pipeline_mode<synchronous>, transform_indices = @transform_8, window_bounds = array<i64: 16, 3>}, {pipeline_mode = #tpu.pipeline_mode<synchronous>, transform_indices = @transform_9, window_bounds = array<i64: 1, 3>}, {pipeline_mode = #tpu.pipeline_mode<synchronous>, transform_indices = @transform_10, window_bounds = array<i64: 3, 512>}, {pipeline_mode = #tpu.pipeline_mode<synchronous>, transform_indices = @transform_11, window_bounds = array<i64: 3, 512>}, {pipeline_mode = #tpu.pipeline_mode<synchronous>, transform_indices = @transform_12, window_bounds = array<i64: 1, 512>}, {pipeline_mode = #tpu.pipeline_mode<synchronous>, transform_indices = @transform_13, window_bounds = array<i64: 128, 512>}, {pipeline_mode = #tpu.pipeline_mode<synchronous>, transform_indices = @transform_14, window_bounds = array<i64: 128, 3>}, {pipeline_mode = #tpu.pipeline_mode<synchronous>, transform_indices = @transform_15, window_bounds = array<i64: 1, 3>}, {pipeline_mode = #tpu.pipeline_mode<synchronous>, transform_indices = @transform_16, window_bounds = array<i64: 16, 3>}]} {
    %c0 = arith.constant 0 : index
    %c0_0 = arith.constant 0 : index
    %0 = vector.load %arg1[%c0, %c0_0] : memref<16x162xf32, #tpu.memory_space<vmem>>, vector<16x162xf32>
    %c0_1 = arith.constant 0 : index
    %c0_2 = arith.constant 0 : index
    %1 = vector.load %arg3[%c0_1, %c0_2] : memref<162x36xf32, #tpu.memory_space<vmem>>, vector<162x36xf32>
    %cst = arith.constant dense<0.000000e+00> : vector<16x36xf32>
    %2 = tpu.matmul %0, %1, %cst {dimension_numbers = #tpu.dot_dimension_numbers<[1], [0], [0], [1], [0, 0, 1, 1], [], []>} : vector<16x162xf32>, vector<162x36xf32>, vector<16x36xf32> -> vector<16x36xf32>
    %c0_3 = arith.constant 0 : index
    %c0_4 = arith.constant 0 : index
    %3 = vector.load %arg4[%c0_3, %c0_4] : memref<1x36xf32, #tpu.memory_space<vmem>>, vector<1x36xf32>
    %4 = vector.broadcast %3 : vector<1x36xf32> to vector<16x36xf32>
    %5 = arith.addf %2, %4 : vector<16x36xf32>
    %cst_5 = arith.constant 0.000000e+00 : f32
    %6 = vector.broadcast %cst_5 : f32 to vector<16x36xf32>
    %7 = arith.maximumf %5, %6 : vector<16x36xf32>
    %c0_6 = arith.constant 0 : index
    %c0_7 = arith.constant 0 : index
    %8 = vector.load %arg5[%c0_6, %c0_7] : memref<36x36xf32, #tpu.memory_space<vmem>>, vector<36x36xf32>
    %cst_8 = arith.constant dense<0.000000e+00> : vector<16x36xf32>
    %9 = tpu.matmul %7, %8, %cst_8 {dimension_numbers = #tpu.dot_dimension_numbers<[1], [0], [0], [1], [0, 0, 1, 1], [], []>} : vector<16x36xf32>, vector<36x36xf32>, vector<16x36xf32> -> vector<16x36xf32>
    %c0_9 = arith.constant 0 : index
    %c0_10 = arith.constant 0 : index
    %10 = vector.load %arg6[%c0_9, %c0_10] : memref<1x36xf32, #tpu.memory_space<vmem>>, vector<1x36xf32>
    %11 = vector.broadcast %10 : vector<1x36xf32> to vector<16x36xf32>
    %12 = arith.addf %9, %11 : vector<16x36xf32>
    %cst_11 = arith.constant 0.000000e+00 : f32
    %13 = vector.broadcast %cst_11 : f32 to vector<16x36xf32>
    %14 = arith.maximumf %12, %13 : vector<16x36xf32>
    %c0_12 = arith.constant 0 : index
    %c0_13 = arith.constant 0 : index
    %15 = vector.load %arg7[%c0_12, %c0_13] : memref<36x16xf32, #tpu.memory_space<vmem>>, vector<36x16xf32>
    %cst_14 = arith.constant dense<0.000000e+00> : vector<16x16xf32>
    %16 = tpu.matmul %14, %15, %cst_14 {dimension_numbers = #tpu.dot_dimension_numbers<[1], [0], [0], [1], [0, 0, 1, 1], [], []>} : vector<16x36xf32>, vector<36x16xf32>, vector<16x16xf32> -> vector<16x16xf32>
    %c0_15 = arith.constant 0 : index
    %c0_16 = arith.constant 0 : index
    %17 = vector.load %arg8[%c0_15, %c0_16] : memref<1x16xf32, #tpu.memory_space<vmem>>, vector<1x16xf32>
    %18 = vector.broadcast %17 : vector<1x16xf32> to vector<16x16xf32>
    %19 = arith.addf %16, %18 : vector<16x16xf32>
    %cst_17 = arith.constant 0.000000e+00 : f32
    %20 = vector.broadcast %cst_17 : f32 to vector<16x16xf32>
    %21 = arith.maximumf %19, %20 : vector<16x16xf32>
    %c0_18 = arith.constant 0 : index
    %c0_19 = arith.constant 0 : index
    %22 = vector.load %arg9[%c0_18, %c0_19] : memref<16x3xf32, #tpu.memory_space<vmem>>, vector<16x3xf32>
    %cst_20 = arith.constant dense<0.000000e+00> : vector<16x3xf32>
    %23 = tpu.matmul %21, %22, %cst_20 {dimension_numbers = #tpu.dot_dimension_numbers<[1], [0], [0], [1], [0, 0, 1, 1], [], []>} : vector<16x16xf32>, vector<16x3xf32>, vector<16x3xf32> -> vector<16x3xf32>
    %c0_21 = arith.constant 0 : index
    %c0_22 = arith.constant 0 : index
    %24 = vector.load %arg10[%c0_21, %c0_22] : memref<1x3xf32, #tpu.memory_space<vmem>>, vector<1x3xf32>
    %25 = vector.broadcast %24 : vector<1x3xf32> to vector<16x3xf32>
    %26 = arith.addf %23, %25 : vector<16x3xf32>
    %cst_23 = arith.constant 0.000000e+00 : f32
    %27 = vector.broadcast %cst_23 : f32 to vector<16x3xf32>
    %28 = arith.maximumf %26, %27 : vector<16x3xf32>
    %c0_24 = arith.constant 0 : index
    %c0_25 = arith.constant 0 : index
    %29 = vector.load %arg11[%c0_24, %c0_25] : memref<3x512xf32, #tpu.memory_space<vmem>>, vector<3x512xf32>
    %cst_26 = arith.constant dense<0.000000e+00> : vector<16x512xf32>
    %30 = tpu.matmul %28, %29, %cst_26 {dimension_numbers = #tpu.dot_dimension_numbers<[1], [0], [0], [1], [0, 0, 1, 1], [], []>} : vector<16x3xf32>, vector<3x512xf32>, vector<16x512xf32> -> vector<16x512xf32>
    %c0_27 = arith.constant 0 : index
    %c0_28 = arith.constant 0 : index
    %31 = vector.load %arg2[%c0_27, %c0_28] : memref<16x3xf32, #tpu.memory_space<vmem>>, vector<16x3xf32>
    %c0_29 = arith.constant 0 : index
    %c0_30 = arith.constant 0 : index
    %32 = vector.load %arg12[%c0_29, %c0_30] : memref<3x512xf32, #tpu.memory_space<vmem>>, vector<3x512xf32>
    %cst_31 = arith.constant dense<0.000000e+00> : vector<16x512xf32>
    %33 = tpu.matmul %31, %32, %cst_31 {dimension_numbers = #tpu.dot_dimension_numbers<[1], [0], [0], [1], [0, 0, 1, 1], [], []>} : vector<16x3xf32>, vector<3x512xf32>, vector<16x512xf32> -> vector<16x512xf32>
    %34 = arith.addf %30, %33 : vector<16x512xf32>
    %c0_32 = arith.constant 0 : index
    %c0_33 = arith.constant 0 : index
    %35 = vector.load %arg13[%c0_32, %c0_33] : memref<1x512xf32, #tpu.memory_space<vmem>>, vector<1x512xf32>
    %36 = vector.broadcast %35 : vector<1x512xf32> to vector<16x512xf32>
    %37 = arith.addf %34, %36 : vector<16x512xf32>
    %c0_34 = arith.constant 0 : index
    %c0_35 = arith.constant 0 : index
    %38 = vector.load %arg14[%c0_34, %c0_35] : memref<128x512xf32, #tpu.memory_space<vmem>>, vector<128x512xf32>
    %cst_36 = arith.constant 0.000000e+00 : f32
    %39 = vector.broadcast %cst_36 : f32 to vector<2x128xf32>
    %cst_37 = arith.constant 0.000000e+00 : f32
    %40 = vector.broadcast %cst_37 : f32 to vector<2x128xf32>
    %41 = vector.extract_strided_slice %37 {offsets = [0, 0], sizes = [2, 512], strides = [1, 1]} : vector<16x512xf32> to vector<2x512xf32>
    %cst_38 = arith.constant dense<0.000000e+00> : vector<2x512xf32>
    %42 = tpu.matmul %39, %38, %cst_38 {dimension_numbers = #tpu.dot_dimension_numbers<[1], [0], [0], [1], [0, 0, 1, 1], [], []>} : vector<2x128xf32>, vector<128x512xf32>, vector<2x512xf32> -> vector<2x512xf32>
    %43 = arith.addf %41, %42 : vector<2x512xf32>
    %44 = vector.extract_strided_slice %43 {offsets = [0, 0], sizes = [2, 128], strides = [1, 1]} : vector<2x512xf32> to vector<2x128xf32>
    %45 = arith.negf %44 : vector<2x128xf32>
    %46 = math.exp %45 : vector<2x128xf32>
    %cst_39 = arith.constant 1.000000e+00 : f32
    %47 = vector.broadcast %cst_39 : f32 to vector<2x128xf32>
    %48 = arith.addf %47, %46 : vector<2x128xf32>
    %49 = arith.divf %47, %48 : vector<2x128xf32>
    %50 = vector.extract_strided_slice %43 {offsets = [0, 128], sizes = [2, 128], strides = [1, 1]} : vector<2x512xf32> to vector<2x128xf32>
    %51 = arith.negf %50 : vector<2x128xf32>
    %52 = math.exp %51 : vector<2x128xf32>
    %cst_40 = arith.constant 1.000000e+00 : f32
    %53 = vector.broadcast %cst_40 : f32 to vector<2x128xf32>
    %54 = arith.addf %53, %52 : vector<2x128xf32>
    %55 = arith.divf %53, %54 : vector<2x128xf32>
    %56 = vector.extract_strided_slice %43 {offsets = [0, 256], sizes = [2, 128], strides = [1, 1]} : vector<2x512xf32> to vector<2x128xf32>
    %57 = math.tanh %56 : vector<2x128xf32>
    %58 = vector.extract_strided_slice %43 {offsets = [0, 384], sizes = [2, 128], strides = [1, 1]} : vector<2x512xf32> to vector<2x128xf32>
    %59 = arith.negf %58 : vector<2x128xf32>
    %60 = math.exp %59 : vector<2x128xf32>
    %cst_41 = arith.constant 1.000000e+00 : f32
    %61 = vector.broadcast %cst_41 : f32 to vector<2x128xf32>
    %62 = arith.addf %61, %60 : vector<2x128xf32>
    %63 = arith.divf %61, %62 : vector<2x128xf32>
    %64 = arith.mulf %55, %40 : vector<2x128xf32>
    %65 = arith.mulf %49, %57 : vector<2x128xf32>
    %66 = arith.addf %64, %65 : vector<2x128xf32>
    %67 = math.tanh %66 : vector<2x128xf32>
    %68 = arith.mulf %63, %67 : vector<2x128xf32>
    %69 = vector.extract_strided_slice %37 {offsets = [2, 0], sizes = [2, 512], strides = [1, 1]} : vector<16x512xf32> to vector<2x512xf32>
    %cst_42 = arith.constant dense<0.000000e+00> : vector<2x512xf32>
    %70 = tpu.matmul %68, %38, %cst_42 {dimension_numbers = #tpu.dot_dimension_numbers<[1], [0], [0], [1], [0, 0, 1, 1], [], []>} : vector<2x128xf32>, vector<128x512xf32>, vector<2x512xf32> -> vector<2x512xf32>
    %71 = arith.addf %69, %70 : vector<2x512xf32>
    %72 = vector.extract_strided_slice %71 {offsets = [0, 0], sizes = [2, 128], strides = [1, 1]} : vector<2x512xf32> to vector<2x128xf32>
    %73 = arith.negf %72 : vector<2x128xf32>
    %74 = math.exp %73 : vector<2x128xf32>
    %cst_43 = arith.constant 1.000000e+00 : f32
    %75 = vector.broadcast %cst_43 : f32 to vector<2x128xf32>
    %76 = arith.addf %75, %74 : vector<2x128xf32>
    %77 = arith.divf %75, %76 : vector<2x128xf32>
    %78 = vector.extract_strided_slice %71 {offsets = [0, 128], sizes = [2, 128], strides = [1, 1]} : vector<2x512xf32> to vector<2x128xf32>
    %79 = arith.negf %78 : vector<2x128xf32>
    %80 = math.exp %79 : vector<2x128xf32>
    %cst_44 = arith.constant 1.000000e+00 : f32
    %81 = vector.broadcast %cst_44 : f32 to vector<2x128xf32>
    %82 = arith.addf %81, %80 : vector<2x128xf32>
    %83 = arith.divf %81, %82 : vector<2x128xf32>
    %84 = vector.extract_strided_slice %71 {offsets = [0, 256], sizes = [2, 128], strides = [1, 1]} : vector<2x512xf32> to vector<2x128xf32>
    %85 = math.tanh %84 : vector<2x128xf32>
    %86 = vector.extract_strided_slice %71 {offsets = [0, 384], sizes = [2, 128], strides = [1, 1]} : vector<2x512xf32> to vector<2x128xf32>
    %87 = arith.negf %86 : vector<2x128xf32>
    %88 = math.exp %87 : vector<2x128xf32>
    %cst_45 = arith.constant 1.000000e+00 : f32
    %89 = vector.broadcast %cst_45 : f32 to vector<2x128xf32>
    %90 = arith.addf %89, %88 : vector<2x128xf32>
    %91 = arith.divf %89, %90 : vector<2x128xf32>
    %92 = arith.mulf %83, %66 : vector<2x128xf32>
    %93 = arith.mulf %77, %85 : vector<2x128xf32>
    %94 = arith.addf %92, %93 : vector<2x128xf32>
    %95 = math.tanh %94 : vector<2x128xf32>
    %96 = arith.mulf %91, %95 : vector<2x128xf32>
    %97 = vector.extract_strided_slice %37 {offsets = [4, 0], sizes = [2, 512], strides = [1, 1]} : vector<16x512xf32> to vector<2x512xf32>
    %cst_46 = arith.constant dense<0.000000e+00> : vector<2x512xf32>
    %98 = tpu.matmul %96, %38, %cst_46 {dimension_numbers = #tpu.dot_dimension_numbers<[1], [0], [0], [1], [0, 0, 1, 1], [], []>} : vector<2x128xf32>, vector<128x512xf32>, vector<2x512xf32> -> vector<2x512xf32>
    %99 = arith.addf %97, %98 : vector<2x512xf32>
    %100 = vector.extract_strided_slice %99 {offsets = [0, 0], sizes = [2, 128], strides = [1, 1]} : vector<2x512xf32> to vector<2x128xf32>
    %101 = arith.negf %100 : vector<2x128xf32>
    %102 = math.exp %101 : vector<2x128xf32>
    %cst_47 = arith.constant 1.000000e+00 : f32
    %103 = vector.broadcast %cst_47 : f32 to vector<2x128xf32>
    %104 = arith.addf %103, %102 : vector<2x128xf32>
    %105 = arith.divf %103, %104 : vector<2x128xf32>
    %106 = vector.extract_strided_slice %99 {offsets = [0, 128], sizes = [2, 128], strides = [1, 1]} : vector<2x512xf32> to vector<2x128xf32>
    %107 = arith.negf %106 : vector<2x128xf32>
    %108 = math.exp %107 : vector<2x128xf32>
    %cst_48 = arith.constant 1.000000e+00 : f32
    %109 = vector.broadcast %cst_48 : f32 to vector<2x128xf32>
    %110 = arith.addf %109, %108 : vector<2x128xf32>
    %111 = arith.divf %109, %110 : vector<2x128xf32>
    %112 = vector.extract_strided_slice %99 {offsets = [0, 256], sizes = [2, 128], strides = [1, 1]} : vector<2x512xf32> to vector<2x128xf32>
    %113 = math.tanh %112 : vector<2x128xf32>
    %114 = vector.extract_strided_slice %99 {offsets = [0, 384], sizes = [2, 128], strides = [1, 1]} : vector<2x512xf32> to vector<2x128xf32>
    %115 = arith.negf %114 : vector<2x128xf32>
    %116 = math.exp %115 : vector<2x128xf32>
    %cst_49 = arith.constant 1.000000e+00 : f32
    %117 = vector.broadcast %cst_49 : f32 to vector<2x128xf32>
    %118 = arith.addf %117, %116 : vector<2x128xf32>
    %119 = arith.divf %117, %118 : vector<2x128xf32>
    %120 = arith.mulf %111, %94 : vector<2x128xf32>
    %121 = arith.mulf %105, %113 : vector<2x128xf32>
    %122 = arith.addf %120, %121 : vector<2x128xf32>
    %123 = math.tanh %122 : vector<2x128xf32>
    %124 = arith.mulf %119, %123 : vector<2x128xf32>
    %125 = vector.extract_strided_slice %37 {offsets = [6, 0], sizes = [2, 512], strides = [1, 1]} : vector<16x512xf32> to vector<2x512xf32>
    %cst_50 = arith.constant dense<0.000000e+00> : vector<2x512xf32>
    %126 = tpu.matmul %124, %38, %cst_50 {dimension_numbers = #tpu.dot_dimension_numbers<[1], [0], [0], [1], [0, 0, 1, 1], [], []>} : vector<2x128xf32>, vector<128x512xf32>, vector<2x512xf32> -> vector<2x512xf32>
    %127 = arith.addf %125, %126 : vector<2x512xf32>
    %128 = vector.extract_strided_slice %127 {offsets = [0, 0], sizes = [2, 128], strides = [1, 1]} : vector<2x512xf32> to vector<2x128xf32>
    %129 = arith.negf %128 : vector<2x128xf32>
    %130 = math.exp %129 : vector<2x128xf32>
    %cst_51 = arith.constant 1.000000e+00 : f32
    %131 = vector.broadcast %cst_51 : f32 to vector<2x128xf32>
    %132 = arith.addf %131, %130 : vector<2x128xf32>
    %133 = arith.divf %131, %132 : vector<2x128xf32>
    %134 = vector.extract_strided_slice %127 {offsets = [0, 128], sizes = [2, 128], strides = [1, 1]} : vector<2x512xf32> to vector<2x128xf32>
    %135 = arith.negf %134 : vector<2x128xf32>
    %136 = math.exp %135 : vector<2x128xf32>
    %cst_52 = arith.constant 1.000000e+00 : f32
    %137 = vector.broadcast %cst_52 : f32 to vector<2x128xf32>
    %138 = arith.addf %137, %136 : vector<2x128xf32>
    %139 = arith.divf %137, %138 : vector<2x128xf32>
    %140 = vector.extract_strided_slice %127 {offsets = [0, 256], sizes = [2, 128], strides = [1, 1]} : vector<2x512xf32> to vector<2x128xf32>
    %141 = math.tanh %140 : vector<2x128xf32>
    %142 = vector.extract_strided_slice %127 {offsets = [0, 384], sizes = [2, 128], strides = [1, 1]} : vector<2x512xf32> to vector<2x128xf32>
    %143 = arith.negf %142 : vector<2x128xf32>
    %144 = math.exp %143 : vector<2x128xf32>
    %cst_53 = arith.constant 1.000000e+00 : f32
    %145 = vector.broadcast %cst_53 : f32 to vector<2x128xf32>
    %146 = arith.addf %145, %144 : vector<2x128xf32>
    %147 = arith.divf %145, %146 : vector<2x128xf32>
    %148 = arith.mulf %139, %122 : vector<2x128xf32>
    %149 = arith.mulf %133, %141 : vector<2x128xf32>
    %150 = arith.addf %148, %149 : vector<2x128xf32>
    %151 = math.tanh %150 : vector<2x128xf32>
    %152 = arith.mulf %147, %151 : vector<2x128xf32>
    %153 = vector.extract_strided_slice %37 {offsets = [8, 0], sizes = [2, 512], strides = [1, 1]} : vector<16x512xf32> to vector<2x512xf32>
    %cst_54 = arith.constant dense<0.000000e+00> : vector<2x512xf32>
    %154 = tpu.matmul %152, %38, %cst_54 {dimension_numbers = #tpu.dot_dimension_numbers<[1], [0], [0], [1], [0, 0, 1, 1], [], []>} : vector<2x128xf32>, vector<128x512xf32>, vector<2x512xf32> -> vector<2x512xf32>
    %155 = arith.addf %153, %154 : vector<2x512xf32>
    %156 = vector.extract_strided_slice %155 {offsets = [0, 0], sizes = [2, 128], strides = [1, 1]} : vector<2x512xf32> to vector<2x128xf32>
    %157 = arith.negf %156 : vector<2x128xf32>
    %158 = math.exp %157 : vector<2x128xf32>
    %cst_55 = arith.constant 1.000000e+00 : f32
    %159 = vector.broadcast %cst_55 : f32 to vector<2x128xf32>
    %160 = arith.addf %159, %158 : vector<2x128xf32>
    %161 = arith.divf %159, %160 : vector<2x128xf32>
    %162 = vector.extract_strided_slice %155 {offsets = [0, 128], sizes = [2, 128], strides = [1, 1]} : vector<2x512xf32> to vector<2x128xf32>
    %163 = arith.negf %162 : vector<2x128xf32>
    %164 = math.exp %163 : vector<2x128xf32>
    %cst_56 = arith.constant 1.000000e+00 : f32
    %165 = vector.broadcast %cst_56 : f32 to vector<2x128xf32>
    %166 = arith.addf %165, %164 : vector<2x128xf32>
    %167 = arith.divf %165, %166 : vector<2x128xf32>
    %168 = vector.extract_strided_slice %155 {offsets = [0, 256], sizes = [2, 128], strides = [1, 1]} : vector<2x512xf32> to vector<2x128xf32>
    %169 = math.tanh %168 : vector<2x128xf32>
    %170 = vector.extract_strided_slice %155 {offsets = [0, 384], sizes = [2, 128], strides = [1, 1]} : vector<2x512xf32> to vector<2x128xf32>
    %171 = arith.negf %170 : vector<2x128xf32>
    %172 = math.exp %171 : vector<2x128xf32>
    %cst_57 = arith.constant 1.000000e+00 : f32
    %173 = vector.broadcast %cst_57 : f32 to vector<2x128xf32>
    %174 = arith.addf %173, %172 : vector<2x128xf32>
    %175 = arith.divf %173, %174 : vector<2x128xf32>
    %176 = arith.mulf %167, %150 : vector<2x128xf32>
    %177 = arith.mulf %161, %169 : vector<2x128xf32>
    %178 = arith.addf %176, %177 : vector<2x128xf32>
    %179 = math.tanh %178 : vector<2x128xf32>
    %180 = arith.mulf %175, %179 : vector<2x128xf32>
    %181 = vector.extract_strided_slice %37 {offsets = [10, 0], sizes = [2, 512], strides = [1, 1]} : vector<16x512xf32> to vector<2x512xf32>
    %cst_58 = arith.constant dense<0.000000e+00> : vector<2x512xf32>
    %182 = tpu.matmul %180, %38, %cst_58 {dimension_numbers = #tpu.dot_dimension_numbers<[1], [0], [0], [1], [0, 0, 1, 1], [], []>} : vector<2x128xf32>, vector<128x512xf32>, vector<2x512xf32> -> vector<2x512xf32>
    %183 = arith.addf %181, %182 : vector<2x512xf32>
    %184 = vector.extract_strided_slice %183 {offsets = [0, 0], sizes = [2, 128], strides = [1, 1]} : vector<2x512xf32> to vector<2x128xf32>
    %185 = arith.negf %184 : vector<2x128xf32>
    %186 = math.exp %185 : vector<2x128xf32>
    %cst_59 = arith.constant 1.000000e+00 : f32
    %187 = vector.broadcast %cst_59 : f32 to vector<2x128xf32>
    %188 = arith.addf %187, %186 : vector<2x128xf32>
    %189 = arith.divf %187, %188 : vector<2x128xf32>
    %190 = vector.extract_strided_slice %183 {offsets = [0, 128], sizes = [2, 128], strides = [1, 1]} : vector<2x512xf32> to vector<2x128xf32>
    %191 = arith.negf %190 : vector<2x128xf32>
    %192 = math.exp %191 : vector<2x128xf32>
    %cst_60 = arith.constant 1.000000e+00 : f32
    %193 = vector.broadcast %cst_60 : f32 to vector<2x128xf32>
    %194 = arith.addf %193, %192 : vector<2x128xf32>
    %195 = arith.divf %193, %194 : vector<2x128xf32>
    %196 = vector.extract_strided_slice %183 {offsets = [0, 256], sizes = [2, 128], strides = [1, 1]} : vector<2x512xf32> to vector<2x128xf32>
    %197 = math.tanh %196 : vector<2x128xf32>
    %198 = vector.extract_strided_slice %183 {offsets = [0, 384], sizes = [2, 128], strides = [1, 1]} : vector<2x512xf32> to vector<2x128xf32>
    %199 = arith.negf %198 : vector<2x128xf32>
    %200 = math.exp %199 : vector<2x128xf32>
    %cst_61 = arith.constant 1.000000e+00 : f32
    %201 = vector.broadcast %cst_61 : f32 to vector<2x128xf32>
    %202 = arith.addf %201, %200 : vector<2x128xf32>
    %203 = arith.divf %201, %202 : vector<2x128xf32>
    %204 = arith.mulf %195, %178 : vector<2x128xf32>
    %205 = arith.mulf %189, %197 : vector<2x128xf32>
    %206 = arith.addf %204, %205 : vector<2x128xf32>
    %207 = math.tanh %206 : vector<2x128xf32>
    %208 = arith.mulf %203, %207 : vector<2x128xf32>
    %209 = vector.extract_strided_slice %37 {offsets = [12, 0], sizes = [2, 512], strides = [1, 1]} : vector<16x512xf32> to vector<2x512xf32>
    %cst_62 = arith.constant dense<0.000000e+00> : vector<2x512xf32>
    %210 = tpu.matmul %208, %38, %cst_62 {dimension_numbers = #tpu.dot_dimension_numbers<[1], [0], [0], [1], [0, 0, 1, 1], [], []>} : vector<2x128xf32>, vector<128x512xf32>, vector<2x512xf32> -> vector<2x512xf32>
    %211 = arith.addf %209, %210 : vector<2x512xf32>
    %212 = vector.extract_strided_slice %211 {offsets = [0, 0], sizes = [2, 128], strides = [1, 1]} : vector<2x512xf32> to vector<2x128xf32>
    %213 = arith.negf %212 : vector<2x128xf32>
    %214 = math.exp %213 : vector<2x128xf32>
    %cst_63 = arith.constant 1.000000e+00 : f32
    %215 = vector.broadcast %cst_63 : f32 to vector<2x128xf32>
    %216 = arith.addf %215, %214 : vector<2x128xf32>
    %217 = arith.divf %215, %216 : vector<2x128xf32>
    %218 = vector.extract_strided_slice %211 {offsets = [0, 128], sizes = [2, 128], strides = [1, 1]} : vector<2x512xf32> to vector<2x128xf32>
    %219 = arith.negf %218 : vector<2x128xf32>
    %220 = math.exp %219 : vector<2x128xf32>
    %cst_64 = arith.constant 1.000000e+00 : f32
    %221 = vector.broadcast %cst_64 : f32 to vector<2x128xf32>
    %222 = arith.addf %221, %220 : vector<2x128xf32>
    %223 = arith.divf %221, %222 : vector<2x128xf32>
    %224 = vector.extract_strided_slice %211 {offsets = [0, 256], sizes = [2, 128], strides = [1, 1]} : vector<2x512xf32> to vector<2x128xf32>
    %225 = math.tanh %224 : vector<2x128xf32>
    %226 = vector.extract_strided_slice %211 {offsets = [0, 384], sizes = [2, 128], strides = [1, 1]} : vector<2x512xf32> to vector<2x128xf32>
    %227 = arith.negf %226 : vector<2x128xf32>
    %228 = math.exp %227 : vector<2x128xf32>
    %cst_65 = arith.constant 1.000000e+00 : f32
    %229 = vector.broadcast %cst_65 : f32 to vector<2x128xf32>
    %230 = arith.addf %229, %228 : vector<2x128xf32>
    %231 = arith.divf %229, %230 : vector<2x128xf32>
    %232 = arith.mulf %223, %206 : vector<2x128xf32>
    %233 = arith.mulf %217, %225 : vector<2x128xf32>
    %234 = arith.addf %232, %233 : vector<2x128xf32>
    %235 = math.tanh %234 : vector<2x128xf32>
    %236 = arith.mulf %231, %235 : vector<2x128xf32>
    %237 = vector.extract_strided_slice %37 {offsets = [14, 0], sizes = [2, 512], strides = [1, 1]} : vector<16x512xf32> to vector<2x512xf32>
    %cst_66 = arith.constant dense<0.000000e+00> : vector<2x512xf32>
    %238 = tpu.matmul %236, %38, %cst_66 {dimension_numbers = #tpu.dot_dimension_numbers<[1], [0], [0], [1], [0, 0, 1, 1], [], []>} : vector<2x128xf32>, vector<128x512xf32>, vector<2x512xf32> -> vector<2x512xf32>
    %239 = arith.addf %237, %238 : vector<2x512xf32>
    %240 = vector.extract_strided_slice %239 {offsets = [0, 0], sizes = [2, 128], strides = [1, 1]} : vector<2x512xf32> to vector<2x128xf32>
    %241 = arith.negf %240 : vector<2x128xf32>
    %242 = math.exp %241 : vector<2x128xf32>
    %cst_67 = arith.constant 1.000000e+00 : f32
    %243 = vector.broadcast %cst_67 : f32 to vector<2x128xf32>
    %244 = arith.addf %243, %242 : vector<2x128xf32>
    %245 = arith.divf %243, %244 : vector<2x128xf32>
    %246 = vector.extract_strided_slice %239 {offsets = [0, 128], sizes = [2, 128], strides = [1, 1]} : vector<2x512xf32> to vector<2x128xf32>
    %247 = arith.negf %246 : vector<2x128xf32>
    %248 = math.exp %247 : vector<2x128xf32>
    %cst_68 = arith.constant 1.000000e+00 : f32
    %249 = vector.broadcast %cst_68 : f32 to vector<2x128xf32>
    %250 = arith.addf %249, %248 : vector<2x128xf32>
    %251 = arith.divf %249, %250 : vector<2x128xf32>
    %252 = vector.extract_strided_slice %239 {offsets = [0, 256], sizes = [2, 128], strides = [1, 1]} : vector<2x512xf32> to vector<2x128xf32>
    %253 = math.tanh %252 : vector<2x128xf32>
    %254 = vector.extract_strided_slice %239 {offsets = [0, 384], sizes = [2, 128], strides = [1, 1]} : vector<2x512xf32> to vector<2x128xf32>
    %255 = arith.negf %254 : vector<2x128xf32>
    %256 = math.exp %255 : vector<2x128xf32>
    %cst_69 = arith.constant 1.000000e+00 : f32
    %257 = vector.broadcast %cst_69 : f32 to vector<2x128xf32>
    %258 = arith.addf %257, %256 : vector<2x128xf32>
    %259 = arith.divf %257, %258 : vector<2x128xf32>
    %260 = arith.mulf %251, %234 : vector<2x128xf32>
    %261 = arith.mulf %245, %253 : vector<2x128xf32>
    %262 = arith.addf %260, %261 : vector<2x128xf32>
    %263 = math.tanh %262 : vector<2x128xf32>
    %264 = arith.mulf %259, %263 : vector<2x128xf32>
    %265 = tpu.concatenate %68, %96, %124, %152, %180, %208, %236, %264 in 0 : vector<2x128xf32>, vector<2x128xf32>, vector<2x128xf32>, vector<2x128xf32>, vector<2x128xf32>, vector<2x128xf32>, vector<2x128xf32>, vector<2x128xf32> -> vector<16x128xf32>
    %c0_70 = arith.constant 0 : index
    %c0_71 = arith.constant 0 : index
    %266 = vector.load %arg15[%c0_70, %c0_71] : memref<128x3xf32, #tpu.memory_space<vmem>>, vector<128x3xf32>
    %cst_72 = arith.constant dense<0.000000e+00> : vector<16x3xf32>
    %267 = tpu.matmul %265, %266, %cst_72 {dimension_numbers = #tpu.dot_dimension_numbers<[1], [0], [0], [1], [0, 0, 1, 1], [], []>} : vector<16x128xf32>, vector<128x3xf32>, vector<16x3xf32> -> vector<16x3xf32>
    %c0_73 = arith.constant 0 : index
    %c0_74 = arith.constant 0 : index
    %268 = vector.load %arg16[%c0_73, %c0_74] : memref<1x3xf32, #tpu.memory_space<vmem>>, vector<1x3xf32>
    %269 = vector.broadcast %268 : vector<1x3xf32> to vector<16x3xf32>
    %270 = arith.addf %267, %269 : vector<16x3xf32>
    %c0_75 = arith.constant 0 : index
    %c0_76 = arith.constant 0 : index
    %271 = vector.load %arg17[%c0_75, %c0_76] : memref<16x3xf32, #tpu.memory_space<vmem>>, vector<16x3xf32>
    tpu.vector_store %arg17[%c0_75, %c0_76], %270 {strides = array<i32>} : memref<16x3xf32, #tpu.memory_space<vmem>>, vector<16x3xf32>,
    return
  }
  func.func @transform_0(%arg0: i32) -> (i32, i32) {
    %c0_i32 = arith.constant 0 : i32
    %c0_i32_0 = arith.constant 0 : i32
    %c0_i32_1 = arith.constant 0 : i32
    return %c0_i32, %c0_i32_0 : i32, i32
  }
  func.func @transform_1(%arg0: i32) -> (i32, i32) {
    %c0_i32 = arith.constant 0 : i32
    %c0_i32_0 = arith.constant 0 : i32
    %c0_i32_1 = arith.constant 0 : i32
    return %c0_i32, %c0_i32_0 : i32, i32
  }
  func.func @transform_2(%arg0: i32) -> (i32, i32) {
    %c0_i32 = arith.constant 0 : i32
    %c0_i32_0 = arith.constant 0 : i32
    %c0_i32_1 = arith.constant 0 : i32
    return %c0_i32, %c0_i32_0 : i32, i32
  }
  func.func @transform_3(%arg0: i32) -> (i32, i32) {
    %c0_i32 = arith.constant 0 : i32
    %c0_i32_0 = arith.constant 0 : i32
    %c0_i32_1 = arith.constant 0 : i32
    return %c0_i32, %c0_i32_0 : i32, i32
  }
  func.func @transform_4(%arg0: i32) -> (i32, i32) {
    %c0_i32 = arith.constant 0 : i32
    %c0_i32_0 = arith.constant 0 : i32
    %c0_i32_1 = arith.constant 0 : i32
    return %c0_i32, %c0_i32_0 : i32, i32
  }
  func.func @transform_5(%arg0: i32) -> (i32, i32) {
    %c0_i32 = arith.constant 0 : i32
    %c0_i32_0 = arith.constant 0 : i32
    %c0_i32_1 = arith.constant 0 : i32
    return %c0_i32, %c0_i32_0 : i32, i32
  }
  func.func @transform_6(%arg0: i32) -> (i32, i32) {
    %c0_i32 = arith.constant 0 : i32
    %c0_i32_0 = arith.constant 0 : i32
    %c0_i32_1 = arith.constant 0 : i32
    return %c0_i32, %c0_i32_0 : i32, i32
  }
  func.func @transform_7(%arg0: i32) -> (i32, i32) {
    %c0_i32 = arith.constant 0 : i32
    %c0_i32_0 = arith.constant 0 : i32
    %c0_i32_1 = arith.constant 0 : i32
    return %c0_i32, %c0_i32_0 : i32, i32
  }
  func.func @transform_8(%arg0: i32) -> (i32, i32) {
    %c0_i32 = arith.constant 0 : i32
    %c0_i32_0 = arith.constant 0 : i32
    %c0_i32_1 = arith.constant 0 : i32
    return %c0_i32, %c0_i32_0 : i32, i32
  }
  func.func @transform_9(%arg0: i32) -> (i32, i32) {
    %c0_i32 = arith.constant 0 : i32
    %c0_i32_0 = arith.constant 0 : i32
    %c0_i32_1 = arith.constant 0 : i32
    return %c0_i32, %c0_i32_0 : i32, i32
  }
  func.func @transform_10(%arg0: i32) -> (i32, i32) {
    %c0_i32 = arith.constant 0 : i32
    %c0_i32_0 = arith.constant 0 : i32
    %c0_i32_1 = arith.constant 0 : i32
    return %c0_i32, %c0_i32_0 : i32, i32
  }
  func.func @transform_11(%arg0: i32) -> (i32, i32) {
    %c0_i32 = arith.constant 0 : i32
    %c0_i32_0 = arith.constant 0 : i32
    %c0_i32_1 = arith.constant 0 : i32
    return %c0_i32, %c0_i32_0 : i32, i32
  }
  func.func @transform_12(%arg0: i32) -> (i32, i32) {
    %c0_i32 = arith.constant 0 : i32
    %c0_i32_0 = arith.constant 0 : i32
    %c0_i32_1 = arith.constant 0 : i32
    return %c0_i32, %c0_i32_0 : i32, i32
  }
  func.func @transform_13(%arg0: i32) -> (i32, i32) {
    %c0_i32 = arith.constant 0 : i32
    %c0_i32_0 = arith.constant 0 : i32
    %c0_i32_1 = arith.constant 0 : i32
    return %c0_i32, %c0_i32_0 : i32, i32
  }
  func.func @transform_14(%arg0: i32) -> (i32, i32) {
    %c0_i32 = arith.constant 0 : i32
    %c0_i32_0 = arith.constant 0 : i32
    %c0_i32_1 = arith.constant 0 : i32
    return %c0_i32, %c0_i32_0 : i32, i32
  }
  func.func @transform_15(%arg0: i32) -> (i32, i32) {
    %c0_i32 = arith.constant 0 : i32
    %c0_i32_0 = arith.constant 0 : i32
    %c0_i32_1 = arith.constant 0 : i32
    return %c0_i32, %c0_i32_0 : i32, i32
  }
  func.func @transform_16(%arg0: i32) -> (i32, i32) {
    %c0_i32 = arith.constant 0 : i32
    %c0_i32_0 = arith.constant 0 : i32
    %c0_i32_1 = arith.constant 0 : i32
    return %c0_i32, %c0_i32_0 : i32, i32
  }
}

</mosaic_0001>

<llo_original>
// kernel: conv_recurrent_forward.2
$region0: #{conv_recurrent_forward.2}
  #allocation0 [shape = 'u32[]', space=smem, size = 0x4, offset = 0x4, fixed_abs, tag = 'smem constant byte address 0x4 - core index']
  #allocation1 [shape = 'u32[144,128]{1,0:T(1,128)}', space=vmem, size = 0x12000, scoped, tag = 'internal scratch']
  %s0 = inlined_call_operand.vmem [shape: f32[36,1024], index: 0, kind: input, shape index: {}]
  %s1 = inlined_call_operand.vmem [shape: f32[2,36], index: 1, kind: input, shape index: {}]
  %s2 = inlined_call_operand.vmem [shape: f32[2,1], index: 2, kind: input, shape index: {}]
  %s3 = inlined_call_operand.vmem [shape: f32[2,1024], index: 3, kind: output, shape index: {}]
  %s4 = sld [smem:[#allocation0]]
  $region22: #{conv_recurrent_forward.2} parent=0
    _
  %s6 = ssub.s32 1, %s4
  %s7 = scalar_select 0, %s6, %s4
  // Predicated region
  $region2: #{conv_recurrent_forward.2} parent=0 // pred_check
    _
  $region3: #{conv_recurrent_forward.2} parent=0 // pred_check_branch
    %9 = sbr.rel (0) target = $region5
  $region4: #{conv_recurrent_forward.2} parent=0 // pred_region
    _
  $region5: #{conv_recurrent_forward.2} parent=0 // pred_fallthru
    _
  // Predicated region
  $region6: #{conv_recurrent_forward.2} parent=0 // pred_check
    _
  $region7: #{conv_recurrent_forward.2} parent=0 // pred_check_branch
    %11 = sbr.rel (0) target = $region9
  $region8: #{conv_recurrent_forward.2} parent=0 // pred_region
    _
  $region9: #{conv_recurrent_forward.2} parent=0 // pred_fallthru
    _
  // Predicated region
  $region10: #{conv_recurrent_forward.2} parent=0 // pred_check
    _
  $region11: #{conv_recurrent_forward.2} parent=0 // pred_check_branch
    %13 = sbr.rel (0) target = $region13
  $region12: #{conv_recurrent_forward.2} parent=0 // pred_region
    _
  $region13: #{conv_recurrent_forward.2} parent=0 // pred_fallthru
    _
  %v14 = vld [vmem:[%s1] sm:$0x3]
  %v15 = vld [vmem:[%s0] sm:$0xff]
  %v16 = vld [vmem:[%s0 + $0x8] sm:$0xff]
  %v17 = vld [vmem:[%s0 + $0x10] sm:$0xff]
  %v18 = vld [vmem:[%s0 + $0x18] sm:$0xff]
  %v19 = vld [vmem:[%s0 + $0x20] sm:$0xff]
  %v20 = vld [vmem:[%s0 + $0x28] sm:$0xff]
  %v21 = vld [vmem:[%s0 + $0x30] sm:$0xff]
  %v22 = vld [vmem:[%s0 + $0x38] sm:$0xff]
  %v23 = vld [vmem:[%s0 + $0x40] sm:$0xff]
  %v24 = vld [vmem:[%s0 + $0x48] sm:$0xff]
  %v25 = vld [vmem:[%s0 + $0x50] sm:$0xff]
  %v26 = vld [vmem:[%s0 + $0x58] sm:$0xff]
  %v27 = vld [vmem:[%s0 + $0x60] sm:$0xff]
  %v28 = vld [vmem:[%s0 + $0x68] sm:$0xff]
  %v29 = vld [vmem:[%s0 + $0x70] sm:$0xff]
  %v30 = vld [vmem:[%s0 + $0x78] sm:$0xff]
  %v31 = vld [vmem:[%s0 + $0x80] sm:$0xff]
  %v32 = vld [vmem:[%s0 + $0x88] sm:$0xff]
  %v33 = vld [vmem:[%s0 + $0x90] sm:$0xff]
  %v34 = vld [vmem:[%s0 + $0x98] sm:$0xff]
  %v35 = vld [vmem:[%s0 + $0xa0] sm:$0xff]
  %v36 = vld [vmem:[%s0 + $0xa8] sm:$0xff]
  %v37 = vld [vmem:[%s0 + $0xb0] sm:$0xff]
  %v38 = vld [vmem:[%s0 + $0xb8] sm:$0xff]
  %v39 = vld [vmem:[%s0 + $0xc0] sm:$0xff]
  %v40 = vld [vmem:[%s0 + $0xc8] sm:$0xff]
  %v41 = vld [vmem:[%s0 + $0xd0] sm:$0xff]
  %v42 = vld [vmem:[%s0 + $0xd8] sm:$0xff]
  %v43 = vld [vmem:[%s0 + $0xe0] sm:$0xff]
  %v44 = vld [vmem:[%s0 + $0xe8] sm:$0xff]
  %v45 = vld [vmem:[%s0 + $0xf0] sm:$0xff]
  %v46 = vld [vmem:[%s0 + $0xf8] sm:$0xff]
  %v47 = vld [vmem:[%s0 + $0x100] sm:$0xf]
  %v48 = vld [vmem:[%s0 + $0x108] sm:$0xf]
  %v49 = vld [vmem:[%s0 + $0x110] sm:$0xf]
  %v50 = vld [vmem:[%s0 + $0x118] sm:$0xf]
  %v51 = vld [vmem:[%s0 + $0x120] sm:$0xf]
  %v52 = vld [vmem:[%s0 + $0x128] sm:$0xf]
  %v53 = vld [vmem:[%s0 + $0x130] sm:$0xf]
  %v54 = vld [vmem:[%s0 + $0x138] sm:$0xf]
  %v55 = vld [vmem:[%s2] sm:$0x3]
  %57 = vset.pattern.permute.xlu0 0
  %58 = vperm.xlu0 %57, %v55
  %v59 = vpop.permute.xlu0 %58
  %vm61 = vcmask 293888
  %v63 = vsel %vm61, %v14, 0
  %vm65 = vcmask 1043456
  %v67 = vsel %vm65, %v47, 0
  %v70 = vsel %vm65, %v48, 0
  %v73 = vsel %vm65, %v49, 0
  %v76 = vsel %vm65, %v50, 0
  %v79 = vsel %vm65, %v51, 0
  %v82 = vsel %vm65, %v52, 0
  %v85 = vsel %vm65, %v53, 0
  %v88 = vsel %vm65, %v54, 0
  %90 = vmatprep.subr.mxu0 %v16
  %91 = vmatpush1.msra.mxu0 %v15
  %92 = vmatprep.subr.mxu0 %v24
  %93 = vmatpush1.msra.mxu0 %v23
  %94 = vmatprep.subr.mxu0 %v32
  %95 = vmatpush1.msra.mxu0 %v31
  %96 = vmatprep.subr.mxu0 %v40
  %97 = vmatpush1.msra.mxu0 %v39
  %98 = vmatprep.subr.mxu0 %v70
  %99 = vmatpush1.msra.mxu0 %v67
  %100 = vmatprep.subr.mxu0 0.0
  %101 = vmatpush1.msra.mxu0 0.0
  %102 = vmatprep.subr.mxu0 0.0
  %103 = vmatpush1.msra.mxu0 0.0
  %104 = vmatprep.subr.mxu0 0.0
  %105 = vmatpush1.msra.mxu0 0.0
  %106 = vmatprep.subr.mxu0 0.0
  %107 = vmatpush1.msra.mxu0 0.0
  %108 = vmatprep.subr.mxu0 0.0
  %109 = vmatpush1.msra.mxu0 0.0
  %110 = vmatprep.subr.mxu0 0.0
  %111 = vmatpush1.msra.mxu0 0.0
  %112 = vmatprep.subr.mxu0 0.0
  %113 = vmatpush1.msra.mxu0 0.0
  %114 = vmatprep.subr.mxu0 0.0
  %115 = vmatpush1.msra.mxu0 0.0
  %116 = vmatprep.subr.mxu0 0.0
  %117 = vmatpush1.msra.mxu0 0.0
  %118 = vmatprep.subr.mxu0 0.0
  %119 = vmatpush1.msra.mxu0 0.0
  %120 = vmatprep.subr.mxu0 0.0
  %121 = vmatpush1.msra.mxu0 0.0
  %122 = vmatprep.subr.mxu0 0.0
  %123 = vmatpush1.msra.mxu0 0.0
  %124 = vmatprep.subr.mxu0 0.0
  %125 = vmatpush1.msra.mxu0 0.0
  %126 = vmatprep.subr.mxu0 0.0
  %127 = vmatpush1.msra.mxu0 0.0
  %128 = vmatprep.subr.mxu0 0.0
  %129 = vmatpush1.msra.mxu0 0.0
  %130 = vmatprep.subr.mxu0 0.0
  %131 = vmatpush1.msra.mxu0 0.0
  %132 = vmatprep.subr.mxu0 0.0
  %133 = vmatpush1.msra.mxu0 0.0
  %134 = vmatprep.subr.mxu0 0.0
  %135 = vmatpush1.msra.mxu0 0.0
  %136 = vmatprep.subr.mxu0 0.0
  %137 = vmatpush1.msra.mxu0 0.0
  %138 = vmatprep.subr.mxu0 0.0
  %139 = vmatpush1.msra.mxu0 0.0
  %140 = vmatprep.subr.mxu0 0.0
  %141 = vmatpush1.msra.mxu0 0.0
  %142 = vmatprep.subr.mxu0 0.0
  %143 = vmatpush1.msra.mxu0 0.0
  %144 = vmatprep.subr.mxu0 0.0
  %145 = vmatpush1.msra.mxu0 0.0
  %146 = vmatprep.subr.mxu0 0.0
  %147 = vmatpush1.msra.mxu0 0.0
  %148 = vmatprep.subr.mxu0 0.0
  %149 = vmatpush1.msra.mxu0 0.0
  %150 = vmatprep.subr.mxu0 0.0
  %151 = vmatpush1.msra.mxu0 0.0
  %152 = vmatprep.subr.mxu0 0.0
  %153 = vmatpush1.msra.mxu0 0.0
  %154 = vmatprep.mubr.f32.mxu0 0.0
  %155 = vmatmul.mubr.f32.gmra.mrb[0].mxu0 %v63
  %v156 = vpop.f32.mrb[0].mxu0
  %v157 = vadd.f32 %v59, %v156
  %v158 = vpop.f32.mrb[0].mxu0
  %v159 = vadd.f32 %v59, %v158
  %160 = vdwg.mxu0
  %161 = vmatprep.subr.mxu0 %v18
  %162 = vmatpush1.msra.mxu0 %v17
  %163 = vmatprep.subr.mxu0 %v26
  %164 = vmatpush1.msra.mxu0 %v25
  %165 = vmatprep.subr.mxu0 %v34
  %166 = vmatpush1.msra.mxu0 %v33
  %167 = vmatprep.subr.mxu0 %v42
  %168 = vmatpush1.msra.mxu0 %v41
  %169 = vmatprep.subr.mxu0 %v76
  %170 = vmatpush1.msra.mxu0 %v73
  %171 = vmatprep.subr.mxu0 0.0
  %172 = vmatpush1.msra.mxu0 0.0
  %173 = vmatprep.subr.mxu0 0.0
  %174 = vmatpush1.msra.mxu0 0.0
  %175 = vmatprep.subr.mxu0 0.0
  %176 = vmatpush1.msra.mxu0 0.0
  %177 = vmatprep.subr.mxu0 0.0
  %178 = vmatpush1.msra.mxu0 0.0
  %179 = vmatprep.subr.mxu0 0.0
  %180 = vmatpush1.msra.mxu0 0.0
  %181 = vmatprep.subr.mxu0 0.0
  %182 = vmatpush1.msra.mxu0 0.0
  %183 = vmatprep.subr.mxu0 0.0
  %184 = vmatpush1.msra.mxu0 0.0
  %185 = vmatprep.subr.mxu0 0.0
  %186 = vmatpush1.msra.mxu0 0.0
  %187 = vmatprep.subr.mxu0 0.0
  %188 = vmatpush1.msra.mxu0 0.0
  %189 = vmatprep.subr.mxu0 0.0
  %190 = vmatpush1.msra.mxu0 0.0
  %191 = vmatprep.subr.mxu0 0.0
  %192 = vmatpush1.msra.mxu0 0.0
  %193 = vmatprep.subr.mxu0 0.0
  %194 = vmatpush1.msra.mxu0 0.0
  %195 = vmatprep.subr.mxu0 0.0
  %196 = vmatpush1.msra.mxu0 0.0
  %197 = vmatprep.subr.mxu0 0.0
  %198 = vmatpush1.msra.mxu0 0.0
  %199 = vmatprep.subr.mxu0 0.0
  %200 = vmatpush1.msra.mxu0 0.0
  %201 = vmatprep.subr.mxu0 0.0
  %202 = vmatpush1.msra.mxu0 0.0
  %203 = vmatprep.subr.mxu0 0.0
  %204 = vmatpush1.msra.mxu0 0.0
  %205 = vmatprep.subr.mxu0 0.0
  %206 = vmatpush1.msra.mxu0 0.0
  %207 = vmatprep.subr.mxu0 0.0
  %208 = vmatpush1.msra.mxu0 0.0
  %209 = vmatprep.subr.mxu0 0.0
  %210 = vmatpush1.msra.mxu0 0.0
  %211 = vmatprep.subr.mxu0 0.0
  %212 = vmatpush1.msra.mxu0 0.0
  %213 = vmatprep.subr.mxu0 0.0
  %214 = vmatpush1.msra.mxu0 0.0
  %215 = vmatprep.subr.mxu0 0.0
  %216 = vmatpush1.msra.mxu0 0.0
  %217 = vmatprep.subr.mxu0 0.0
  %218 = vmatpush1.msra.mxu0 0.0
  %219 = vmatprep.subr.mxu0 0.0
  %220 = vmatpush1.msra.mxu0 0.0
  %221 = vmatprep.subr.mxu0 0.0
  %222 = vmatpush1.msra.mxu0 0.0
  %223 = vmatprep.subr.mxu0 0.0
  %224 = vmatpush1.msra.mxu0 0.0
  %225 = vmatprep.mubr.f32.mxu0 0.0
  %226 = vmatmul.mubr.f32.gmra.mrb[0].mxu0 %v63
  %v227 = vpop.f32.mrb[0].mxu0
  %v228 = vadd.f32 %v59, %v227
  %v229 = vpop.f32.mrb[0].mxu0
  %v230 = vadd.f32 %v59, %v229
  %231 = vdwg.mxu0
  %232 = vmatprep.subr.mxu0 %v20
  %233 = vmatpush1.msra.mxu0 %v19
  %234 = vmatprep.subr.mxu0 %v28
  %235 = vmatpush1.msra.mxu0 %v27
  %236 = vmatprep.subr.mxu0 %v36
  %237 = vmatpush1.msra.mxu0 %v35
  %238 = vmatprep.subr.mxu0 %v44
  %239 = vmatpush1.msra.mxu0 %v43
  %240 = vmatprep.subr.mxu0 %v82
  %241 = vmatpush1.msra.mxu0 %v79
  %242 = vmatprep.subr.mxu0 0.0
  %243 = vmatpush1.msra.mxu0 0.0
  %244 = vmatprep.subr.mxu0 0.0
  %245 = vmatpush1.msra.mxu0 0.0
  %246 = vmatprep.subr.mxu0 0.0
  %247 = vmatpush1.msra.mxu0 0.0
  %248 = vmatprep.subr.mxu0 0.0
  %249 = vmatpush1.msra.mxu0 0.0
  %250 = vmatprep.subr.mxu0 0.0
  %251 = vmatpush1.msra.mxu0 0.0
  %252 = vmatprep.subr.mxu0 0.0
  %253 = vmatpush1.msra.mxu0 0.0
  %254 = vmatprep.subr.mxu0 0.0
  %255 = vmatpush1.msra.mxu0 0.0
  %256 = vmatprep.subr.mxu0 0.0
  %257 = vmatpush1.msra.mxu0 0.0
  %258 = vmatprep.subr.mxu0 0.0
  %259 = vmatpush1.msra.mxu0 0.0
  %260 = vmatprep.subr.mxu0 0.0
  %261 = vmatpush1.msra.mxu0 0.0
  %262 = vmatprep.subr.mxu0 0.0
  %263 = vmatpush1.msra.mxu0 0.0
  %264 = vmatprep.subr.mxu0 0.0
  %265 = vmatpush1.msra.mxu0 0.0
  %266 = vmatprep.subr.mxu0 0.0
  %267 = vmatpush1.msra.mxu0 0.0
  %268 = vmatprep.subr.mxu0 0.0
  %269 = vmatpush1.msra.mxu0 0.0
  %270 = vmatprep.subr.mxu0 0.0
  %271 = vmatpush1.msra.mxu0 0.0
  %272 = vmatprep.subr.mxu0 0.0
  %273 = vmatpush1.msra.mxu0 0.0
  %274 = vmatprep.subr.mxu0 0.0
  %275 = vmatpush1.msra.mxu0 0.0
  %276 = vmatprep.subr.mxu0 0.0
  %277 = vmatpush1.msra.mxu0 0.0
  %278 = vmatprep.subr.mxu0 0.0
  %279 = vmatpush1.msra.mxu0 0.0
  %280 = vmatprep.subr.mxu0 0.0
  %281 = vmatpush1.msra.mxu0 0.0
  %282 = vmatprep.subr.mxu0 0.0
  %283 = vmatpush1.msra.mxu0 0.0
  %284 = vmatprep.subr.mxu0 0.0
  %285 = vmatpush1.msra.mxu0 0.0
  %286 = vmatprep.subr.mxu0 0.0
  %287 = vmatpush1.msra.mxu0 0.0
  %288 = vmatprep.subr.mxu0 0.0
  %289 = vmatpush1.msra.mxu0 0.0
  %290 = vmatprep.subr.mxu0 0.0
  %291 = vmatpush1.msra.mxu0 0.0
  %292 = vmatprep.subr.mxu0 0.0
  %293 = vmatpush1.msra.mxu0 0.0
  %294 = vmatprep.subr.mxu0 0.0
  %295 = vmatpush1.msra.mxu0 0.0
  %296 = vmatprep.mubr.f32.mxu0 0.0
  %297 = vmatmul.mubr.f32.gmra.mrb[0].mxu0 %v63
  %v298 = vpop.f32.mrb[0].mxu0
  %v299 = vadd.f32 %v59, %v298
  %v300 = vpop.f32.mrb[0].mxu0
  %v301 = vadd.f32 %v59, %v300
  %302 = vdwg.mxu0
  %303 = vmatprep.subr.mxu0 %v22
  %304 = vmatpush1.msra.mxu0 %v21
  %305 = vmatprep.subr.mxu0 %v30
  %306 = vmatpush1.msra.mxu0 %v29
  %307 = vmatprep.subr.mxu0 %v38
  %308 = vmatpush1.msra.mxu0 %v37
  %309 = vmatprep.subr.mxu0 %v46
  %310 = vmatpush1.msra.mxu0 %v45
  %311 = vmatprep.subr.mxu0 %v88
  %312 = vmatpush1.msra.mxu0 %v85
  %313 = vmatprep.subr.mxu0 0.0
  %314 = vmatpush1.msra.mxu0 0.0
  %315 = vmatprep.subr.mxu0 0.0
  %316 = vmatpush1.msra.mxu0 0.0
  %317 = vmatprep.subr.mxu0 0.0
  %318 = vmatpush1.msra.mxu0 0.0
  %319 = vmatprep.subr.mxu0 0.0
  %320 = vmatpush1.msra.mxu0 0.0
  %321 = vmatprep.subr.mxu0 0.0
  %322 = vmatpush1.msra.mxu0 0.0
  %323 = vmatprep.subr.mxu0 0.0
  %324 = vmatpush1.msra.mxu0 0.0
  %325 = vmatprep.subr.mxu0 0.0
  %326 = vmatpush1.msra.mxu0 0.0
  %327 = vmatprep.subr.mxu0 0.0
  %328 = vmatpush1.msra.mxu0 0.0
  %329 = vmatprep.subr.mxu0 0.0
  %330 = vmatpush1.msra.mxu0 0.0
  %331 = vmatprep.subr.mxu0 0.0
  %332 = vmatpush1.msra.mxu0 0.0
  %333 = vmatprep.subr.mxu0 0.0
  %334 = vmatpush1.msra.mxu0 0.0
  %335 = vmatprep.subr.mxu0 0.0
  %336 = vmatpush1.msra.mxu0 0.0
  %337 = vmatprep.subr.mxu0 0.0
  %338 = vmatpush1.msra.mxu0 0.0
  %339 = vmatprep.subr.mxu0 0.0
  %340 = vmatpush1.msra.mxu0 0.0
  %341 = vmatprep.subr.mxu0 0.0
  %342 = vmatpush1.msra.mxu0 0.0
  %343 = vmatprep.subr.mxu0 0.0
  %344 = vmatpush1.msra.mxu0 0.0
  %345 = vmatprep.subr.mxu0 0.0
  %346 = vmatpush1.msra.mxu0 0.0
  %347 = vmatprep.subr.mxu0 0.0
  %348 = vmatpush1.msra.mxu0 0.0
  %349 = vmatprep.subr.mxu0 0.0
  %350 = vmatpush1.msra.mxu0 0.0
  %351 = vmatprep.subr.mxu0 0.0
  %352 = vmatpush1.msra.mxu0 0.0
  %353 = vmatprep.subr.mxu0 0.0
  %354 = vmatpush1.msra.mxu0 0.0
  %355 = vmatprep.subr.mxu0 0.0
  %356 = vmatpush1.msra.mxu0 0.0
  %357 = vmatprep.subr.mxu0 0.0
  %358 = vmatpush1.msra.mxu0 0.0
  %359 = vmatprep.subr.mxu0 0.0
  %360 = vmatpush1.msra.mxu0 0.0
  %361 = vmatprep.subr.mxu0 0.0
  %362 = vmatpush1.msra.mxu0 0.0
  %363 = vmatprep.subr.mxu0 0.0
  %364 = vmatpush1.msra.mxu0 0.0
  %365 = vmatprep.subr.mxu0 0.0
  %366 = vmatpush1.msra.mxu0 0.0
  %367 = vmatprep.mubr.f32.mxu0 0.0
  %368 = vmatmul.mubr.f32.gmra.mrb[0].mxu0 %v63
  %v369 = vpop.f32.mrb[0].mxu0
  %v370 = vadd.f32 %v59, %v369
  %v371 = vpop.f32.mrb[0].mxu0
  %v372 = vadd.f32 %v59, %v371
  %373 = vdwg.mxu0
  %v374 = vmax.f32 %v157, 0.0
  %v375 = vmax.f32 %v159, 0.0
  %v376 = vmax.f32 %v228, 0.0
  %v377 = vmax.f32 %v230, 0.0
  %v378 = vmax.f32 %v299, 0.0
  %v379 = vmax.f32 %v301, 0.0
  %v380 = vmax.f32 %v370, 0.0
  %v381 = vmax.f32 %v372, 0.0
  %v390 = vcombine.low %v374, %v375
  %v391 = vcombine.low %v376, %v377
  %v393 = vunpack.c.l.s4 1983009808
  %v394 = vunpack.c.0.s8 %v393
  %v395 = vlaneseq
  %v396 = vshrl.u32 %v395, 7
  %v397 = vsub.s32 %v394, %v396
  %v398 = vrot.slane %v390, %v397
  %v400 = vunpack.c.l.s4 1983009808
  %v401 = vunpack.c.0.s8 %v400
  %v402 = vlaneseq
  %v403 = vshrl.u32 %v402, 7
  %v404 = vsub.s32 %v401, %v403
  %v405 = vrot.slane %v391, %v404
  %v406 = vcombine.low %v398, %v405
  %v407 = vcombine.low %v378, %v379
  %v408 = vcombine.low %v380, %v381
  %v410 = vunpack.c.l.s4 1983009808
  %v411 = vunpack.c.0.s8 %v410
  %v412 = vlaneseq
  %v413 = vshrl.u32 %v412, 7
  %v414 = vsub.s32 %v411, %v413
  %v415 = vrot.slane %v407, %v414
  %v417 = vunpack.c.l.s4 1983009808
  %v418 = vunpack.c.0.s8 %v417
  %v419 = vlaneseq
  %v420 = vshrl.u32 %v419, 7
  %v421 = vsub.s32 %v418, %v420
  %v422 = vrot.slane %v408, %v421
  %v423 = vcombine.low %v415, %v422
  %426 = vst [vmem:[%s3] sm:$0xff] %v406
  %427 = vst [vmem:[%s3 + $0x8] sm:$0xff] %v423
  // Predicated region
  $region14: #{conv_recurrent_forward.2} parent=0 // pred_check
    _
  $region15: #{conv_recurrent_forward.2} parent=0 // pred_check_branch
    %429 = sbr.rel (0) target = $region17
  $region16: #{conv_recurrent_forward.2} parent=0 // pred_region
    _
  $region17: #{conv_recurrent_forward.2} parent=0 // pred_fallthru
    _
  // Predicated region
  $region18: #{conv_recurrent_forward.2} parent=0 // pred_check
    _
  $region19: #{conv_recurrent_forward.2} parent=0 // pred_check_branch
    %431 = sbr.rel (0) target = $region21
  $region20: #{conv_recurrent_forward.2} parent=0 // pred_region
    _
  $region21: #{conv_recurrent_forward.2} parent=0 // pred_fallthru
    _

// kernel: conv_recurrent_forward.3
$region0: #{conv_recurrent_forward.3}
  #allocation0 [shape = 'u32[]', space=smem, size = 0x4, offset = 0x4, fixed_abs, tag = 'smem constant byte address 0x4 - core index']
  #allocation1 [shape = 'u32[144,128]{1,0:T(1,128)}', space=vmem, size = 0x12000, scoped, tag = 'internal scratch']
  %s0 = inlined_call_operand.vmem [shape: f32[16,162], index: 0, kind: input, shape index: {}]
  %s1 = inlined_call_operand.vmem [shape: f32[16,3], index: 1, kind: input, shape index: {}]
  %s2 = inlined_call_operand.vmem [shape: f32[162,36], index: 2, kind: input, shape index: {}]
  %s3 = inlined_call_operand.vmem [shape: f32[1,36], index: 3, kind: input, shape index: {}]
  %s4 = inlined_call_operand.vmem [shape: f32[36,36], index: 4, kind: input, shape index: {}]
  %s5 = inlined_call_operand.vmem [shape: f32[1,36], index: 5, kind: input, shape index: {}]
  %s6 = inlined_call_operand.vmem [shape: f32[36,16], index: 6, kind: input, shape index: {}]
  %s7 = inlined_call_operand.vmem [shape: f32[1,16], index: 7, kind: input, shape index: {}]
  %s8 = inlined_call_operand.vmem [shape: f32[16,3], index: 8, kind: input, shape index: {}]
  %s9 = inlined_call_operand.vmem [shape: f32[1,3], index: 9, kind: input, shape index: {}]
  %s10 = inlined_call_operand.vmem [shape: f32[3,512], index: 10, kind: input, shape index: {}]
  %s11 = inlined_call_operand.vmem [shape: f32[3,512], index: 11, kind: input, shape index: {}]
  %s12 = inlined_call_operand.vmem [shape: f32[1,512], index: 12, kind: input, shape index: {}]
  %s13 = inlined_call_operand.vmem [shape: f32[128,512], index: 13, kind: input, shape index: {}]
  %s14 = inlined_call_operand.vmem [shape: f32[128,3], index: 14, kind: input, shape index: {}]
  %s15 = inlined_call_operand.vmem [shape: f32[1,3], index: 15, kind: input, shape index: {}]
  %s16 = inlined_call_operand.vmem [shape: f32[16,3], index: 16, kind: output, shape index: {}]
  %s17 = sld [smem:[#allocation0]]
  $region74: #{conv_recurrent_forward.3} parent=0
    _
  %s19 = ssub.s32 1, %s17
  %s20 = scalar_select 0, %s19, %s17
  // Predicated region
  $region2: #{conv_recurrent_forward.3} parent=0 // pred_check
    _
  $region3: #{conv_recurrent_forward.3} parent=0 // pred_check_branch
    %22 = sbr.rel (0) target = $region5
  $region4: #{conv_recurrent_forward.3} parent=0 // pred_region
    _
  $region5: #{conv_recurrent_forward.3} parent=0 // pred_fallthru
    _
  // Predicated region
  $region6: #{conv_recurrent_forward.3} parent=0 // pred_check
    _
  $region7: #{conv_recurrent_forward.3} parent=0 // pred_check_branch
    %24 = sbr.rel (0) target = $region9
  $region8: #{conv_recurrent_forward.3} parent=0 // pred_region
    _
  $region9: #{conv_recurrent_forward.3} parent=0 // pred_fallthru
    _
  // Predicated region
  $region10: #{conv_recurrent_forward.3} parent=0 // pred_check
    _
  $region11: #{conv_recurrent_forward.3} parent=0 // pred_check_branch
    %26 = sbr.rel (0) target = $region13
  $region12: #{conv_recurrent_forward.3} parent=0 // pred_region
    _
  $region13: #{conv_recurrent_forward.3} parent=0 // pred_fallthru
    _
  // Predicated region
  $region14: #{conv_recurrent_forward.3} parent=0 // pred_check
    _
  $region15: #{conv_recurrent_forward.3} parent=0 // pred_check_branch
    %28 = sbr.rel (0) target = $region17
  $region16: #{conv_recurrent_forward.3} parent=0 // pred_region
    _
  $region17: #{conv_recurrent_forward.3} parent=0 // pred_fallthru
    _
  // Predicated region
  $region18: #{conv_recurrent_forward.3} parent=0 // pred_check
    _
  $region19: #{conv_recurrent_forward.3} parent=0 // pred_check_branch
    %30 = sbr.rel (0) target = $region21
  $region20: #{conv_recurrent_forward.3} parent=0 // pred_region
    _
  $region21: #{conv_recurrent_forward.3} parent=0 // pred_fallthru
    _
  // Predicated region
  $region22: #{conv_recurrent_forward.3} parent=0 // pred_check
    _
  $region23: #{conv_recurrent_forward.3} parent=0 // pred_check_branch
    %32 = sbr.rel (0) target = $region25
  $region24: #{conv_recurrent_forward.3} parent=0 // pred_region
    _
  $region25: #{conv_recurrent_forward.3} parent=0 // pred_fallthru
    _
  // Predicated region
  $region26: #{conv_recurrent_forward.3} parent=0 // pred_check
    _
  $region27: #{conv_recurrent_forward.3} parent=0 // pred_check_branch
    %34 = sbr.rel (0) target = $region29
  $region28: #{conv_recurrent_forward.3} parent=0 // pred_region
    _
  $region29: #{conv_recurrent_forward.3} parent=0 // pred_fallthru
    _
  // Predicated region
  $region30: #{conv_recurrent_forward.3} parent=0 // pred_check
    _
  $region31: #{conv_recurrent_forward.3} parent=0 // pred_check_branch
    %36 = sbr.rel (0) target = $region33
  $region32: #{conv_recurrent_forward.3} parent=0 // pred_region
    _
  $region33: #{conv_recurrent_forward.3} parent=0 // pred_fallthru
    _
  // Predicated region
  $region34: #{conv_recurrent_forward.3} parent=0 // pred_check
    _
  $region35: #{conv_recurrent_forward.3} parent=0 // pred_check_branch
    %38 = sbr.rel (0) target = $region37
  $region36: #{conv_recurrent_forward.3} parent=0 // pred_region
    _
  $region37: #{conv_recurrent_forward.3} parent=0 // pred_fallthru
    _
  // Predicated region
  $region38: #{conv_recurrent_forward.3} parent=0 // pred_check
    _
  $region39: #{conv_recurrent_forward.3} parent=0 // pred_check_branch
    %40 = sbr.rel (0) target = $region41
  $region40: #{conv_recurrent_forward.3} parent=0 // pred_region
    _
  $region41: #{conv_recurrent_forward.3} parent=0 // pred_fallthru
    _
  // Predicated region
  $region42: #{conv_recurrent_forward.3} parent=0 // pred_check
    _
  $region43: #{conv_recurrent_forward.3} parent=0 // pred_check_branch
    %42 = sbr.rel (0) target = $region45
  $region44: #{conv_recurrent_forward.3} parent=0 // pred_region
    _
  $region45: #{conv_recurrent_forward.3} parent=0 // pred_fallthru
    _
  // Predicated region
  $region46: #{conv_recurrent_forward.3} parent=0 // pred_check
    _
  $region47: #{conv_recurrent_forward.3} parent=0 // pred_check_branch
    %44 = sbr.rel (0) target = $region49
  $region48: #{conv_recurrent_forward.3} parent=0 // pred_region
    _
  $region49: #{conv_recurrent_forward.3} parent=0 // pred_fallthru
    _
  // Predicated region
  $region50: #{conv_recurrent_forward.3} parent=0 // pred_check
    _
  $region51: #{conv_recurrent_forward.3} parent=0 // pred_check_branch
    %46 = sbr.rel (0) target = $region53
  $region52: #{conv_recurrent_forward.3} parent=0 // pred_region
    _
  $region53: #{conv_recurrent_forward.3} parent=0 // pred_fallthru
    _
  // Predicated region
  $region54: #{conv_recurrent_forward.3} parent=0 // pred_check
    _
  $region55: #{conv_recurrent_forward.3} parent=0 // pred_check_branch
    %48 = sbr.rel (0) target = $region57
  $region56: #{conv_recurrent_forward.3} parent=0 // pred_region
    _
  $region57: #{conv_recurrent_forward.3} parent=0 // pred_fallthru
    _
  // Predicated region
  $region58: #{conv_recurrent_forward.3} parent=0 // pred_check
    _
  $region59: #{conv_recurrent_forward.3} parent=0 // pred_check_branch
    %50 = sbr.rel (0) target = $region61
  $region60: #{conv_recurrent_forward.3} parent=0 // pred_region
    _
  $region61: #{conv_recurrent_forward.3} parent=0 // pred_fallthru
    _
  // Predicated region
  $region62: #{conv_recurrent_forward.3} parent=0 // pred_check
    _
  $region63: #{conv_recurrent_forward.3} parent=0 // pred_check_branch
    %52 = sbr.rel (0) target = $region65
  $region64: #{conv_recurrent_forward.3} parent=0 // pred_region
    _
  $region65: #{conv_recurrent_forward.3} parent=0 // pred_fallthru
    _
  %v53 = vld [vmem:[%s0] sm:$0xff]
  %v54 = vld [vmem:[%s0 + $0x8] sm:$0xff]
  %v55 = vld [vmem:[%s0 + $0x10] sm:$0xff]
  %v56 = vld [vmem:[%s0 + $0x18] sm:$0xff]
  %v57 = vld [vmem:[%s2] sm:$0xff]
  %v58 = vld [vmem:[%s2 + $0x8] sm:$0xff]
  %v59 = vld [vmem:[%s2 + $0x10] sm:$0xff]
  %v60 = vld [vmem:[%s2 + $0x18] sm:$0xff]
  %v61 = vld [vmem:[%s2 + $0x20] sm:$0xff]
  %v62 = vld [vmem:[%s2 + $0x28] sm:$0xff]
  %v63 = vld [vmem:[%s2 + $0x30] sm:$0xff]
  %v64 = vld [vmem:[%s2 + $0x38] sm:$0xff]
  %v65 = vld [vmem:[%s2 + $0x40] sm:$0xff]
  %v66 = vld [vmem:[%s2 + $0x48] sm:$0xff]
  %v67 = vld [vmem:[%s2 + $0x50] sm:$0xff]
  %v68 = vld [vmem:[%s2 + $0x58] sm:$0xff]
  %v69 = vld [vmem:[%s2 + $0x60] sm:$0xff]
  %v70 = vld [vmem:[%s2 + $0x68] sm:$0xff]
  %v71 = vld [vmem:[%s2 + $0x70] sm:$0xff]
  %v72 = vld [vmem:[%s2 + $0x78] sm:$0xff]
  %v73 = vld [vmem:[%s2 + $0x80] sm:$0xff]
  %v74 = vld [vmem:[%s2 + $0x88] sm:$0xff]
  %v75 = vld [vmem:[%s2 + $0x90] sm:$0xff]
  %v76 = vld [vmem:[%s2 + $0x98] sm:$0xff]
  %v77 = vld [vmem:[%s2 + $0xa0] sm:$0x3]
  %v78 = vld [vmem:[%s3] sm:$0x1]
  %v80 = vlaneseq
  %v81 = vshrl.u32 %v80, 7
  %v82 = vsub.s32 0, %v81
  %v83 = vrot.slane %v78, %v82
  %vm85 = vcmask 277504
  %v87 = vsel %vm85, %v54, 0
  %v90 = vsel %vm85, %v56, 0
  %vm92 = vcmask 1041408
  %v94 = vsel %vm92, %v77, 0
  %96 = vmatprep.subr.mxu0 0.0
  %97 = vmatpush1.msra.mxu0 %v57
  %98 = vmatprep.subr.mxu0 0.0
  %99 = vmatpush1.msra.mxu0 %v58
  %100 = vmatprep.subr.mxu0 0.0
  %101 = vmatpush1.msra.mxu0 %v59
  %102 = vmatprep.subr.mxu0 0.0
  %103 = vmatpush1.msra.mxu0 %v60
  %104 = vmatprep.subr.mxu0 0.0
  %105 = vmatpush1.msra.mxu0 %v61
  %106 = vmatprep.subr.mxu0 0.0
  %107 = vmatpush1.msra.mxu0 %v62
  %108 = vmatprep.subr.mxu0 0.0
  %109 = vmatpush1.msra.mxu0 %v63
  %110 = vmatprep.subr.mxu0 0.0
  %111 = vmatpush1.msra.mxu0 %v64
  %112 = vmatprep.subr.mxu0 0.0
  %113 = vmatpush1.msra.mxu0 %v65
  %114 = vmatprep.subr.mxu0 0.0
  %115 = vmatpush1.msra.mxu0 %v66
  %116 = vmatprep.subr.mxu0 0.0
  %117 = vmatpush1.msra.mxu0 %v67
  %118 = vmatprep.subr.mxu0 0.0
  %119 = vmatpush1.msra.mxu0 %v68
  %120 = vmatprep.subr.mxu0 0.0
  %121 = vmatpush1.msra.mxu0 %v69
  %122 = vmatprep.subr.mxu0 0.0
  %123 = vmatpush1.msra.mxu0 %v70
  %124 = vmatprep.subr.mxu0 0.0
  %125 = vmatpush1.msra.mxu0 %v71
  %126 = vmatprep.subr.mxu0 0.0
  %127 = vmatpush1.msra.mxu0 %v72
  %128 = vmatprep.subr.mxu0 0.0
  %129 = vmatpush1.msra.mxu0 %v73
  %130 = vmatprep.subr.mxu0 0.0
  %131 = vmatpush1.msra.mxu0 %v74
  %132 = vmatprep.subr.mxu0 0.0
  %133 = vmatpush1.msra.mxu0 %v75
  %134 = vmatprep.subr.mxu0 0.0
  %135 = vmatpush1.msra.mxu0 %v76
  %136 = vmatprep.subr.mxu0 0.0
  %137 = vmatpush1.msra.mxu0 %v94
  %138 = vmatprep.subr.mxu0 0.0
  %139 = vmatpush1.msra.mxu0 0.0
  %140 = vmatprep.subr.mxu0 0.0
  %141 = vmatpush1.msra.mxu0 0.0
  %142 = vmatprep.subr.mxu0 0.0
  %143 = vmatpush1.msra.mxu0 0.0
  %144 = vmatprep.subr.mxu0 0.0
  %145 = vmatpush1.msra.mxu0 0.0
  %146 = vmatprep.subr.mxu0 0.0
  %147 = vmatpush1.msra.mxu0 0.0
  %148 = vmatprep.subr.mxu0 0.0
  %149 = vmatpush1.msra.mxu0 0.0
  %150 = vmatprep.subr.mxu0 0.0
  %151 = vmatpush1.msra.mxu0 0.0
  %152 = vmatprep.subr.mxu0 0.0
  %153 = vmatpush1.msra.mxu0 0.0
  %154 = vmatprep.subr.mxu0 0.0
  %155 = vmatpush1.msra.mxu0 0.0
  %156 = vmatprep.subr.mxu0 0.0
  %157 = vmatpush1.msra.mxu0 0.0
  %158 = vmatprep.subr.mxu0 0.0
  %159 = vmatpush1.msra.mxu0 0.0
  %160 = vmatprep.mubr.f32.mxu0 %v87
  %161 = vmatmul.mubr.f32.gmra.mrb[0].mxu0 %v53
  %v162 = vpop.f32.mrb[0].mxu0
  %v163 = vadd.f32 %v83, %v162
  %v164 = vpop.f32.mrb[0].mxu0
  %165 = vmatprep.mubr.f32.mxu0 %v90
  %166 = vmatmul.mubr.f32.gmra.mrb[0].mxu0 %v55
  %v167 = vpop.f32.mrb[0].mxu0
  %v168 = vadd.f32 %v83, %v167
  %v169 = vpop.f32.mrb[0].mxu0
  %170 = vdwg.mxu0
  %v171 = vmax.f32 %v163, 0.0
  %v172 = vmax.f32 %v168, 0.0
  %v173 = vld [vmem:[%s4] sm:$0xff]
  %v174 = vld [vmem:[%s4 + $0x8] sm:$0xff]
  %v175 = vld [vmem:[%s4 + $0x10] sm:$0xff]
  %v176 = vld [vmem:[%s4 + $0x18] sm:$0xff]
  %v177 = vld [vmem:[%s4 + $0x20] sm:$0xf]
  %v178 = vld [vmem:[%s5] sm:$0x1]
  %v180 = vlaneseq
  %v181 = vshrl.u32 %v180, 7
  %v182 = vsub.s32 0, %v181
  %v183 = vrot.slane %v178, %v182
  %vm185 = vcmask 293888
  %v187 = vsel %vm185, %v171, 0
  %v190 = vsel %vm185, %v172, 0
  %vm192 = vcmask 1043456
  %v194 = vsel %vm192, %v177, 0
  %196 = vmatprep.subr.mxu0 0.0
  %197 = vmatpush1.msra.mxu0 %v173
  %198 = vmatprep.subr.mxu0 0.0
  %199 = vmatpush1.msra.mxu0 %v174
  %200 = vmatprep.subr.mxu0 0.0
  %201 = vmatpush1.msra.mxu0 %v175
  %202 = vmatprep.subr.mxu0 0.0
  %203 = vmatpush1.msra.mxu0 %v176
  %204 = vmatprep.subr.mxu0 0.0
  %205 = vmatpush1.msra.mxu0 %v194
  %206 = vmatprep.subr.mxu0 0.0
  %207 = vmatpush1.msra.mxu0 0.0
  %208 = vmatprep.subr.mxu0 0.0
  %209 = vmatpush1.msra.mxu0 0.0
  %210 = vmatprep.subr.mxu0 0.0
  %211 = vmatpush1.msra.mxu0 0.0
  %212 = vmatprep.subr.mxu0 0.0
  %213 = vmatpush1.msra.mxu0 0.0
  %214 = vmatprep.subr.mxu0 0.0
  %215 = vmatpush1.msra.mxu0 0.0
  %216 = vmatprep.subr.mxu0 0.0
  %217 = vmatpush1.msra.mxu0 0.0
  %218 = vmatprep.subr.mxu0 0.0
  %219 = vmatpush1.msra.mxu0 0.0
  %220 = vmatprep.subr.mxu0 0.0
  %221 = vmatpush1.msra.mxu0 0.0
  %222 = vmatprep.subr.mxu0 0.0
  %223 = vmatpush1.msra.mxu0 0.0
  %224 = vmatprep.subr.mxu0 0.0
  %225 = vmatpush1.msra.mxu0 0.0
  %226 = vmatprep.subr.mxu0 0.0
  %227 = vmatpush1.msra.mxu0 0.0
  %228 = vmatprep.subr.mxu0 0.0
  %229 = vmatpush1.msra.mxu0 0.0
  %230 = vmatprep.subr.mxu0 0.0
  %231 = vmatpush1.msra.mxu0 0.0
  %232 = vmatprep.subr.mxu0 0.0
  %233 = vmatpush1.msra.mxu0 0.0
  %234 = vmatprep.subr.mxu0 0.0
  %235 = vmatpush1.msra.mxu0 0.0
  %236 = vmatprep.subr.mxu0 0.0
  %237 = vmatpush1.msra.mxu0 0.0
  %238 = vmatprep.subr.mxu0 0.0
  %239 = vmatpush1.msra.mxu0 0.0
  %240 = vmatprep.subr.mxu0 0.0
  %241 = vmatpush1.msra.mxu0 0.0
  %242 = vmatprep.subr.mxu0 0.0
  %243 = vmatpush1.msra.mxu0 0.0
  %244 = vmatprep.subr.mxu0 0.0
  %245 = vmatpush1.msra.mxu0 0.0
  %246 = vmatprep.subr.mxu0 0.0
  %247 = vmatpush1.msra.mxu0 0.0
  %248 = vmatprep.subr.mxu0 0.0
  %249 = vmatpush1.msra.mxu0 0.0
  %250 = vmatprep.subr.mxu0 0.0
  %251 = vmatpush1.msra.mxu0 0.0
  %252 = vmatprep.subr.mxu0 0.0
  %253 = vmatpush1.msra.mxu0 0.0
  %254 = vmatprep.subr.mxu0 0.0
  %255 = vmatpush1.msra.mxu0 0.0
  %256 = vmatprep.subr.mxu0 0.0
  %257 = vmatpush1.msra.mxu0 0.0
  %258 = vmatprep.subr.mxu0 0.0
  %259 = vmatpush1.msra.mxu0 0.0
  %260 = vmatprep.mubr.f32.mxu0 0.0
  %261 = vmatmul.mubr.f32.gmra.mrb[0].mxu0 %v187
  %v262 = vpop.f32.mrb[0].mxu0
  %v263 = vadd.f32 %v183, %v262
  %v264 = vpop.f32.mrb[0].mxu0
  %265 = vmatprep.mubr.f32.mxu0 0.0
  %266 = vmatmul.mubr.f32.gmra.mrb[0].mxu0 %v190
  %v267 = vpop.f32.mrb[0].mxu0
  %v268 = vadd.f32 %v183, %v267
  %v269 = vpop.f32.mrb[0].mxu0
  %270 = vdwg.mxu0
  %v271 = vmax.f32 %v263, 0.0
  %v272 = vmax.f32 %v268, 0.0
  %v273 = vld [vmem:[%s6] sm:$0xff]
  %v274 = vld [vmem:[%s6 + $0x8] sm:$0xff]
  %v275 = vld [vmem:[%s6 + $0x10] sm:$0xff]
  %v276 = vld [vmem:[%s6 + $0x18] sm:$0xff]
  %v277 = vld [vmem:[%s6 + $0x20] sm:$0xf]
  %v278 = vld [vmem:[%s7] sm:$0x1]
  %v280 = vlaneseq
  %v281 = vshrl.u32 %v280, 7
  %v282 = vsub.s32 0, %v281
  %v283 = vrot.slane %v278, %v282
  %v286 = vsel %vm185, %v271, 0
  %v289 = vsel %vm185, %v272, 0
  %v292 = vsel %vm192, %v277, 0
  %294 = vmatprep.subr.mxu0 0.0
  %295 = vmatpush1.msra.mxu0 %v273
  %296 = vmatprep.subr.mxu0 0.0
  %297 = vmatpush1.msra.mxu0 %v274
  %298 = vmatprep.subr.mxu0 0.0
  %299 = vmatpush1.msra.mxu0 %v275
  %300 = vmatprep.subr.mxu0 0.0
  %301 = vmatpush1.msra.mxu0 %v276
  %302 = vmatprep.subr.mxu0 0.0
  %303 = vmatpush1.msra.mxu0 %v292
  %304 = vmatprep.subr.mxu0 0.0
  %305 = vmatpush1.msra.mxu0 0.0
  %306 = vmatprep.subr.mxu0 0.0
  %307 = vmatpush1.msra.mxu0 0.0
  %308 = vmatprep.subr.mxu0 0.0
  %309 = vmatpush1.msra.mxu0 0.0
  %310 = vmatprep.subr.mxu0 0.0
  %311 = vmatpush1.msra.mxu0 0.0
  %312 = vmatprep.subr.mxu0 0.0
  %313 = vmatpush1.msra.mxu0 0.0
  %314 = vmatprep.subr.mxu0 0.0
  %315 = vmatpush1.msra.mxu0 0.0
  %316 = vmatprep.subr.mxu0 0.0
  %317 = vmatpush1.msra.mxu0 0.0
  %318 = vmatprep.subr.mxu0 0.0
  %319 = vmatpush1.msra.mxu0 0.0
  %320 = vmatprep.subr.mxu0 0.0
  %321 = vmatpush1.msra.mxu0 0.0
  %322 = vmatprep.subr.mxu0 0.0
  %323 = vmatpush1.msra.mxu0 0.0
  %324 = vmatprep.subr.mxu0 0.0
  %325 = vmatpush1.msra.mxu0 0.0
  %326 = vmatprep.subr.mxu0 0.0
  %327 = vmatpush1.msra.mxu0 0.0
  %328 = vmatprep.subr.mxu0 0.0
  %329 = vmatpush1.msra.mxu0 0.0
  %330 = vmatprep.subr.mxu0 0.0
  %331 = vmatpush1.msra.mxu0 0.0
  %332 = vmatprep.subr.mxu0 0.0
  %333 = vmatpush1.msra.mxu0 0.0
  %334 = vmatprep.subr.mxu0 0.0
  %335 = vmatpush1.msra.mxu0 0.0
  %336 = vmatprep.subr.mxu0 0.0
  %337 = vmatpush1.msra.mxu0 0.0
  %338 = vmatprep.subr.mxu0 0.0
  %339 = vmatpush1.msra.mxu0 0.0
  %340 = vmatprep.subr.mxu0 0.0
  %341 = vmatpush1.msra.mxu0 0.0
  %342 = vmatprep.subr.mxu0 0.0
  %343 = vmatpush1.msra.mxu0 0.0
  %344 = vmatprep.subr.mxu0 0.0
  %345 = vmatpush1.msra.mxu0 0.0
  %346 = vmatprep.subr.mxu0 0.0
  %347 = vmatpush1.msra.mxu0 0.0
  %348 = vmatprep.subr.mxu0 0.0
  %349 = vmatpush1.msra.mxu0 0.0
  %350 = vmatprep.subr.mxu0 0.0
  %351 = vmatpush1.msra.mxu0 0.0
  %352 = vmatprep.subr.mxu0 0.0
  %353 = vmatpush1.msra.mxu0 0.0
  %354 = vmatprep.subr.mxu0 0.0
  %355 = vmatpush1.msra.mxu0 0.0
  %356 = vmatprep.subr.mxu0 0.0
  %357 = vmatpush1.msra.mxu0 0.0
  %358 = vmatprep.mubr.f32.mxu0 0.0
  %359 = vmatmul.mubr.f32.gmra.mrb[0].mxu0 %v286
  %v360 = vpop.f32.mrb[0].mxu0
  %v361 = vadd.f32 %v283, %v360
  %v362 = vpop.f32.mrb[0].mxu0
  %363 = vmatprep.mubr.f32.mxu0 0.0
  %364 = vmatmul.mubr.f32.gmra.mrb[0].mxu0 %v289
  %v365 = vpop.f32.mrb[0].mxu0
  %v366 = vadd.f32 %v283, %v365
  %v367 = vpop.f32.mrb[0].mxu0
  %368 = vdwg.mxu0
  %v369 = vmax.f32 %v361, 0.0
  %v370 = vmax.f32 %v366, 0.0
  %v371 = vld [vmem:[%s8] sm:$0xff]
  %v372 = vld [vmem:[%s8 + $0x8] sm:$0xff]
  %v373 = vld [vmem:[%s9] sm:$0x1]
  %v375 = vlaneseq
  %v376 = vshrl.u32 %v375, 7
  %v377 = vsub.s32 0, %v376
  %v378 = vrot.slane %v373, %v377
  %vm380 = vcmask 130048
  %v382 = vsel %vm380, %v369, 0
  %v385 = vsel %vm380, %v370, 0
  %387 = vmatprep.subr.mxu0 0.0
  %388 = vmatpush1.msra.mxu0 %v371
  %389 = vmatprep.subr.mxu0 0.0
  %390 = vmatpush1.msra.mxu0 %v372
  %391 = vmatprep.subr.mxu0 0.0
  %392 = vmatpush1.msra.mxu0 0.0
  %393 = vmatprep.subr.mxu0 0.0
  %394 = vmatpush1.msra.mxu0 0.0
  %395 = vmatprep.subr.mxu0 0.0
  %396 = vmatpush1.msra.mxu0 0.0
  %397 = vmatprep.subr.mxu0 0.0
  %398 = vmatpush1.msra.mxu0 0.0
  %399 = vmatprep.subr.mxu0 0.0
  %400 = vmatpush1.msra.mxu0 0.0
  %401 = vmatprep.subr.mxu0 0.0
  %402 = vmatpush1.msra.mxu0 0.0
  %403 = vmatprep.subr.mxu0 0.0
  %404 = vmatpush1.msra.mxu0 0.0
  %405 = vmatprep.subr.mxu0 0.0
  %406 = vmatpush1.msra.mxu0 0.0
  %407 = vmatprep.subr.mxu0 0.0
  %408 = vmatpush1.msra.mxu0 0.0
  %409 = vmatprep.subr.mxu0 0.0
  %410 = vmatpush1.msra.mxu0 0.0
  %411 = vmatprep.subr.mxu0 0.0
  %412 = vmatpush1.msra.mxu0 0.0
  %413 = vmatprep.subr.mxu0 0.0
  %414 = vmatpush1.msra.mxu0 0.0
  %415 = vmatprep.subr.mxu0 0.0
  %416 = vmatpush1.msra.mxu0 0.0
  %417 = vmatprep.subr.mxu0 0.0
  %418 = vmatpush1.msra.mxu0 0.0
  %419 = vmatprep.subr.mxu0 0.0
  %420 = vmatpush1.msra.mxu0 0.0
  %421 = vmatprep.subr.mxu0 0.0
  %422 = vmatpush1.msra.mxu0 0.0
  %423 = vmatprep.subr.mxu0 0.0
  %424 = vmatpush1.msra.mxu0 0.0
  %425 = vmatprep.subr.mxu0 0.0
  %426 = vmatpush1.msra.mxu0 0.0
  %427 = vmatprep.subr.mxu0 0.0
  %428 = vmatpush1.msra.mxu0 0.0
  %429 = vmatprep.subr.mxu0 0.0
  %430 = vmatpush1.msra.mxu0 0.0
  %431 = vmatprep.subr.mxu0 0.0
  %432 = vmatpush1.msra.mxu0 0.0
  %433 = vmatprep.subr.mxu0 0.0
  %434 = vmatpush1.msra.mxu0 0.0
  %435 = vmatprep.subr.mxu0 0.0
  %436 = vmatpush1.msra.mxu0 0.0
  %437 = vmatprep.subr.mxu0 0.0
  %438 = vmatpush1.msra.mxu0 0.0
  %439 = vmatprep.subr.mxu0 0.0
  %440 = vmatpush1.msra.mxu0 0.0
  %441 = vmatprep.subr.mxu0 0.0
  %442 = vmatpush1.msra.mxu0 0.0
  %443 = vmatprep.subr.mxu0 0.0
  %444 = vmatpush1.msra.mxu0 0.0
  %445 = vmatprep.subr.mxu0 0.0
  %446 = vmatpush1.msra.mxu0 0.0
  %447 = vmatprep.subr.mxu0 0.0
  %448 = vmatpush1.msra.mxu0 0.0
  %449 = vmatprep.subr.mxu0 0.0
  %450 = vmatpush1.msra.mxu0 0.0
  %451 = vmatprep.mubr.f32.mxu0 0.0
  %452 = vmatmul.mubr.f32.gmra.mrb[0].mxu0 %v382
  %v453 = vpop.f32.mrb[0].mxu0
  %v454 = vadd.f32 %v378, %v453
  %v455 = vpop.f32.mrb[0].mxu0
  %456 = vmatprep.mubr.f32.mxu0 0.0
  %457 = vmatmul.mubr.f32.gmra.mrb[0].mxu0 %v385
  %v458 = vpop.f32.mrb[0].mxu0
  %v459 = vadd.f32 %v378, %v458
  %v460 = vpop.f32.mrb[0].mxu0
  %461 = vdwg.mxu0
  %v462 = vmax.f32 %v454, 0.0
  %v463 = vmax.f32 %v459, 0.0
  %v464 = vld [vmem:[%s10] sm:$0x77]
  %v465 = vld [vmem:[%s10 + $0x8] sm:$0x77]
  %v466 = vld [vmem:[%s1] sm:$0xff]
  %v467 = vld [vmem:[%s1 + $0x8] sm:$0xff]
  %v468 = vld [vmem:[%s11] sm:$0x77]
  %v469 = vld [vmem:[%s11 + $0x8] sm:$0x77]
  %v472 = vcombine.high %v468, %v468
  %v473 = vcombine.high %v469, %v469
  %vm474 = vcmask 23552
  %v476 = vsel %vm474, %v466, 0
  %v479 = vsel %vm474, %v467, 0
  %vm481 = vcmask 1042432
  %v482 = vsel %vm481, %v468, 0
  %v484 = vsel %vm481, %v472, 0
  %v486 = vsel %vm481, %v469, 0
  %v488 = vsel %vm481, %v473, 0
  %490 = vmatprep.subr.mxu0 %v484
  %491 = vmatpush1.msra.mxu0 %v482
  %492 = vmatprep.subr.mxu0 0.0
  %493 = vmatpush1.msra.mxu0 0.0
  %494 = vmatprep.subr.mxu0 0.0
  %495 = vmatpush1.msra.mxu0 0.0
  %496 = vmatprep.subr.mxu0 0.0
  %497 = vmatpush1.msra.mxu0 0.0
  %498 = vmatprep.subr.mxu0 0.0
  %499 = vmatpush1.msra.mxu0 0.0
  %500 = vmatprep.subr.mxu0 0.0
  %501 = vmatpush1.msra.mxu0 0.0
  %502 = vmatprep.subr.mxu0 0.0
  %503 = vmatpush1.msra.mxu0 0.0
  %504 = vmatprep.subr.mxu0 0.0
  %505 = vmatpush1.msra.mxu0 0.0
  %506 = vmatprep.subr.mxu0 0.0
  %507 = vmatpush1.msra.mxu0 0.0
  %508 = vmatprep.subr.mxu0 0.0
  %509 = vmatpush1.msra.mxu0 0.0
  %510 = vmatprep.subr.mxu0 0.0
  %511 = vmatpush1.msra.mxu0 0.0
  %512 = vmatprep.subr.mxu0 0.0
  %513 = vmatpush1.msra.mxu0 0.0
  %514 = vmatprep.subr.mxu0 0.0
  %515 = vmatpush1.msra.mxu0 0.0
  %516 = vmatprep.subr.mxu0 0.0
  %517 = vmatpush1.msra.mxu0 0.0
  %518 = vmatprep.subr.mxu0 0.0
  %519 = vmatpush1.msra.mxu0 0.0
  %520 = vmatprep.subr.mxu0 0.0
  %521 = vmatpush1.msra.mxu0 0.0
  %522 = vmatprep.subr.mxu0 0.0
  %523 = vmatpush1.msra.mxu0 0.0
  %524 = vmatprep.subr.mxu0 0.0
  %525 = vmatpush1.msra.mxu0 0.0
  %526 = vmatprep.subr.mxu0 0.0
  %527 = vmatpush1.msra.mxu0 0.0
  %528 = vmatprep.subr.mxu0 0.0
  %529 = vmatpush1.msra.mxu0 0.0
  %530 = vmatprep.subr.mxu0 0.0
  %531 = vmatpush1.msra.mxu0 0.0
  %532 = vmatprep.subr.mxu0 0.0
  %533 = vmatpush1.msra.mxu0 0.0
  %534 = vmatprep.subr.mxu0 0.0
  %535 = vmatpush1.msra.mxu0 0.0
  %536 = vmatprep.subr.mxu0 0.0
  %537 = vmatpush1.msra.mxu0 0.0
  %538 = vmatprep.subr.mxu0 0.0
  %539 = vmatpush1.msra.mxu0 0.0
  %540 = vmatprep.subr.mxu0 0.0
  %541 = vmatpush1.msra.mxu0 0.0
  %542 = vmatprep.subr.mxu0 0.0
  %543 = vmatpush1.msra.mxu0 0.0
  %544 = vmatprep.subr.mxu0 0.0
  %545 = vmatpush1.msra.mxu0 0.0
  %546 = vmatprep.subr.mxu0 0.0
  %547 = vmatpush1.msra.mxu0 0.0
  %548 = vmatprep.subr.mxu0 0.0
  %549 = vmatpush1.msra.mxu0 0.0
  %550 = vmatprep.subr.mxu0 0.0
  %551 = vmatpush1.msra.mxu0 0.0
  %552 = vmatprep.subr.mxu0 0.0
  %553 = vmatpush1.msra.mxu0 0.0
  %554 = vmatprep.mubr.f32.mxu0 0.0
  %555 = vmatmul.mubr.f32.gmra.mrb[0].mxu0 %v476
  %v556 = vpop.f32.mrb[0].mxu0
  %v557 = vadd.f32 0.0, %v556
  %v558 = vpop.f32.mrb[0].mxu0
  %v559 = vadd.f32 0.0, %v558
  %560 = vmatprep.mubr.f32.mxu0 0.0
  %561 = vmatmul.mubr.f32.gmra.mrb[0].mxu0 %v479
  %v562 = vpop.f32.mrb[0].mxu0
  %v563 = vadd.f32 0.0, %v562
  %v564 = vpop.f32.mrb[0].mxu0
  %v565 = vadd.f32 0.0, %v564
  %566 = vdwg.mxu0
  %567 = vmatprep.subr.mxu0 %v488
  %568 = vmatpush1.msra.mxu0 %v486
  %569 = vmatprep.subr.mxu0 0.0
  %570 = vmatpush1.msra.mxu0 0.0
  %571 = vmatprep.subr.mxu0 0.0
  %572 = vmatpush1.msra.mxu0 0.0
  %573 = vmatprep.subr.mxu0 0.0
  %574 = vmatpush1.msra.mxu0 0.0
  %575 = vmatprep.subr.mxu0 0.0
  %576 = vmatpush1.msra.mxu0 0.0
  %577 = vmatprep.subr.mxu0 0.0
  %578 = vmatpush1.msra.mxu0 0.0
  %579 = vmatprep.subr.mxu0 0.0
  %580 = vmatpush1.msra.mxu0 0.0
  %581 = vmatprep.subr.mxu0 0.0
  %582 = vmatpush1.msra.mxu0 0.0
  %583 = vmatprep.subr.mxu0 0.0
  %584 = vmatpush1.msra.mxu0 0.0
  %585 = vmatprep.subr.mxu0 0.0
  %586 = vmatpush1.msra.mxu0 0.0
  %587 = vmatprep.subr.mxu0 0.0
  %588 = vmatpush1.msra.mxu0 0.0
  %589 = vmatprep.subr.mxu0 0.0
  %590 = vmatpush1.msra.mxu0 0.0
  %591 = vmatprep.subr.mxu0 0.0
  %592 = vmatpush1.msra.mxu0 0.0
  %593 = vmatprep.subr.mxu0 0.0
  %594 = vmatpush1.msra.mxu0 0.0
  %595 = vmatprep.subr.mxu0 0.0
  %596 = vmatpush1.msra.mxu0 0.0
  %597 = vmatprep.subr.mxu0 0.0
  %598 = vmatpush1.msra.mxu0 0.0
  %599 = vmatprep.subr.mxu0 0.0
  %600 = vmatpush1.msra.mxu0 0.0
  %601 = vmatprep.subr.mxu0 0.0
  %602 = vmatpush1.msra.mxu0 0.0
  %603 = vmatprep.subr.mxu0 0.0
  %604 = vmatpush1.msra.mxu0 0.0
  %605 = vmatprep.subr.mxu0 0.0
  %606 = vmatpush1.msra.mxu0 0.0
  %607 = vmatprep.subr.mxu0 0.0
  %608 = vmatpush1.msra.mxu0 0.0
  %609 = vmatprep.subr.mxu0 0.0
  %610 = vmatpush1.msra.mxu0 0.0
  %611 = vmatprep.subr.mxu0 0.0
  %612 = vmatpush1.msra.mxu0 0.0
  %613 = vmatprep.subr.mxu0 0.0
  %614 = vmatpush1.msra.mxu0 0.0
  %615 = vmatprep.subr.mxu0 0.0
  %616 = vmatpush1.msra.mxu0 0.0
  %617 = vmatprep.subr.mxu0 0.0
  %618 = vmatpush1.msra.mxu0 0.0
  %619 = vmatprep.subr.mxu0 0.0
  %620 = vmatpush1.msra.mxu0 0.0
  %621 = vmatprep.subr.mxu0 0.0
  %622 = vmatpush1.msra.mxu0 0.0
  %623 = vmatprep.subr.mxu0 0.0
  %624 = vmatpush1.msra.mxu0 0.0
  %625 = vmatprep.subr.mxu0 0.0
  %626 = vmatpush1.msra.mxu0 0.0
  %627 = vmatprep.subr.mxu0 0.0
  %628 = vmatpush1.msra.mxu0 0.0
  %629 = vmatprep.subr.mxu0 0.0
  %630 = vmatpush1.msra.mxu0 0.0
  %631 = vmatprep.mubr.f32.mxu0 0.0
  %632 = vmatmul.mubr.f32.gmra.mrb[0].mxu0 %v476
  %v633 = vpop.f32.mrb[0].mxu0
  %v634 = vadd.f32 0.0, %v633
  %v635 = vpop.f32.mrb[0].mxu0
  %v636 = vadd.f32 0.0, %v635
  %637 = vmatprep.mubr.f32.mxu0 0.0
  %638 = vmatmul.mubr.f32.gmra.mrb[0].mxu0 %v479
  %v639 = vpop.f32.mrb[0].mxu0
  %v640 = vadd.f32 0.0, %v639
  %v641 = vpop.f32.mrb[0].mxu0
  %v642 = vadd.f32 0.0, %v641
  %643 = vdwg.mxu0
  %v646 = vcombine.high %v464, %v464
  %v647 = vcombine.high %v465, %v465
  %v649 = vsel %vm474, %v462, 0
  %v652 = vsel %vm474, %v463, 0
  %v654 = vsel %vm481, %v464, 0
  %v656 = vsel %vm481, %v646, 0
  %v658 = vsel %vm481, %v465, 0
  %v660 = vsel %vm481, %v647, 0
  %662 = vmatprep.subr.mxu0 %v656
  %663 = vmatpush1.msra.mxu0 %v654
  %664 = vmatprep.subr.mxu0 0.0
  %665 = vmatpush1.msra.mxu0 0.0
  %666 = vmatprep.subr.mxu0 0.0
  %667 = vmatpush1.msra.mxu0 0.0
  %668 = vmatprep.subr.mxu0 0.0
  %669 = vmatpush1.msra.mxu0 0.0
  %670 = vmatprep.subr.mxu0 0.0
  %671 = vmatpush1.msra.mxu0 0.0
  %672 = vmatprep.subr.mxu0 0.0
  %673 = vmatpush1.msra.mxu0 0.0
  %674 = vmatprep.subr.mxu0 0.0
  %675 = vmatpush1.msra.mxu0 0.0
  %676 = vmatprep.subr.mxu0 0.0
  %677 = vmatpush1.msra.mxu0 0.0
  %678 = vmatprep.subr.mxu0 0.0
  %679 = vmatpush1.msra.mxu0 0.0
  %680 = vmatprep.subr.mxu0 0.0
  %681 = vmatpush1.msra.mxu0 0.0
  %682 = vmatprep.subr.mxu0 0.0
  %683 = vmatpush1.msra.mxu0 0.0
  %684 = vmatprep.subr.mxu0 0.0
  %685 = vmatpush1.msra.mxu0 0.0
  %686 = vmatprep.subr.mxu0 0.0
  %687 = vmatpush1.msra.mxu0 0.0
  %688 = vmatprep.subr.mxu0 0.0
  %689 = vmatpush1.msra.mxu0 0.0
  %690 = vmatprep.subr.mxu0 0.0
  %691 = vmatpush1.msra.mxu0 0.0
  %692 = vmatprep.subr.mxu0 0.0
  %693 = vmatpush1.msra.mxu0 0.0
  %694 = vmatprep.subr.mxu0 0.0
  %695 = vmatpush1.msra.mxu0 0.0
  %696 = vmatprep.subr.mxu0 0.0
  %697 = vmatpush1.msra.mxu0 0.0
  %698 = vmatprep.subr.mxu0 0.0
  %699 = vmatpush1.msra.mxu0 0.0
  %700 = vmatprep.subr.mxu0 0.0
  %701 = vmatpush1.msra.mxu0 0.0
  %702 = vmatprep.subr.mxu0 0.0
  %703 = vmatpush1.msra.mxu0 0.0
  %704 = vmatprep.subr.mxu0 0.0
  %705 = vmatpush1.msra.mxu0 0.0
  %706 = vmatprep.subr.mxu0 0.0
  %707 = vmatpush1.msra.mxu0 0.0
  %708 = vmatprep.subr.mxu0 0.0
  %709 = vmatpush1.msra.mxu0 0.0
  %710 = vmatprep.subr.mxu0 0.0
  %711 = vmatpush1.msra.mxu0 0.0
  %712 = vmatprep.subr.mxu0 0.0
  %713 = vmatpush1.msra.mxu0 0.0
  %714 = vmatprep.subr.mxu0 0.0
  %715 = vmatpush1.msra.mxu0 0.0
  %716 = vmatprep.subr.mxu0 0.0
  %717 = vmatpush1.msra.mxu0 0.0
  %718 = vmatprep.subr.mxu0 0.0
  %719 = vmatpush1.msra.mxu0 0.0
  %720 = vmatprep.subr.mxu0 0.0
  %721 = vmatpush1.msra.mxu0 0.0
  %722 = vmatprep.subr.mxu0 0.0
  %723 = vmatpush1.msra.mxu0 0.0
  %724 = vmatprep.subr.mxu0 0.0
  %725 = vmatpush1.msra.mxu0 0.0
  %726 = vmatprep.mubr.f32.mxu0 0.0
  %727 = vmatmul.mubr.f32.gmra.mrb[0].mxu0 %v649
  %v728 = vpop.f32.mrb[0].mxu0
  %v729 = vadd.f32 %v557, %v728
  %v730 = vpop.f32.mrb[0].mxu0
  %v731 = vadd.f32 %v559, %v730
  %732 = vmatprep.mubr.f32.mxu0 0.0
  %733 = vmatmul.mubr.f32.gmra.mrb[0].mxu0 %v652
  %v734 = vpop.f32.mrb[0].mxu0
  %v735 = vadd.f32 %v563, %v734
  %v736 = vpop.f32.mrb[0].mxu0
  %v737 = vadd.f32 %v565, %v736
  %738 = vdwg.mxu0
  %739 = vmatprep.subr.mxu0 %v660
  %740 = vmatpush1.msra.mxu0 %v658
  %741 = vmatprep.subr.mxu0 0.0
  %742 = vmatpush1.msra.mxu0 0.0
  %743 = vmatprep.subr.mxu0 0.0
  %744 = vmatpush1.msra.mxu0 0.0
  %745 = vmatprep.subr.mxu0 0.0
  %746 = vmatpush1.msra.mxu0 0.0
  %747 = vmatprep.subr.mxu0 0.0
  %748 = vmatpush1.msra.mxu0 0.0
  %749 = vmatprep.subr.mxu0 0.0
  %750 = vmatpush1.msra.mxu0 0.0
  %751 = vmatprep.subr.mxu0 0.0
  %752 = vmatpush1.msra.mxu0 0.0
  %753 = vmatprep.subr.mxu0 0.0
  %754 = vmatpush1.msra.mxu0 0.0
  %755 = vmatprep.subr.mxu0 0.0
  %756 = vmatpush1.msra.mxu0 0.0
  %757 = vmatprep.subr.mxu0 0.0
  %758 = vmatpush1.msra.mxu0 0.0
  %759 = vmatprep.subr.mxu0 0.0
  %760 = vmatpush1.msra.mxu0 0.0
  %761 = vmatprep.subr.mxu0 0.0
  %762 = vmatpush1.msra.mxu0 0.0
  %763 = vmatprep.subr.mxu0 0.0
  %764 = vmatpush1.msra.mxu0 0.0
  %765 = vmatprep.subr.mxu0 0.0
  %766 = vmatpush1.msra.mxu0 0.0
  %767 = vmatprep.subr.mxu0 0.0
  %768 = vmatpush1.msra.mxu0 0.0
  %769 = vmatprep.subr.mxu0 0.0
  %770 = vmatpush1.msra.mxu0 0.0
  %771 = vmatprep.subr.mxu0 0.0
  %772 = vmatpush1.msra.mxu0 0.0
  %773 = vmatprep.subr.mxu0 0.0
  %774 = vmatpush1.msra.mxu0 0.0
  %775 = vmatprep.subr.mxu0 0.0
  %776 = vmatpush1.msra.mxu0 0.0
  %777 = vmatprep.subr.mxu0 0.0
  %778 = vmatpush1.msra.mxu0 0.0
  %779 = vmatprep.subr.mxu0 0.0
  %780 = vmatpush1.msra.mxu0 0.0
  %781 = vmatprep.subr.mxu0 0.0
  %782 = vmatpush1.msra.mxu0 0.0
  %783 = vmatprep.subr.mxu0 0.0
  %784 = vmatpush1.msra.mxu0 0.0
  %785 = vmatprep.subr.mxu0 0.0
  %786 = vmatpush1.msra.mxu0 0.0
  %787 = vmatprep.subr.mxu0 0.0
  %788 = vmatpush1.msra.mxu0 0.0
  %789 = vmatprep.subr.mxu0 0.0
  %790 = vmatpush1.msra.mxu0 0.0
  %791 = vmatprep.subr.mxu0 0.0
  %792 = vmatpush1.msra.mxu0 0.0
  %793 = vmatprep.subr.mxu0 0.0
  %794 = vmatpush1.msra.mxu0 0.0
  %795 = vmatprep.subr.mxu0 0.0
  %796 = vmatpush1.msra.mxu0 0.0
  %797 = vmatprep.subr.mxu0 0.0
  %798 = vmatpush1.msra.mxu0 0.0
  %799 = vmatprep.subr.mxu0 0.0
  %800 = vmatpush1.msra.mxu0 0.0
  %801 = vmatprep.subr.mxu0 0.0
  %802 = vmatpush1.msra.mxu0 0.0
  %803 = vmatprep.mubr.f32.mxu0 0.0
  %804 = vmatmul.mubr.f32.gmra.mrb[0].mxu0 %v649
  %v805 = vpop.f32.mrb[0].mxu0
  %v806 = vadd.f32 %v634, %v805
  %v807 = vpop.f32.mrb[0].mxu0
  %v808 = vadd.f32 %v636, %v807
  %809 = vmatprep.mubr.f32.mxu0 0.0
  %810 = vmatmul.mubr.f32.gmra.mrb[0].mxu0 %v652
  %v811 = vpop.f32.mrb[0].mxu0
  %v812 = vadd.f32 %v640, %v811
  %v813 = vpop.f32.mrb[0].mxu0
  %v814 = vadd.f32 %v642, %v813
  %815 = vdwg.mxu0
  %v816 = vld [vmem:[%s12] sm:$0xf]
  %v818 = vlaneseq
  %v819 = vshrl.u32 %v818, 7
  %v820 = vsub.s32 0, %v819
  %v821 = vrot.slane %v816, %v820
  %v822 = vlaneseq
  %v823 = vshrl.u32 %v822, 7
  %v824 = vsub.s32 1, %v823
  %v825 = vrot.slane %v816, %v824
  %v826 = vlaneseq
  %v827 = vshrl.u32 %v826, 7
  %v828 = vsub.s32 2, %v827
  %v829 = vrot.slane %v816, %v828
  %v830 = vlaneseq
  %v831 = vshrl.u32 %v830, 7
  %v832 = vsub.s32 3, %v831
  %v833 = vrot.slane %v816, %v832
  %v838 = vadd.f32 %v729, %v821
  %v839 = vadd.f32 %v731, %v825
  %v840 = vadd.f32 %v806, %v829
  %v841 = vadd.f32 %v808, %v833
  %v842 = vadd.f32 %v735, %v821
  %v843 = vadd.f32 %v737, %v825
  %v844 = vadd.f32 %v812, %v829
  %v845 = vadd.f32 %v814, %v833
  %v846 = vld [vmem:[%s13] sm:$0xff]
  %v847 = vld [vmem:[%s13 + $0x8] sm:$0xff]
  %v848 = vld [vmem:[%s13 + $0x10] sm:$0xff]
  %v849 = vld [vmem:[%s13 + $0x18] sm:$0xff]
  %v850 = vld [vmem:[%s13 + $0x20] sm:$0xff]
  %v851 = vld [vmem:[%s13 + $0x28] sm:$0xff]
  %v852 = vld [vmem:[%s13 + $0x30] sm:$0xff]
  %v853 = vld [vmem:[%s13 + $0x38] sm:$0xff]
  %v854 = vld [vmem:[%s13 + $0x40] sm:$0xff]
  %v855 = vld [vmem:[%s13 + $0x48] sm:$0xff]
  %v856 = vld [vmem:[%s13 + $0x50] sm:$0xff]
  %v857 = vld [vmem:[%s13 + $0x58] sm:$0xff]
  %v858 = vld [vmem:[%s13 + $0x60] sm:$0xff]
  %v859 = vld [vmem:[%s13 + $0x68] sm:$0xff]
  %v860 = vld [vmem:[%s13 + $0x70] sm:$0xff]
  %v861 = vld [vmem:[%s13 + $0x78] sm:$0xff]
  %v862 = vld [vmem:[%s13 + $0x80] sm:$0xff]
  %v863 = vld [vmem:[%s13 + $0x88] sm:$0xff]
  %v864 = vld [vmem:[%s13 + $0x90] sm:$0xff]
  %v865 = vld [vmem:[%s13 + $0x98] sm:$0xff]
  %v866 = vld [vmem:[%s13 + $0xa0] sm:$0xff]
  %v867 = vld [vmem:[%s13 + $0xa8] sm:$0xff]
  %v868 = vld [vmem:[%s13 + $0xb0] sm:$0xff]
  %v869 = vld [vmem:[%s13 + $0xb8] sm:$0xff]
  %v870 = vld [vmem:[%s13 + $0xc0] sm:$0xff]
  %v871 = vld [vmem:[%s13 + $0xc8] sm:$0xff]
  %v872 = vld [vmem:[%s13 + $0xd0] sm:$0xff]
  %v873 = vld [vmem:[%s13 + $0xd8] sm:$0xff]
  %v874 = vld [vmem:[%s13 + $0xe0] sm:$0xff]
  %v875 = vld [vmem:[%s13 + $0xe8] sm:$0xff]
  %v876 = vld [vmem:[%s13 + $0xf0] sm:$0xff]
  %v877 = vld [vmem:[%s13 + $0xf8] sm:$0xff]
  %v878 = vld [vmem:[%s13 + $0x100] sm:$0xff]
  %v879 = vld [vmem:[%s13 + $0x108] sm:$0xff]
  %v880 = vld [vmem:[%s13 + $0x110] sm:$0xff]
  %v881 = vld [vmem:[%s13 + $0x118] sm:$0xff]
  %v882 = vld [vmem:[%s13 + $0x120] sm:$0xff]
  %v883 = vld [vmem:[%s13 + $0x128] sm:$0xff]
  %v884 = vld [vmem:[%s13 + $0x130] sm:$0xff]
  %v885 = vld [vmem:[%s13 + $0x138] sm:$0xff]
  %v886 = vld [vmem:[%s13 + $0x140] sm:$0xff]
  %v887 = vld [vmem:[%s13 + $0x148] sm:$0xff]
  %v888 = vld [vmem:[%s13 + $0x150] sm:$0xff]
  %v889 = vld [vmem:[%s13 + $0x158] sm:$0xff]
  %v890 = vld [vmem:[%s13 + $0x160] sm:$0xff]
  %v891 = vld [vmem:[%s13 + $0x168] sm:$0xff]
  %v892 = vld [vmem:[%s13 + $0x170] sm:$0xff]
  %v893 = vld [vmem:[%s13 + $0x178] sm:$0xff]
  %v894 = vld [vmem:[%s13 + $0x180] sm:$0xff]
  %v895 = vld [vmem:[%s13 + $0x188] sm:$0xff]
  %v896 = vld [vmem:[%s13 + $0x190] sm:$0xff]
  %v897 = vld [vmem:[%s13 + $0x198] sm:$0xff]
  %v898 = vld [vmem:[%s13 + $0x1a0] sm:$0xff]
  %v899 = vld [vmem:[%s13 + $0x1a8] sm:$0xff]
  %v900 = vld [vmem:[%s13 + $0x1b0] sm:$0xff]
  %v901 = vld [vmem:[%s13 + $0x1b8] sm:$0xff]
  %v902 = vld [vmem:[%s13 + $0x1c0] sm:$0xff]
  %v903 = vld [vmem:[%s13 + $0x1c8] sm:$0xff]
  %v904 = vld [vmem:[%s13 + $0x1d0] sm:$0xff]
  %v905 = vld [vmem:[%s13 + $0x1d8] sm:$0xff]
  %v906 = vld [vmem:[%s13 + $0x1e0] sm:$0xff]
  %v907 = vld [vmem:[%s13 + $0x1e8] sm:$0xff]
  %v908 = vld [vmem:[%s13 + $0x1f0] sm:$0xff]
  %v909 = vld [vmem:[%s13 + $0x1f8] sm:$0xff]
  %910 = vmatprep.subr.mxu0 %v847
  %911 = vmatpush1.msra.mxu0 %v846
  %912 = vmatprep.subr.mxu0 %v851
  %913 = vmatpush1.msra.mxu0 %v850
  %914 = vmatprep.subr.mxu0 %v855
  %915 = vmatpush1.msra.mxu0 %v854
  %916 = vmatprep.subr.mxu0 %v859
  %917 = vmatpush1.msra.mxu0 %v858
  %918 = vmatprep.subr.mxu0 %v863
  %919 = vmatpush1.msra.mxu0 %v862
  %920 = vmatprep.subr.mxu0 %v867
  %921 = vmatpush1.msra.mxu0 %v866
  %922 = vmatprep.subr.mxu0 %v871
  %923 = vmatpush1.msra.mxu0 %v870
  %924 = vmatprep.subr.mxu0 %v875
  %925 = vmatpush1.msra.mxu0 %v874
  %926 = vmatprep.subr.mxu0 %v879
  %927 = vmatpush1.msra.mxu0 %v878
  %928 = vmatprep.subr.mxu0 %v883
  %929 = vmatpush1.msra.mxu0 %v882
  %930 = vmatprep.subr.mxu0 %v887
  %931 = vmatpush1.msra.mxu0 %v886
  %932 = vmatprep.subr.mxu0 %v891
  %933 = vmatpush1.msra.mxu0 %v890
  %934 = vmatprep.subr.mxu0 %v895
  %935 = vmatpush1.msra.mxu0 %v894
  %936 = vmatprep.subr.mxu0 %v899
  %937 = vmatpush1.msra.mxu0 %v898
  %938 = vmatprep.subr.mxu0 %v903
  %939 = vmatpush1.msra.mxu0 %v902
  %940 = vmatprep.subr.mxu0 %v907
  %941 = vmatpush1.msra.mxu0 %v906
  %942 = vmatprep.subr.mxu0 0.0
  %943 = vmatpush1.msra.mxu0 0.0
  %944 = vmatprep.subr.mxu0 0.0
  %945 = vmatpush1.msra.mxu0 0.0
  %946 = vmatprep.subr.mxu0 0.0
  %947 = vmatpush1.msra.mxu0 0.0
  %948 = vmatprep.subr.mxu0 0.0
  %949 = vmatpush1.msra.mxu0 0.0
  %950 = vmatprep.subr.mxu0 0.0
  %951 = vmatpush1.msra.mxu0 0.0
  %952 = vmatprep.subr.mxu0 0.0
  %953 = vmatpush1.msra.mxu0 0.0
  %954 = vmatprep.subr.mxu0 0.0
  %955 = vmatpush1.msra.mxu0 0.0
  %956 = vmatprep.subr.mxu0 0.0
  %957 = vmatpush1.msra.mxu0 0.0
  %958 = vmatprep.subr.mxu0 0.0
  %959 = vmatpush1.msra.mxu0 0.0
  %960 = vmatprep.subr.mxu0 0.0
  %961 = vmatpush1.msra.mxu0 0.0
  %962 = vmatprep.subr.mxu0 0.0
  %963 = vmatpush1.msra.mxu0 0.0
  %964 = vmatprep.subr.mxu0 0.0
  %965 = vmatpush1.msra.mxu0 0.0
  %966 = vmatprep.subr.mxu0 0.0
  %967 = vmatpush1.msra.mxu0 0.0
  %968 = vmatprep.subr.mxu0 0.0
  %969 = vmatpush1.msra.mxu0 0.0
  %970 = vmatprep.subr.mxu0 0.0
  %971 = vmatpush1.msra.mxu0 0.0
  %972 = vmatprep.subr.mxu0 0.0
  %973 = vmatpush1.msra.mxu0 0.0
  %974 = vmatprep.mubr.f32.mxu0 0.0
  %975 = vmatmul.mubr.f32.gmra.mrb[0].mxu0 0.0
  %v976 = vpop.f32.mrb[0].mxu0
  %v977 = vadd.f32 0.0, %v976
  %v978 = vpop.f32.mrb[0].mxu0
  %v979 = vadd.f32 0.0, %v978
  %980 = vdwg.mxu0
  %981 = vmatprep.subr.mxu0 %v849
  %982 = vmatpush1.msra.mxu0 %v848
  %983 = vmatprep.subr.mxu0 %v853
  %984 = vmatpush1.msra.mxu0 %v852
  %985 = vmatprep.subr.mxu0 %v857
  %986 = vmatpush1.msra.mxu0 %v856
  %987 = vmatprep.subr.mxu0 %v861
  %988 = vmatpush1.msra.mxu0 %v860
  %989 = vmatprep.subr.mxu0 %v865
  %990 = vmatpush1.msra.mxu0 %v864
  %991 = vmatprep.subr.mxu0 %v869
  %992 = vmatpush1.msra.mxu0 %v868
  %993 = vmatprep.subr.mxu0 %v873
  %994 = vmatpush1.msra.mxu0 %v872
  %995 = vmatprep.subr.mxu0 %v877
  %996 = vmatpush1.msra.mxu0 %v876
  %997 = vmatprep.subr.mxu0 %v881
  %998 = vmatpush1.msra.mxu0 %v880
  %999 = vmatprep.subr.mxu0 %v885
  %1000 = vmatpush1.msra.mxu0 %v884
  %1001 = vmatprep.subr.mxu0 %v889
  %1002 = vmatpush1.msra.mxu0 %v888
  %1003 = vmatprep.subr.mxu0 %v893
  %1004 = vmatpush1.msra.mxu0 %v892
  %1005 = vmatprep.subr.mxu0 %v897
  %1006 = vmatpush1.msra.mxu0 %v896
  %1007 = vmatprep.subr.mxu0 %v901
  %1008 = vmatpush1.msra.mxu0 %v900
  %1009 = vmatprep.subr.mxu0 %v905
  %1010 = vmatpush1.msra.mxu0 %v904
  %1011 = vmatprep.subr.mxu0 %v909
  %1012 = vmatpush1.msra.mxu0 %v908
  %1013 = vmatprep.subr.mxu0 0.0
  %1014 = vmatpush1.msra.mxu0 0.0
  %1015 = vmatprep.subr.mxu0 0.0
  %1016 = vmatpush1.msra.mxu0 0.0
  %1017 = vmatprep.subr.mxu0 0.0
  %1018 = vmatpush1.msra.mxu0 0.0
  %1019 = vmatprep.subr.mxu0 0.0
  %1020 = vmatpush1.msra.mxu0 0.0
  %1021 = vmatprep.subr.mxu0 0.0
  %1022 = vmatpush1.msra.mxu0 0.0
  %1023 = vmatprep.subr.mxu0 0.0
  %1024 = vmatpush1.msra.mxu0 0.0
  %1025 = vmatprep.subr.mxu0 0.0
  %1026 = vmatpush1.msra.mxu0 0.0
  %1027 = vmatprep.subr.mxu0 0.0
  %1028 = vmatpush1.msra.mxu0 0.0
  %1029 = vmatprep.subr.mxu0 0.0
  %1030 = vmatpush1.msra.mxu0 0.0
  %1031 = vmatprep.subr.mxu0 0.0
  %1032 = vmatpush1.msra.mxu0 0.0
  %1033 = vmatprep.subr.mxu0 0.0
  %1034 = vmatpush1.msra.mxu0 0.0
  %1035 = vmatprep.subr.mxu0 0.0
  %1036 = vmatpush1.msra.mxu0 0.0
  %1037 = vmatprep.subr.mxu0 0.0
  %1038 = vmatpush1.msra.mxu0 0.0
  %1039 = vmatprep.subr.mxu0 0.0
  %1040 = vmatpush1.msra.mxu0 0.0
  %1041 = vmatprep.subr.mxu0 0.0
  %1042 = vmatpush1.msra.mxu0 0.0
  %1043 = vmatprep.subr.mxu0 0.0
  %1044 = vmatpush1.msra.mxu0 0.0
  %1045 = vmatprep.mubr.f32.mxu0 0.0
  %1046 = vmatmul.mubr.f32.gmra.mrb[0].mxu0 0.0
  %v1047 = vpop.f32.mrb[0].mxu0
  %v1048 = vadd.f32 0.0, %v1047
  %v1049 = vpop.f32.mrb[0].mxu0
  %v1050 = vadd.f32 0.0, %v1049
  %1051 = vdwg.mxu0
  %v1052 = vadd.f32 %v838, %v977
  %v1053 = vadd.f32 %v839, %v979
  %v1054 = vadd.f32 %v840, %v1048
  %v1055 = vadd.f32 %v841, %v1050
  %v1056 = vxor.u32 %v1052, 2147483648
  %v1057 = vmul.f32 %v1056, 1.442695
  %v1058 = vpow.pop %v1057
  %v1059 = vadd.f32 %v1058, 1.0
  %v1060 = vrcp.pop %v1059
  %v1061 = vmul.f32 1.0, %v1060
  %v1062 = vxor.u32 %v1053, 2147483648
  %v1063 = vmul.f32 %v1062, 1.442695
  %v1064 = vpow.pop %v1063
  %v1065 = vadd.f32 %v1064, 1.0
  %v1066 = vrcp.pop %v1065
  %v1067 = vmul.f32 1.0, %v1066
  %v1068 = vtanh.pop %v1054
  %v1069 = vxor.u32 %v1055, 2147483648
  %v1070 = vmul.f32 %v1069, 1.442695
  %v1071 = vpow.pop %v1070
  %v1072 = vadd.f32 %v1071, 1.0
  %v1073 = vrcp.pop %v1072
  %v1074 = vmul.f32 1.0, %v1073
  %v1075 = vmul.f32 %v1067, 0.0
  %v1076 = vmul.f32 %v1061, %v1068
  %v1077 = vadd.f32 %v1075, %v1076
  %v1078 = vtanh.pop %v1077
  %v1079 = vmul.f32 %v1074, %v1078
  %1080 = vmatprep.subr.mxu0 %v847
  %1081 = vmatpush1.msra.mxu0 %v846
  %1082 = vmatprep.subr.mxu0 %v851
  %1083 = vmatpush1.msra.mxu0 %v850
  %1084 = vmatprep.subr.mxu0 %v855
  %1085 = vmatpush1.msra.mxu0 %v854
  %1086 = vmatprep.subr.mxu0 %v859
  %1087 = vmatpush1.msra.mxu0 %v858
  %1088 = vmatprep.subr.mxu0 %v863
  %1089 = vmatpush1.msra.mxu0 %v862
  %1090 = vmatprep.subr.mxu0 %v867
  %1091 = vmatpush1.msra.mxu0 %v866
  %1092 = vmatprep.subr.mxu0 %v871
  %1093 = vmatpush1.msra.mxu0 %v870
  %1094 = vmatprep.subr.mxu0 %v875
  %1095 = vmatpush1.msra.mxu0 %v874
  %1096 = vmatprep.subr.mxu0 %v879
  %1097 = vmatpush1.msra.mxu0 %v878
  %1098 = vmatprep.subr.mxu0 %v883
  %1099 = vmatpush1.msra.mxu0 %v882
  %1100 = vmatprep.subr.mxu0 %v887
  %1101 = vmatpush1.msra.mxu0 %v886
  %1102 = vmatprep.subr.mxu0 %v891
  %1103 = vmatpush1.msra.mxu0 %v890
  %1104 = vmatprep.subr.mxu0 %v895
  %1105 = vmatpush1.msra.mxu0 %v894
  %1106 = vmatprep.subr.mxu0 %v899
  %1107 = vmatpush1.msra.mxu0 %v898
  %1108 = vmatprep.subr.mxu0 %v903
  %1109 = vmatpush1.msra.mxu0 %v902
  %1110 = vmatprep.subr.mxu0 %v907
  %1111 = vmatpush1.msra.mxu0 %v906
  %1112 = vmatprep.subr.mxu0 0.0
  %1113 = vmatpush1.msra.mxu0 0.0
  %1114 = vmatprep.subr.mxu0 0.0
  %1115 = vmatpush1.msra.mxu0 0.0
  %1116 = vmatprep.subr.mxu0 0.0
  %1117 = vmatpush1.msra.mxu0 0.0
  %1118 = vmatprep.subr.mxu0 0.0
  %1119 = vmatpush1.msra.mxu0 0.0
  %1120 = vmatprep.subr.mxu0 0.0
  %1121 = vmatpush1.msra.mxu0 0.0
  %1122 = vmatprep.subr.mxu0 0.0
  %1123 = vmatpush1.msra.mxu0 0.0
  %1124 = vmatprep.subr.mxu0 0.0
  %1125 = vmatpush1.msra.mxu0 0.0
  %1126 = vmatprep.subr.mxu0 0.0
  %1127 = vmatpush1.msra.mxu0 0.0
  %1128 = vmatprep.subr.mxu0 0.0
  %1129 = vmatpush1.msra.mxu0 0.0
  %1130 = vmatprep.subr.mxu0 0.0
  %1131 = vmatpush1.msra.mxu0 0.0
  %1132 = vmatprep.subr.mxu0 0.0
  %1133 = vmatpush1.msra.mxu0 0.0
  %1134 = vmatprep.subr.mxu0 0.0
  %1135 = vmatpush1.msra.mxu0 0.0
  %1136 = vmatprep.subr.mxu0 0.0
  %1137 = vmatpush1.msra.mxu0 0.0
  %1138 = vmatprep.subr.mxu0 0.0
  %1139 = vmatpush1.msra.mxu0 0.0
  %1140 = vmatprep.subr.mxu0 0.0
  %1141 = vmatpush1.msra.mxu0 0.0
  %1142 = vmatprep.subr.mxu0 0.0
  %1143 = vmatpush1.msra.mxu0 0.0
  %1144 = vmatprep.mubr.f32.mxu0 0.0
  %1145 = vmatmul.mubr.f32.gmra.mrb[0].mxu0 %v1079
  %v1146 = vpop.f32.mrb[0].mxu0
  %v1147 = vadd.f32 0.0, %v1146
  %v1148 = vpop.f32.mrb[0].mxu0
  %v1149 = vadd.f32 0.0, %v1148
  %1150 = vdwg.mxu0
  %1151 = vmatprep.subr.mxu0 %v849
  %1152 = vmatpush1.msra.mxu0 %v848
  %1153 = vmatprep.subr.mxu0 %v853
  %1154 = vmatpush1.msra.mxu0 %v852
  %1155 = vmatprep.subr.mxu0 %v857
  %1156 = vmatpush1.msra.mxu0 %v856
  %1157 = vmatprep.subr.mxu0 %v861
  %1158 = vmatpush1.msra.mxu0 %v860
  %1159 = vmatprep.subr.mxu0 %v865
  %1160 = vmatpush1.msra.mxu0 %v864
  %1161 = vmatprep.subr.mxu0 %v869
  %1162 = vmatpush1.msra.mxu0 %v868
  %1163 = vmatprep.subr.mxu0 %v873
  %1164 = vmatpush1.msra.mxu0 %v872
  %1165 = vmatprep.subr.mxu0 %v877
  %1166 = vmatpush1.msra.mxu0 %v876
  %1167 = vmatprep.subr.mxu0 %v881
  %1168 = vmatpush1.msra.mxu0 %v880
  %1169 = vmatprep.subr.mxu0 %v885
  %1170 = vmatpush1.msra.mxu0 %v884
  %1171 = vmatprep.subr.mxu0 %v889
  %1172 = vmatpush1.msra.mxu0 %v888
  %1173 = vmatprep.subr.mxu0 %v893
  %1174 = vmatpush1.msra.mxu0 %v892
  %1175 = vmatprep.subr.mxu0 %v897
  %1176 = vmatpush1.msra.mxu0 %v896
  %1177 = vmatprep.subr.mxu0 %v901
  %1178 = vmatpush1.msra.mxu0 %v900
  %1179 = vmatprep.subr.mxu0 %v905
  %1180 = vmatpush1.msra.mxu0 %v904
  %1181 = vmatprep.subr.mxu0 %v909
  %1182 = vmatpush1.msra.mxu0 %v908
  %1183 = vmatprep.subr.mxu0 0.0
  %1184 = vmatpush1.msra.mxu0 0.0
  %1185 = vmatprep.subr.mxu0 0.0
  %1186 = vmatpush1.msra.mxu0 0.0
  %1187 = vmatprep.subr.mxu0 0.0
  %1188 = vmatpush1.msra.mxu0 0.0
  %1189 = vmatprep.subr.mxu0 0.0
  %1190 = vmatpush1.msra.mxu0 0.0
  %1191 = vmatprep.subr.mxu0 0.0
  %1192 = vmatpush1.msra.mxu0 0.0
  %1193 = vmatprep.subr.mxu0 0.0
  %1194 = vmatpush1.msra.mxu0 0.0
  %1195 = vmatprep.subr.mxu0 0.0
  %1196 = vmatpush1.msra.mxu0 0.0
  %1197 = vmatprep.subr.mxu0 0.0
  %1198 = vmatpush1.msra.mxu0 0.0
  %1199 = vmatprep.subr.mxu0 0.0
  %1200 = vmatpush1.msra.mxu0 0.0
  %1201 = vmatprep.subr.mxu0 0.0
  %1202 = vmatpush1.msra.mxu0 0.0
  %1203 = vmatprep.subr.mxu0 0.0
  %1204 = vmatpush1.msra.mxu0 0.0
  %1205 = vmatprep.subr.mxu0 0.0
  %1206 = vmatpush1.msra.mxu0 0.0
  %1207 = vmatprep.subr.mxu0 0.0
  %1208 = vmatpush1.msra.mxu0 0.0
  %1209 = vmatprep.subr.mxu0 0.0
  %1210 = vmatpush1.msra.mxu0 0.0
  %1211 = vmatprep.subr.mxu0 0.0
  %1212 = vmatpush1.msra.mxu0 0.0
  %1213 = vmatprep.subr.mxu0 0.0
  %1214 = vmatpush1.msra.mxu0 0.0
  %1215 = vmatprep.mubr.f32.mxu0 0.0
  %1216 = vmatmul.mubr.f32.gmra.mrb[0].mxu0 %v1079
  %v1217 = vpop.f32.mrb[0].mxu0
  %v1218 = vadd.f32 0.0, %v1217
  %v1219 = vpop.f32.mrb[0].mxu0
  %v1220 = vadd.f32 0.0, %v1219
  %1221 = vdwg.mxu0
  %v1226 = vrot.slane %v1147, 6
  %v1227 = vrot.slane %v1149, 6
  %v1228 = vrot.slane %v1218, 6
  %v1229 = vrot.slane %v1220, 6
  %v1234 = vadd.f32 %v838, %v1226
  %v1235 = vadd.f32 %v839, %v1227
  %v1236 = vadd.f32 %v840, %v1228
  %v1237 = vadd.f32 %v841, %v1229
  %v1238 = vxor.u32 %v1234, 2147483648
  %v1239 = vmul.f32 %v1238, 1.442695
  %v1240 = vpow.pop %v1239
  %v1241 = vadd.f32 %v1240, 1.0
  %v1242 = vrcp.pop %v1241
  %v1243 = vmul.f32 1.0, %v1242
  %v1244 = vxor.u32 %v1235, 2147483648
  %v1245 = vmul.f32 %v1244, 1.442695
  %v1246 = vpow.pop %v1245
  %v1247 = vadd.f32 %v1246, 1.0
  %v1248 = vrcp.pop %v1247
  %v1249 = vmul.f32 1.0, %v1248
  %v1250 = vtanh.pop %v1236
  %v1251 = vxor.u32 %v1237, 2147483648
  %v1252 = vmul.f32 %v1251, 1.442695
  %v1253 = vpow.pop %v1252
  %v1254 = vadd.f32 %v1253, 1.0
  %v1255 = vrcp.pop %v1254
  %v1256 = vmul.f32 1.0, %v1255
  %v1258 = vrot.slane %v1077, 6
  %v1260 = vmul.f32 %v1249, %v1258
  %v1261 = vmul.f32 %v1243, %v1250
  %v1262 = vadd.f32 %v1260, %v1261
  %v1263 = vtanh.pop %v1262
  %v1264 = vmul.f32 %v1256, %v1263
  %v1266 = vrot.slane %v1264, 2
  %1268 = vmatprep.subr.mxu0 %v847
  %1269 = vmatpush1.msra.mxu0 %v846
  %1270 = vmatprep.subr.mxu0 %v851
  %1271 = vmatpush1.msra.mxu0 %v850
  %1272 = vmatprep.subr.mxu0 %v855
  %1273 = vmatpush1.msra.mxu0 %v854
  %1274 = vmatprep.subr.mxu0 %v859
  %1275 = vmatpush1.msra.mxu0 %v858
  %1276 = vmatprep.subr.mxu0 %v863
  %1277 = vmatpush1.msra.mxu0 %v862
  %1278 = vmatprep.subr.mxu0 %v867
  %1279 = vmatpush1.msra.mxu0 %v866
  %1280 = vmatprep.subr.mxu0 %v871
  %1281 = vmatpush1.msra.mxu0 %v870
  %1282 = vmatprep.subr.mxu0 %v875
  %1283 = vmatpush1.msra.mxu0 %v874
  %1284 = vmatprep.subr.mxu0 %v879
  %1285 = vmatpush1.msra.mxu0 %v878
  %1286 = vmatprep.subr.mxu0 %v883
  %1287 = vmatpush1.msra.mxu0 %v882
  %1288 = vmatprep.subr.mxu0 %v887
  %1289 = vmatpush1.msra.mxu0 %v886
  %1290 = vmatprep.subr.mxu0 %v891
  %1291 = vmatpush1.msra.mxu0 %v890
  %1292 = vmatprep.subr.mxu0 %v895
  %1293 = vmatpush1.msra.mxu0 %v894
  %1294 = vmatprep.subr.mxu0 %v899
  %1295 = vmatpush1.msra.mxu0 %v898
  %1296 = vmatprep.subr.mxu0 %v903
  %1297 = vmatpush1.msra.mxu0 %v902
  %1298 = vmatprep.subr.mxu0 %v907
  %1299 = vmatpush1.msra.mxu0 %v906
  %1300 = vmatprep.subr.mxu0 0.0
  %1301 = vmatpush1.msra.mxu0 0.0
  %1302 = vmatprep.subr.mxu0 0.0
  %1303 = vmatpush1.msra.mxu0 0.0
  %1304 = vmatprep.subr.mxu0 0.0
  %1305 = vmatpush1.msra.mxu0 0.0
  %1306 = vmatprep.subr.mxu0 0.0
  %1307 = vmatpush1.msra.mxu0 0.0
  %1308 = vmatprep.subr.mxu0 0.0
  %1309 = vmatpush1.msra.mxu0 0.0
  %1310 = vmatprep.subr.mxu0 0.0
  %1311 = vmatpush1.msra.mxu0 0.0
  %1312 = vmatprep.subr.mxu0 0.0
  %1313 = vmatpush1.msra.mxu0 0.0
  %1314 = vmatprep.subr.mxu0 0.0
  %1315 = vmatpush1.msra.mxu0 0.0
  %1316 = vmatprep.subr.mxu0 0.0
  %1317 = vmatpush1.msra.mxu0 0.0
  %1318 = vmatprep.subr.mxu0 0.0
  %1319 = vmatpush1.msra.mxu0 0.0
  %1320 = vmatprep.subr.mxu0 0.0
  %1321 = vmatpush1.msra.mxu0 0.0
  %1322 = vmatprep.subr.mxu0 0.0
  %1323 = vmatpush1.msra.mxu0 0.0
  %1324 = vmatprep.subr.mxu0 0.0
  %1325 = vmatpush1.msra.mxu0 0.0
  %1326 = vmatprep.subr.mxu0 0.0
  %1327 = vmatpush1.msra.mxu0 0.0
  %1328 = vmatprep.subr.mxu0 0.0
  %1329 = vmatpush1.msra.mxu0 0.0
  %1330 = vmatprep.subr.mxu0 0.0
  %1331 = vmatpush1.msra.mxu0 0.0
  %1332 = vmatprep.mubr.f32.mxu0 0.0
  %1333 = vmatmul.mubr.f32.gmra.mrb[0].mxu0 %v1266
  %v1334 = vpop.f32.mrb[0].mxu0
  %v1335 = vadd.f32 0.0, %v1334
  %v1336 = vpop.f32.mrb[0].mxu0
  %v1337 = vadd.f32 0.0, %v1336
  %1338 = vdwg.mxu0
  %1339 = vmatprep.subr.mxu0 %v849
  %1340 = vmatpush1.msra.mxu0 %v848
  %1341 = vmatprep.subr.mxu0 %v853
  %1342 = vmatpush1.msra.mxu0 %v852
  %1343 = vmatprep.subr.mxu0 %v857
  %1344 = vmatpush1.msra.mxu0 %v856
  %1345 = vmatprep.subr.mxu0 %v861
  %1346 = vmatpush1.msra.mxu0 %v860
  %1347 = vmatprep.subr.mxu0 %v865
  %1348 = vmatpush1.msra.mxu0 %v864
  %1349 = vmatprep.subr.mxu0 %v869
  %1350 = vmatpush1.msra.mxu0 %v868
  %1351 = vmatprep.subr.mxu0 %v873
  %1352 = vmatpush1.msra.mxu0 %v872
  %1353 = vmatprep.subr.mxu0 %v877
  %1354 = vmatpush1.msra.mxu0 %v876
  %1355 = vmatprep.subr.mxu0 %v881
  %1356 = vmatpush1.msra.mxu0 %v880
  %1357 = vmatprep.subr.mxu0 %v885
  %1358 = vmatpush1.msra.mxu0 %v884
  %1359 = vmatprep.subr.mxu0 %v889
  %1360 = vmatpush1.msra.mxu0 %v888
  %1361 = vmatprep.subr.mxu0 %v893
  %1362 = vmatpush1.msra.mxu0 %v892
  %1363 = vmatprep.subr.mxu0 %v897
  %1364 = vmatpush1.msra.mxu0 %v896
  %1365 = vmatprep.subr.mxu0 %v901
  %1366 = vmatpush1.msra.mxu0 %v900
  %1367 = vmatprep.subr.mxu0 %v905
  %1368 = vmatpush1.msra.mxu0 %v904
  %1369 = vmatprep.subr.mxu0 %v909
  %1370 = vmatpush1.msra.mxu0 %v908
  %1371 = vmatprep.subr.mxu0 0.0
  %1372 = vmatpush1.msra.mxu0 0.0
  %1373 = vmatprep.subr.mxu0 0.0
  %1374 = vmatpush1.msra.mxu0 0.0
  %1375 = vmatprep.subr.mxu0 0.0
  %1376 = vmatpush1.msra.mxu0 0.0
  %1377 = vmatprep.subr.mxu0 0.0
  %1378 = vmatpush1.msra.mxu0 0.0
  %1379 = vmatprep.subr.mxu0 0.0
  %1380 = vmatpush1.msra.mxu0 0.0
  %1381 = vmatprep.subr.mxu0 0.0
  %1382 = vmatpush1.msra.mxu0 0.0
  %1383 = vmatprep.subr.mxu0 0.0
  %1384 = vmatpush1.msra.mxu0 0.0
  %1385 = vmatprep.subr.mxu0 0.0
  %1386 = vmatpush1.msra.mxu0 0.0
  %1387 = vmatprep.subr.mxu0 0.0
  %1388 = vmatpush1.msra.mxu0 0.0
  %1389 = vmatprep.subr.mxu0 0.0
  %1390 = vmatpush1.msra.mxu0 0.0
  %1391 = vmatprep.subr.mxu0 0.0
  %1392 = vmatpush1.msra.mxu0 0.0
  %1393 = vmatprep.subr.mxu0 0.0
  %1394 = vmatpush1.msra.mxu0 0.0
  %1395 = vmatprep.subr.mxu0 0.0
  %1396 = vmatpush1.msra.mxu0 0.0
  %1397 = vmatprep.subr.mxu0 0.0
  %1398 = vmatpush1.msra.mxu0 0.0
  %1399 = vmatprep.subr.mxu0 0.0
  %1400 = vmatpush1.msra.mxu0 0.0
  %1401 = vmatprep.subr.mxu0 0.0
  %1402 = vmatpush1.msra.mxu0 0.0
  %1403 = vmatprep.mubr.f32.mxu0 0.0
  %1404 = vmatmul.mubr.f32.gmra.mrb[0].mxu0 %v1266
  %v1405 = vpop.f32.mrb[0].mxu0
  %v1406 = vadd.f32 0.0, %v1405
  %v1407 = vpop.f32.mrb[0].mxu0
  %v1408 = vadd.f32 0.0, %v1407
  %1409 = vdwg.mxu0
  %v1414 = vrot.slane %v1335, 4
  %v1415 = vrot.slane %v1337, 4
  %v1416 = vrot.slane %v1406, 4
  %v1417 = vrot.slane %v1408, 4
  %v1422 = vadd.f32 %v838, %v1414
  %v1423 = vadd.f32 %v839, %v1415
  %v1424 = vadd.f32 %v840, %v1416
  %v1425 = vadd.f32 %v841, %v1417
  %v1426 = vxor.u32 %v1422, 2147483648
  %v1427 = vmul.f32 %v1426, 1.442695
  %v1428 = vpow.pop %v1427
  %v1429 = vadd.f32 %v1428, 1.0
  %v1430 = vrcp.pop %v1429
  %v1431 = vmul.f32 1.0, %v1430
  %v1432 = vxor.u32 %v1423, 2147483648
  %v1433 = vmul.f32 %v1432, 1.442695
  %v1434 = vpow.pop %v1433
  %v1435 = vadd.f32 %v1434, 1.0
  %v1436 = vrcp.pop %v1435
  %v1437 = vmul.f32 1.0, %v1436
  %v1438 = vtanh.pop %v1424
  %v1439 = vxor.u32 %v1425, 2147483648
  %v1440 = vmul.f32 %v1439, 1.442695
  %v1441 = vpow.pop %v1440
  %v1442 = vadd.f32 %v1441, 1.0
  %v1443 = vrcp.pop %v1442
  %v1444 = vmul.f32 1.0, %v1443
  %v1446 = vrot.slane %v1262, 6
  %v1448 = vmul.f32 %v1437, %v1446
  %v1449 = vmul.f32 %v1431, %v1438
  %v1450 = vadd.f32 %v1448, %v1449
  %v1451 = vtanh.pop %v1450
  %v1452 = vmul.f32 %v1444, %v1451
  %v1454 = vrot.slane %v1452, 4
  %1456 = vmatprep.subr.mxu0 %v847
  %1457 = vmatpush1.msra.mxu0 %v846
  %1458 = vmatprep.subr.mxu0 %v851
  %1459 = vmatpush1.msra.mxu0 %v850
  %1460 = vmatprep.subr.mxu0 %v855
  %1461 = vmatpush1.msra.mxu0 %v854
  %1462 = vmatprep.subr.mxu0 %v859
  %1463 = vmatpush1.msra.mxu0 %v858
  %1464 = vmatprep.subr.mxu0 %v863
  %1465 = vmatpush1.msra.mxu0 %v862
  %1466 = vmatprep.subr.mxu0 %v867
  %1467 = vmatpush1.msra.mxu0 %v866
  %1468 = vmatprep.subr.mxu0 %v871
  %1469 = vmatpush1.msra.mxu0 %v870
  %1470 = vmatprep.subr.mxu0 %v875
  %1471 = vmatpush1.msra.mxu0 %v874
  %1472 = vmatprep.subr.mxu0 %v879
  %1473 = vmatpush1.msra.mxu0 %v878
  %1474 = vmatprep.subr.mxu0 %v883
  %1475 = vmatpush1.msra.mxu0 %v882
  %1476 = vmatprep.subr.mxu0 %v887
  %1477 = vmatpush1.msra.mxu0 %v886
  %1478 = vmatprep.subr.mxu0 %v891
  %1479 = vmatpush1.msra.mxu0 %v890
  %1480 = vmatprep.subr.mxu0 %v895
  %1481 = vmatpush1.msra.mxu0 %v894
  %1482 = vmatprep.subr.mxu0 %v899
  %1483 = vmatpush1.msra.mxu0 %v898
  %1484 = vmatprep.subr.mxu0 %v903
  %1485 = vmatpush1.msra.mxu0 %v902
  %1486 = vmatprep.subr.mxu0 %v907
  %1487 = vmatpush1.msra.mxu0 %v906
  %1488 = vmatprep.subr.mxu0 0.0
  %1489 = vmatpush1.msra.mxu0 0.0
  %1490 = vmatprep.subr.mxu0 0.0
  %1491 = vmatpush1.msra.mxu0 0.0
  %1492 = vmatprep.subr.mxu0 0.0
  %1493 = vmatpush1.msra.mxu0 0.0
  %1494 = vmatprep.subr.mxu0 0.0
  %1495 = vmatpush1.msra.mxu0 0.0
  %1496 = vmatprep.subr.mxu0 0.0
  %1497 = vmatpush1.msra.mxu0 0.0
  %1498 = vmatprep.subr.mxu0 0.0
  %1499 = vmatpush1.msra.mxu0 0.0
  %1500 = vmatprep.subr.mxu0 0.0
  %1501 = vmatpush1.msra.mxu0 0.0
  %1502 = vmatprep.subr.mxu0 0.0
  %1503 = vmatpush1.msra.mxu0 0.0
  %1504 = vmatprep.subr.mxu0 0.0
  %1505 = vmatpush1.msra.mxu0 0.0
  %1506 = vmatprep.subr.mxu0 0.0
  %1507 = vmatpush1.msra.mxu0 0.0
  %1508 = vmatprep.subr.mxu0 0.0
  %1509 = vmatpush1.msra.mxu0 0.0
  %1510 = vmatprep.subr.mxu0 0.0
  %1511 = vmatpush1.msra.mxu0 0.0
  %1512 = vmatprep.subr.mxu0 0.0
  %1513 = vmatpush1.msra.mxu0 0.0
  %1514 = vmatprep.subr.mxu0 0.0
  %1515 = vmatpush1.msra.mxu0 0.0
  %1516 = vmatprep.subr.mxu0 0.0
  %1517 = vmatpush1.msra.mxu0 0.0
  %1518 = vmatprep.subr.mxu0 0.0
  %1519 = vmatpush1.msra.mxu0 0.0
  %1520 = vmatprep.mubr.f32.mxu0 0.0
  %1521 = vmatmul.mubr.f32.gmra.mrb[0].mxu0 %v1454
  %v1522 = vpop.f32.mrb[0].mxu0
  %v1523 = vadd.f32 0.0, %v1522
  %v1524 = vpop.f32.mrb[0].mxu0
  %v1525 = vadd.f32 0.0, %v1524
  %1526 = vdwg.mxu0
  %1527 = vmatprep.subr.mxu0 %v849
  %1528 = vmatpush1.msra.mxu0 %v848
  %1529 = vmatprep.subr.mxu0 %v853
  %1530 = vmatpush1.msra.mxu0 %v852
  %1531 = vmatprep.subr.mxu0 %v857
  %1532 = vmatpush1.msra.mxu0 %v856
  %1533 = vmatprep.subr.mxu0 %v861
  %1534 = vmatpush1.msra.mxu0 %v860
  %1535 = vmatprep.subr.mxu0 %v865
  %1536 = vmatpush1.msra.mxu0 %v864
  %1537 = vmatprep.subr.mxu0 %v869
  %1538 = vmatpush1.msra.mxu0 %v868
  %1539 = vmatprep.subr.mxu0 %v873
  %1540 = vmatpush1.msra.mxu0 %v872
  %1541 = vmatprep.subr.mxu0 %v877
  %1542 = vmatpush1.msra.mxu0 %v876
  %1543 = vmatprep.subr.mxu0 %v881
  %1544 = vmatpush1.msra.mxu0 %v880
  %1545 = vmatprep.subr.mxu0 %v885
  %1546 = vmatpush1.msra.mxu0 %v884
  %1547 = vmatprep.subr.mxu0 %v889
  %1548 = vmatpush1.msra.mxu0 %v888
  %1549 = vmatprep.subr.mxu0 %v893
  %1550 = vmatpush1.msra.mxu0 %v892
  %1551 = vmatprep.subr.mxu0 %v897
  %1552 = vmatpush1.msra.mxu0 %v896
  %1553 = vmatprep.subr.mxu0 %v901
  %1554 = vmatpush1.msra.mxu0 %v900
  %1555 = vmatprep.subr.mxu0 %v905
  %1556 = vmatpush1.msra.mxu0 %v904
  %1557 = vmatprep.subr.mxu0 %v909
  %1558 = vmatpush1.msra.mxu0 %v908
  %1559 = vmatprep.subr.mxu0 0.0
  %1560 = vmatpush1.msra.mxu0 0.0
  %1561 = vmatprep.subr.mxu0 0.0
  %1562 = vmatpush1.msra.mxu0 0.0
  %1563 = vmatprep.subr.mxu0 0.0
  %1564 = vmatpush1.msra.mxu0 0.0
  %1565 = vmatprep.subr.mxu0 0.0
  %1566 = vmatpush1.msra.mxu0 0.0
  %1567 = vmatprep.subr.mxu0 0.0
  %1568 = vmatpush1.msra.mxu0 0.0
  %1569 = vmatprep.subr.mxu0 0.0
  %1570 = vmatpush1.msra.mxu0 0.0
  %1571 = vmatprep.subr.mxu0 0.0
  %1572 = vmatpush1.msra.mxu0 0.0
  %1573 = vmatprep.subr.mxu0 0.0
  %1574 = vmatpush1.msra.mxu0 0.0
  %1575 = vmatprep.subr.mxu0 0.0
  %1576 = vmatpush1.msra.mxu0 0.0
  %1577 = vmatprep.subr.mxu0 0.0
  %1578 = vmatpush1.msra.mxu0 0.0
  %1579 = vmatprep.subr.mxu0 0.0
  %1580 = vmatpush1.msra.mxu0 0.0
  %1581 = vmatprep.subr.mxu0 0.0
  %1582 = vmatpush1.msra.mxu0 0.0
  %1583 = vmatprep.subr.mxu0 0.0
  %1584 = vmatpush1.msra.mxu0 0.0
  %1585 = vmatprep.subr.mxu0 0.0
  %1586 = vmatpush1.msra.mxu0 0.0
  %1587 = vmatprep.subr.mxu0 0.0
  %1588 = vmatpush1.msra.mxu0 0.0
  %1589 = vmatprep.subr.mxu0 0.0
  %1590 = vmatpush1.msra.mxu0 0.0
  %1591 = vmatprep.mubr.f32.mxu0 0.0
  %1592 = vmatmul.mubr.f32.gmra.mrb[0].mxu0 %v1454
  %v1593 = vpop.f32.mrb[0].mxu0
  %v1594 = vadd.f32 0.0, %v1593
  %v1595 = vpop.f32.mrb[0].mxu0
  %v1596 = vadd.f32 0.0, %v1595
  %1597 = vdwg.mxu0
  %v1602 = vrot.slane %v1523, 2
  %v1603 = vrot.slane %v1525, 2
  %v1604 = vrot.slane %v1594, 2
  %v1605 = vrot.slane %v1596, 2
  %v1610 = vadd.f32 %v838, %v1602
  %v1611 = vadd.f32 %v839, %v1603
  %v1612 = vadd.f32 %v840, %v1604
  %v1613 = vadd.f32 %v841, %v1605
  %v1614 = vxor.u32 %v1610, 2147483648
  %v1615 = vmul.f32 %v1614, 1.442695
  %v1616 = vpow.pop %v1615
  %v1617 = vadd.f32 %v1616, 1.0
  %v1618 = vrcp.pop %v1617
  %v1619 = vmul.f32 1.0, %v1618
  %v1620 = vxor.u32 %v1611, 2147483648
  %v1621 = vmul.f32 %v1620, 1.442695
  %v1622 = vpow.pop %v1621
  %v1623 = vadd.f32 %v1622, 1.0
  %v1624 = vrcp.pop %v1623
  %v1625 = vmul.f32 1.0, %v1624
  %v1626 = vtanh.pop %v1612
  %v1627 = vxor.u32 %v1613, 2147483648
  %v1628 = vmul.f32 %v1627, 1.442695
  %v1629 = vpow.pop %v1628
  %v1630 = vadd.f32 %v1629, 1.0
  %v1631 = vrcp.pop %v1630
  %v1632 = vmul.f32 1.0, %v1631
  %v1634 = vrot.slane %v1450, 6
  %v1636 = vmul.f32 %v1625, %v1634
  %v1637 = vmul.f32 %v1619, %v1626
  %v1638 = vadd.f32 %v1636, %v1637
  %v1639 = vtanh.pop %v1638
  %v1640 = vmul.f32 %v1632, %v1639
  %v1642 = vrot.slane %v1640, 6
  %1644 = vmatprep.subr.mxu0 %v847
  %1645 = vmatpush1.msra.mxu0 %v846
  %1646 = vmatprep.subr.mxu0 %v851
  %1647 = vmatpush1.msra.mxu0 %v850
  %1648 = vmatprep.subr.mxu0 %v855
  %1649 = vmatpush1.msra.mxu0 %v854
  %1650 = vmatprep.subr.mxu0 %v859
  %1651 = vmatpush1.msra.mxu0 %v858
  %1652 = vmatprep.subr.mxu0 %v863
  %1653 = vmatpush1.msra.mxu0 %v862
  %1654 = vmatprep.subr.mxu0 %v867
  %1655 = vmatpush1.msra.mxu0 %v866
  %1656 = vmatprep.subr.mxu0 %v871
  %1657 = vmatpush1.msra.mxu0 %v870
  %1658 = vmatprep.subr.mxu0 %v875
  %1659 = vmatpush1.msra.mxu0 %v874
  %1660 = vmatprep.subr.mxu0 %v879
  %1661 = vmatpush1.msra.mxu0 %v878
  %1662 = vmatprep.subr.mxu0 %v883
  %1663 = vmatpush1.msra.mxu0 %v882
  %1664 = vmatprep.subr.mxu0 %v887
  %1665 = vmatpush1.msra.mxu0 %v886
  %1666 = vmatprep.subr.mxu0 %v891
  %1667 = vmatpush1.msra.mxu0 %v890
  %1668 = vmatprep.subr.mxu0 %v895
  %1669 = vmatpush1.msra.mxu0 %v894
  %1670 = vmatprep.subr.mxu0 %v899
  %1671 = vmatpush1.msra.mxu0 %v898
  %1672 = vmatprep.subr.mxu0 %v903
  %1673 = vmatpush1.msra.mxu0 %v902
  %1674 = vmatprep.subr.mxu0 %v907
  %1675 = vmatpush1.msra.mxu0 %v906
  %1676 = vmatprep.subr.mxu0 0.0
  %1677 = vmatpush1.msra.mxu0 0.0
  %1678 = vmatprep.subr.mxu0 0.0
  %1679 = vmatpush1.msra.mxu0 0.0
  %1680 = vmatprep.subr.mxu0 0.0
  %1681 = vmatpush1.msra.mxu0 0.0
  %1682 = vmatprep.subr.mxu0 0.0
  %1683 = vmatpush1.msra.mxu0 0.0
  %1684 = vmatprep.subr.mxu0 0.0
  %1685 = vmatpush1.msra.mxu0 0.0
  %1686 = vmatprep.subr.mxu0 0.0
  %1687 = vmatpush1.msra.mxu0 0.0
  %1688 = vmatprep.subr.mxu0 0.0
  %1689 = vmatpush1.msra.mxu0 0.0
  %1690 = vmatprep.subr.mxu0 0.0
  %1691 = vmatpush1.msra.mxu0 0.0
  %1692 = vmatprep.subr.mxu0 0.0
  %1693 = vmatpush1.msra.mxu0 0.0
  %1694 = vmatprep.subr.mxu0 0.0
  %1695 = vmatpush1.msra.mxu0 0.0
  %1696 = vmatprep.subr.mxu0 0.0
  %1697 = vmatpush1.msra.mxu0 0.0
  %1698 = vmatprep.subr.mxu0 0.0
  %1699 = vmatpush1.msra.mxu0 0.0
  %1700 = vmatprep.subr.mxu0 0.0
  %1701 = vmatpush1.msra.mxu0 0.0
  %1702 = vmatprep.subr.mxu0 0.0
  %1703 = vmatpush1.msra.mxu0 0.0
  %1704 = vmatprep.subr.mxu0 0.0
  %1705 = vmatpush1.msra.mxu0 0.0
  %1706 = vmatprep.subr.mxu0 0.0
  %1707 = vmatpush1.msra.mxu0 0.0
  %1708 = vmatprep.mubr.f32.mxu0 0.0
  %1709 = vmatmul.mubr.f32.gmra.mrb[0].mxu0 %v1642
  %v1710 = vpop.f32.mrb[0].mxu0
  %v1711 = vadd.f32 0.0, %v1710
  %v1712 = vpop.f32.mrb[0].mxu0
  %v1713 = vadd.f32 0.0, %v1712
  %1714 = vdwg.mxu0
  %1715 = vmatprep.subr.mxu0 %v849
  %1716 = vmatpush1.msra.mxu0 %v848
  %1717 = vmatprep.subr.mxu0 %v853
  %1718 = vmatpush1.msra.mxu0 %v852
  %1719 = vmatprep.subr.mxu0 %v857
  %1720 = vmatpush1.msra.mxu0 %v856
  %1721 = vmatprep.subr.mxu0 %v861
  %1722 = vmatpush1.msra.mxu0 %v860
  %1723 = vmatprep.subr.mxu0 %v865
  %1724 = vmatpush1.msra.mxu0 %v864
  %1725 = vmatprep.subr.mxu0 %v869
  %1726 = vmatpush1.msra.mxu0 %v868
  %1727 = vmatprep.subr.mxu0 %v873
  %1728 = vmatpush1.msra.mxu0 %v872
  %1729 = vmatprep.subr.mxu0 %v877
  %1730 = vmatpush1.msra.mxu0 %v876
  %1731 = vmatprep.subr.mxu0 %v881
  %1732 = vmatpush1.msra.mxu0 %v880
  %1733 = vmatprep.subr.mxu0 %v885
  %1734 = vmatpush1.msra.mxu0 %v884
  %1735 = vmatprep.subr.mxu0 %v889
  %1736 = vmatpush1.msra.mxu0 %v888
  %1737 = vmatprep.subr.mxu0 %v893
  %1738 = vmatpush1.msra.mxu0 %v892
  %1739 = vmatprep.subr.mxu0 %v897
  %1740 = vmatpush1.msra.mxu0 %v896
  %1741 = vmatprep.subr.mxu0 %v901
  %1742 = vmatpush1.msra.mxu0 %v900
  %1743 = vmatprep.subr.mxu0 %v905
  %1744 = vmatpush1.msra.mxu0 %v904
  %1745 = vmatprep.subr.mxu0 %v909
  %1746 = vmatpush1.msra.mxu0 %v908
  %1747 = vmatprep.subr.mxu0 0.0
  %1748 = vmatpush1.msra.mxu0 0.0
  %1749 = vmatprep.subr.mxu0 0.0
  %1750 = vmatpush1.msra.mxu0 0.0
  %1751 = vmatprep.subr.mxu0 0.0
  %1752 = vmatpush1.msra.mxu0 0.0
  %1753 = vmatprep.subr.mxu0 0.0
  %1754 = vmatpush1.msra.mxu0 0.0
  %1755 = vmatprep.subr.mxu0 0.0
  %1756 = vmatpush1.msra.mxu0 0.0
  %1757 = vmatprep.subr.mxu0 0.0
  %1758 = vmatpush1.msra.mxu0 0.0
  %1759 = vmatprep.subr.mxu0 0.0
  %1760 = vmatpush1.msra.mxu0 0.0
  %1761 = vmatprep.subr.mxu0 0.0
  %1762 = vmatpush1.msra.mxu0 0.0
  %1763 = vmatprep.subr.mxu0 0.0
  %1764 = vmatpush1.msra.mxu0 0.0
  %1765 = vmatprep.subr.mxu0 0.0
  %1766 = vmatpush1.msra.mxu0 0.0
  %1767 = vmatprep.subr.mxu0 0.0
  %1768 = vmatpush1.msra.mxu0 0.0
  %1769 = vmatprep.subr.mxu0 0.0
  %1770 = vmatpush1.msra.mxu0 0.0
  %1771 = vmatprep.subr.mxu0 0.0
  %1772 = vmatpush1.msra.mxu0 0.0
  %1773 = vmatprep.subr.mxu0 0.0
  %1774 = vmatpush1.msra.mxu0 0.0
  %1775 = vmatprep.subr.mxu0 0.0
  %1776 = vmatpush1.msra.mxu0 0.0
  %1777 = vmatprep.subr.mxu0 0.0
  %1778 = vmatpush1.msra.mxu0 0.0
  %1779 = vmatprep.mubr.f32.mxu0 0.0
  %1780 = vmatmul.mubr.f32.gmra.mrb[0].mxu0 %v1642
  %v1781 = vpop.f32.mrb[0].mxu0
  %v1782 = vadd.f32 0.0, %v1781
  %v1783 = vpop.f32.mrb[0].mxu0
  %v1784 = vadd.f32 0.0, %v1783
  %1785 = vdwg.mxu0
  %v1786 = vadd.f32 %v842, %v1711
  %v1787 = vadd.f32 %v843, %v1713
  %v1788 = vadd.f32 %v844, %v1782
  %v1789 = vadd.f32 %v845, %v1784
  %v1790 = vxor.u32 %v1786, 2147483648
  %v1791 = vmul.f32 %v1790, 1.442695
  %v1792 = vpow.pop %v1791
  %v1793 = vadd.f32 %v1792, 1.0
  %v1794 = vrcp.pop %v1793
  %v1795 = vmul.f32 1.0, %v1794
  %v1796 = vxor.u32 %v1787, 2147483648
  %v1797 = vmul.f32 %v1796, 1.442695
  %v1798 = vpow.pop %v1797
  %v1799 = vadd.f32 %v1798, 1.0
  %v1800 = vrcp.pop %v1799
  %v1801 = vmul.f32 1.0, %v1800
  %v1802 = vtanh.pop %v1788
  %v1803 = vxor.u32 %v1789, 2147483648
  %v1804 = vmul.f32 %v1803, 1.442695
  %v1805 = vpow.pop %v1804
  %v1806 = vadd.f32 %v1805, 1.0
  %v1807 = vrcp.pop %v1806
  %v1808 = vmul.f32 1.0, %v1807
  %v1810 = vrot.slane %v1638, 6
  %v1812 = vmul.f32 %v1801, %v1810
  %v1813 = vmul.f32 %v1795, %v1802
  %v1814 = vadd.f32 %v1812, %v1813
  %v1815 = vtanh.pop %v1814
  %v1816 = vmul.f32 %v1808, %v1815
  %1817 = vmatprep.subr.mxu0 %v847
  %1818 = vmatpush1.msra.mxu0 %v846
  %1819 = vmatprep.subr.mxu0 %v851
  %1820 = vmatpush1.msra.mxu0 %v850
  %1821 = vmatprep.subr.mxu0 %v855
  %1822 = vmatpush1.msra.mxu0 %v854
  %1823 = vmatprep.subr.mxu0 %v859
  %1824 = vmatpush1.msra.mxu0 %v858
  %1825 = vmatprep.subr.mxu0 %v863
  %1826 = vmatpush1.msra.mxu0 %v862
  %1827 = vmatprep.subr.mxu0 %v867
  %1828 = vmatpush1.msra.mxu0 %v866
  %1829 = vmatprep.subr.mxu0 %v871
  %1830 = vmatpush1.msra.mxu0 %v870
  %1831 = vmatprep.subr.mxu0 %v875
  %1832 = vmatpush1.msra.mxu0 %v874
  %1833 = vmatprep.subr.mxu0 %v879
  %1834 = vmatpush1.msra.mxu0 %v878
  %1835 = vmatprep.subr.mxu0 %v883
  %1836 = vmatpush1.msra.mxu0 %v882
  %1837 = vmatprep.subr.mxu0 %v887
  %1838 = vmatpush1.msra.mxu0 %v886
  %1839 = vmatprep.subr.mxu0 %v891
  %1840 = vmatpush1.msra.mxu0 %v890
  %1841 = vmatprep.subr.mxu0 %v895
  %1842 = vmatpush1.msra.mxu0 %v894
  %1843 = vmatprep.subr.mxu0 %v899
  %1844 = vmatpush1.msra.mxu0 %v898
  %1845 = vmatprep.subr.mxu0 %v903
  %1846 = vmatpush1.msra.mxu0 %v902
  %1847 = vmatprep.subr.mxu0 %v907
  %1848 = vmatpush1.msra.mxu0 %v906
  %1849 = vmatprep.subr.mxu0 0.0
  %1850 = vmatpush1.msra.mxu0 0.0
  %1851 = vmatprep.subr.mxu0 0.0
  %1852 = vmatpush1.msra.mxu0 0.0
  %1853 = vmatprep.subr.mxu0 0.0
  %1854 = vmatpush1.msra.mxu0 0.0
  %1855 = vmatprep.subr.mxu0 0.0
  %1856 = vmatpush1.msra.mxu0 0.0
  %1857 = vmatprep.subr.mxu0 0.0
  %1858 = vmatpush1.msra.mxu0 0.0
  %1859 = vmatprep.subr.mxu0 0.0
  %1860 = vmatpush1.msra.mxu0 0.0
  %1861 = vmatprep.subr.mxu0 0.0
  %1862 = vmatpush1.msra.mxu0 0.0
  %1863 = vmatprep.subr.mxu0 0.0
  %1864 = vmatpush1.msra.mxu0 0.0
  %1865 = vmatprep.subr.mxu0 0.0
  %1866 = vmatpush1.msra.mxu0 0.0
  %1867 = vmatprep.subr.mxu0 0.0
  %1868 = vmatpush1.msra.mxu0 0.0
  %1869 = vmatprep.subr.mxu0 0.0
  %1870 = vmatpush1.msra.mxu0 0.0
  %1871 = vmatprep.subr.mxu0 0.0
  %1872 = vmatpush1.msra.mxu0 0.0
  %1873 = vmatprep.subr.mxu0 0.0
  %1874 = vmatpush1.msra.mxu0 0.0
  %1875 = vmatprep.subr.mxu0 0.0
  %1876 = vmatpush1.msra.mxu0 0.0
  %1877 = vmatprep.subr.mxu0 0.0
  %1878 = vmatpush1.msra.mxu0 0.0
  %1879 = vmatprep.subr.mxu0 0.0
  %1880 = vmatpush1.msra.mxu0 0.0
  %1881 = vmatprep.mubr.f32.mxu0 0.0
  %1882 = vmatmul.mubr.f32.gmra.mrb[0].mxu0 %v1816
  %v1883 = vpop.f32.mrb[0].mxu0
  %v1884 = vadd.f32 0.0, %v1883
  %v1885 = vpop.f32.mrb[0].mxu0
  %v1886 = vadd.f32 0.0, %v1885
  %1887 = vdwg.mxu0
  %1888 = vmatprep.subr.mxu0 %v849
  %1889 = vmatpush1.msra.mxu0 %v848
  %1890 = vmatprep.subr.mxu0 %v853
  %1891 = vmatpush1.msra.mxu0 %v852
  %1892 = vmatprep.subr.mxu0 %v857
  %1893 = vmatpush1.msra.mxu0 %v856
  %1894 = vmatprep.subr.mxu0 %v861
  %1895 = vmatpush1.msra.mxu0 %v860
  %1896 = vmatprep.subr.mxu0 %v865
  %1897 = vmatpush1.msra.mxu0 %v864
  %1898 = vmatprep.subr.mxu0 %v869
  %1899 = vmatpush1.msra.mxu0 %v868
  %1900 = vmatprep.subr.mxu0 %v873
  %1901 = vmatpush1.msra.mxu0 %v872
  %1902 = vmatprep.subr.mxu0 %v877
  %1903 = vmatpush1.msra.mxu0 %v876
  %1904 = vmatprep.subr.mxu0 %v881
  %1905 = vmatpush1.msra.mxu0 %v880
  %1906 = vmatprep.subr.mxu0 %v885
  %1907 = vmatpush1.msra.mxu0 %v884
  %1908 = vmatprep.subr.mxu0 %v889
  %1909 = vmatpush1.msra.mxu0 %v888
  %1910 = vmatprep.subr.mxu0 %v893
  %1911 = vmatpush1.msra.mxu0 %v892
  %1912 = vmatprep.subr.mxu0 %v897
  %1913 = vmatpush1.msra.mxu0 %v896
  %1914 = vmatprep.subr.mxu0 %v901
  %1915 = vmatpush1.msra.mxu0 %v900
  %1916 = vmatprep.subr.mxu0 %v905
  %1917 = vmatpush1.msra.mxu0 %v904
  %1918 = vmatprep.subr.mxu0 %v909
  %1919 = vmatpush1.msra.mxu0 %v908
  %1920 = vmatprep.subr.mxu0 0.0
  %1921 = vmatpush1.msra.mxu0 0.0
  %1922 = vmatprep.subr.mxu0 0.0
  %1923 = vmatpush1.msra.mxu0 0.0
  %1924 = vmatprep.subr.mxu0 0.0
  %1925 = vmatpush1.msra.mxu0 0.0
  %1926 = vmatprep.subr.mxu0 0.0
  %1927 = vmatpush1.msra.mxu0 0.0
  %1928 = vmatprep.subr.mxu0 0.0
  %1929 = vmatpush1.msra.mxu0 0.0
  %1930 = vmatprep.subr.mxu0 0.0
  %1931 = vmatpush1.msra.mxu0 0.0
  %1932 = vmatprep.subr.mxu0 0.0
  %1933 = vmatpush1.msra.mxu0 0.0
  %1934 = vmatprep.subr.mxu0 0.0
  %1935 = vmatpush1.msra.mxu0 0.0
  %1936 = vmatprep.subr.mxu0 0.0
  %1937 = vmatpush1.msra.mxu0 0.0
  %1938 = vmatprep.subr.mxu0 0.0
  %1939 = vmatpush1.msra.mxu0 0.0
  %1940 = vmatprep.subr.mxu0 0.0
  %1941 = vmatpush1.msra.mxu0 0.0
  %1942 = vmatprep.subr.mxu0 0.0
  %1943 = vmatpush1.msra.mxu0 0.0
  %1944 = vmatprep.subr.mxu0 0.0
  %1945 = vmatpush1.msra.mxu0 0.0
  %1946 = vmatprep.subr.mxu0 0.0
  %1947 = vmatpush1.msra.mxu0 0.0
  %1948 = vmatprep.subr.mxu0 0.0
  %1949 = vmatpush1.msra.mxu0 0.0
  %1950 = vmatprep.subr.mxu0 0.0
  %1951 = vmatpush1.msra.mxu0 0.0
  %1952 = vmatprep.mubr.f32.mxu0 0.0
  %1953 = vmatmul.mubr.f32.gmra.mrb[0].mxu0 %v1816
  %v1954 = vpop.f32.mrb[0].mxu0
  %v1955 = vadd.f32 0.0, %v1954
  %v1956 = vpop.f32.mrb[0].mxu0
  %v1957 = vadd.f32 0.0, %v1956
  %1958 = vdwg.mxu0
  %v1963 = vrot.slane %v1884, 6
  %v1964 = vrot.slane %v1886, 6
  %v1965 = vrot.slane %v1955, 6
  %v1966 = vrot.slane %v1957, 6
  %v1971 = vadd.f32 %v842, %v1963
  %v1972 = vadd.f32 %v843, %v1964
  %v1973 = vadd.f32 %v844, %v1965
  %v1974 = vadd.f32 %v845, %v1966
  %v1975 = vxor.u32 %v1971, 2147483648
  %v1976 = vmul.f32 %v1975, 1.442695
  %v1977 = vpow.pop %v1976
  %v1978 = vadd.f32 %v1977, 1.0
  %v1979 = vrcp.pop %v1978
  %v1980 = vmul.f32 1.0, %v1979
  %v1981 = vxor.u32 %v1972, 2147483648
  %v1982 = vmul.f32 %v1981, 1.442695
  %v1983 = vpow.pop %v1982
  %v1984 = vadd.f32 %v1983, 1.0
  %v1985 = vrcp.pop %v1984
  %v1986 = vmul.f32 1.0, %v1985
  %v1987 = vtanh.pop %v1973
  %v1988 = vxor.u32 %v1974, 2147483648
  %v1989 = vmul.f32 %v1988, 1.442695
  %v1990 = vpow.pop %v1989
  %v1991 = vadd.f32 %v1990, 1.0
  %v1992 = vrcp.pop %v1991
  %v1993 = vmul.f32 1.0, %v1992
  %v1995 = vrot.slane %v1814, 6
  %v1997 = vmul.f32 %v1986, %v1995
  %v1998 = vmul.f32 %v1980, %v1987
  %v1999 = vadd.f32 %v1997, %v1998
  %v2000 = vtanh.pop %v1999
  %v2001 = vmul.f32 %v1993, %v2000
  %v2003 = vrot.slane %v2001, 2
  %2005 = vmatprep.subr.mxu0 %v847
  %2006 = vmatpush1.msra.mxu0 %v846
  %2007 = vmatprep.subr.mxu0 %v851
  %2008 = vmatpush1.msra.mxu0 %v850
  %2009 = vmatprep.subr.mxu0 %v855
  %2010 = vmatpush1.msra.mxu0 %v854
  %2011 = vmatprep.subr.mxu0 %v859
  %2012 = vmatpush1.msra.mxu0 %v858
  %2013 = vmatprep.subr.mxu0 %v863
  %2014 = vmatpush1.msra.mxu0 %v862
  %2015 = vmatprep.subr.mxu0 %v867
  %2016 = vmatpush1.msra.mxu0 %v866
  %2017 = vmatprep.subr.mxu0 %v871
  %2018 = vmatpush1.msra.mxu0 %v870
  %2019 = vmatprep.subr.mxu0 %v875
  %2020 = vmatpush1.msra.mxu0 %v874
  %2021 = vmatprep.subr.mxu0 %v879
  %2022 = vmatpush1.msra.mxu0 %v878
  %2023 = vmatprep.subr.mxu0 %v883
  %2024 = vmatpush1.msra.mxu0 %v882
  %2025 = vmatprep.subr.mxu0 %v887
  %2026 = vmatpush1.msra.mxu0 %v886
  %2027 = vmatprep.subr.mxu0 %v891
  %2028 = vmatpush1.msra.mxu0 %v890
  %2029 = vmatprep.subr.mxu0 %v895
  %2030 = vmatpush1.msra.mxu0 %v894
  %2031 = vmatprep.subr.mxu0 %v899
  %2032 = vmatpush1.msra.mxu0 %v898
  %2033 = vmatprep.subr.mxu0 %v903
  %2034 = vmatpush1.msra.mxu0 %v902
  %2035 = vmatprep.subr.mxu0 %v907
  %2036 = vmatpush1.msra.mxu0 %v906
  %2037 = vmatprep.subr.mxu0 0.0
  %2038 = vmatpush1.msra.mxu0 0.0
  %2039 = vmatprep.subr.mxu0 0.0
  %2040 = vmatpush1.msra.mxu0 0.0
  %2041 = vmatprep.subr.mxu0 0.0
  %2042 = vmatpush1.msra.mxu0 0.0
  %2043 = vmatprep.subr.mxu0 0.0
  %2044 = vmatpush1.msra.mxu0 0.0
  %2045 = vmatprep.subr.mxu0 0.0
  %2046 = vmatpush1.msra.mxu0 0.0
  %2047 = vmatprep.subr.mxu0 0.0
  %2048 = vmatpush1.msra.mxu0 0.0
  %2049 = vmatprep.subr.mxu0 0.0
  %2050 = vmatpush1.msra.mxu0 0.0
  %2051 = vmatprep.subr.mxu0 0.0
  %2052 = vmatpush1.msra.mxu0 0.0
  %2053 = vmatprep.subr.mxu0 0.0
  %2054 = vmatpush1.msra.mxu0 0.0
  %2055 = vmatprep.subr.mxu0 0.0
  %2056 = vmatpush1.msra.mxu0 0.0
  %2057 = vmatprep.subr.mxu0 0.0
  %2058 = vmatpush1.msra.mxu0 0.0
  %2059 = vmatprep.subr.mxu0 0.0
  %2060 = vmatpush1.msra.mxu0 0.0
  %2061 = vmatprep.subr.mxu0 0.0
  %2062 = vmatpush1.msra.mxu0 0.0
  %2063 = vmatprep.subr.mxu0 0.0
  %2064 = vmatpush1.msra.mxu0 0.0
  %2065 = vmatprep.subr.mxu0 0.0
  %2066 = vmatpush1.msra.mxu0 0.0
  %2067 = vmatprep.subr.mxu0 0.0
  %2068 = vmatpush1.msra.mxu0 0.0
  %2069 = vmatprep.mubr.f32.mxu0 0.0
  %2070 = vmatmul.mubr.f32.gmra.mrb[0].mxu0 %v2003
  %v2071 = vpop.f32.mrb[0].mxu0
  %v2072 = vadd.f32 0.0, %v2071
  %v2073 = vpop.f32.mrb[0].mxu0
  %v2074 = vadd.f32 0.0, %v2073
  %2075 = vdwg.mxu0
  %2076 = vmatprep.subr.mxu0 %v849
  %2077 = vmatpush1.msra.mxu0 %v848
  %2078 = vmatprep.subr.mxu0 %v853
  %2079 = vmatpush1.msra.mxu0 %v852
  %2080 = vmatprep.subr.mxu0 %v857
  %2081 = vmatpush1.msra.mxu0 %v856
  %2082 = vmatprep.subr.mxu0 %v861
  %2083 = vmatpush1.msra.mxu0 %v860
  %2084 = vmatprep.subr.mxu0 %v865
  %2085 = vmatpush1.msra.mxu0 %v864
  %2086 = vmatprep.subr.mxu0 %v869
  %2087 = vmatpush1.msra.mxu0 %v868
  %2088 = vmatprep.subr.mxu0 %v873
  %2089 = vmatpush1.msra.mxu0 %v872
  %2090 = vmatprep.subr.mxu0 %v877
  %2091 = vmatpush1.msra.mxu0 %v876
  %2092 = vmatprep.subr.mxu0 %v881
  %2093 = vmatpush1.msra.mxu0 %v880
  %2094 = vmatprep.subr.mxu0 %v885
  %2095 = vmatpush1.msra.mxu0 %v884
  %2096 = vmatprep.subr.mxu0 %v889
  %2097 = vmatpush1.msra.mxu0 %v888
  %2098 = vmatprep.subr.mxu0 %v893
  %2099 = vmatpush1.msra.mxu0 %v892
  %2100 = vmatprep.subr.mxu0 %v897
  %2101 = vmatpush1.msra.mxu0 %v896
  %2102 = vmatprep.subr.mxu0 %v901
  %2103 = vmatpush1.msra.mxu0 %v900
  %2104 = vmatprep.subr.mxu0 %v905
  %2105 = vmatpush1.msra.mxu0 %v904
  %2106 = vmatprep.subr.mxu0 %v909
  %2107 = vmatpush1.msra.mxu0 %v908
  %2108 = vmatprep.subr.mxu0 0.0
  %2109 = vmatpush1.msra.mxu0 0.0
  %2110 = vmatprep.subr.mxu0 0.0
  %2111 = vmatpush1.msra.mxu0 0.0
  %2112 = vmatprep.subr.mxu0 0.0
  %2113 = vmatpush1.msra.mxu0 0.0
  %2114 = vmatprep.subr.mxu0 0.0
  %2115 = vmatpush1.msra.mxu0 0.0
  %2116 = vmatprep.subr.mxu0 0.0
  %2117 = vmatpush1.msra.mxu0 0.0
  %2118 = vmatprep.subr.mxu0 0.0
  %2119 = vmatpush1.msra.mxu0 0.0
  %2120 = vmatprep.subr.mxu0 0.0
  %2121 = vmatpush1.msra.mxu0 0.0
  %2122 = vmatprep.subr.mxu0 0.0
  %2123 = vmatpush1.msra.mxu0 0.0
  %2124 = vmatprep.subr.mxu0 0.0
  %2125 = vmatpush1.msra.mxu0 0.0
  %2126 = vmatprep.subr.mxu0 0.0
  %2127 = vmatpush1.msra.mxu0 0.0
  %2128 = vmatprep.subr.mxu0 0.0
  %2129 = vmatpush1.msra.mxu0 0.0
  %2130 = vmatprep.subr.mxu0 0.0
  %2131 = vmatpush1.msra.mxu0 0.0
  %2132 = vmatprep.subr.mxu0 0.0
  %2133 = vmatpush1.msra.mxu0 0.0
  %2134 = vmatprep.subr.mxu0 0.0
  %2135 = vmatpush1.msra.mxu0 0.0
  %2136 = vmatprep.subr.mxu0 0.0
  %2137 = vmatpush1.msra.mxu0 0.0
  %2138 = vmatprep.subr.mxu0 0.0
  %2139 = vmatpush1.msra.mxu0 0.0
  %2140 = vmatprep.mubr.f32.mxu0 0.0
  %2141 = vmatmul.mubr.f32.gmra.mrb[0].mxu0 %v2003
  %v2142 = vpop.f32.mrb[0].mxu0
  %v2143 = vadd.f32 0.0, %v2142
  %v2144 = vpop.f32.mrb[0].mxu0
  %v2145 = vadd.f32 0.0, %v2144
  %2146 = vdwg.mxu0
  %v2151 = vrot.slane %v2072, 4
  %v2152 = vrot.slane %v2074, 4
  %v2153 = vrot.slane %v2143, 4
  %v2154 = vrot.slane %v2145, 4
  %v2159 = vadd.f32 %v842, %v2151
  %v2160 = vadd.f32 %v843, %v2152
  %v2161 = vadd.f32 %v844, %v2153
  %v2162 = vadd.f32 %v845, %v2154
  %v2163 = vxor.u32 %v2159, 2147483648
  %v2164 = vmul.f32 %v2163, 1.442695
  %v2165 = vpow.pop %v2164
  %v2166 = vadd.f32 %v2165, 1.0
  %v2167 = vrcp.pop %v2166
  %v2168 = vmul.f32 1.0, %v2167
  %v2169 = vxor.u32 %v2160, 2147483648
  %v2170 = vmul.f32 %v2169, 1.442695
  %v2171 = vpow.pop %v2170
  %v2172 = vadd.f32 %v2171, 1.0
  %v2173 = vrcp.pop %v2172
  %v2174 = vmul.f32 1.0, %v2173
  %v2175 = vtanh.pop %v2161
  %v2176 = vxor.u32 %v2162, 2147483648
  %v2177 = vmul.f32 %v2176, 1.442695
  %v2178 = vpow.pop %v2177
  %v2179 = vadd.f32 %v2178, 1.0
  %v2180 = vrcp.pop %v2179
  %v2181 = vmul.f32 1.0, %v2180
  %v2183 = vrot.slane %v1999, 6
  %v2185 = vmul.f32 %v2174, %v2183
  %v2186 = vmul.f32 %v2168, %v2175
  %v2187 = vadd.f32 %v2185, %v2186
  %v2188 = vtanh.pop %v2187
  %v2189 = vmul.f32 %v2181, %v2188
  %v2191 = vrot.slane %v2189, 4
  %2193 = vmatprep.subr.mxu0 %v847
  %2194 = vmatpush1.msra.mxu0 %v846
  %2195 = vmatprep.subr.mxu0 %v851
  %2196 = vmatpush1.msra.mxu0 %v850
  %2197 = vmatprep.subr.mxu0 %v855
  %2198 = vmatpush1.msra.mxu0 %v854
  %2199 = vmatprep.subr.mxu0 %v859
  %2200 = vmatpush1.msra.mxu0 %v858
  %2201 = vmatprep.subr.mxu0 %v863
  %2202 = vmatpush1.msra.mxu0 %v862
  %2203 = vmatprep.subr.mxu0 %v867
  %2204 = vmatpush1.msra.mxu0 %v866
  %2205 = vmatprep.subr.mxu0 %v871
  %2206 = vmatpush1.msra.mxu0 %v870
  %2207 = vmatprep.subr.mxu0 %v875
  %2208 = vmatpush1.msra.mxu0 %v874
  %2209 = vmatprep.subr.mxu0 %v879
  %2210 = vmatpush1.msra.mxu0 %v878
  %2211 = vmatprep.subr.mxu0 %v883
  %2212 = vmatpush1.msra.mxu0 %v882
  %2213 = vmatprep.subr.mxu0 %v887
  %2214 = vmatpush1.msra.mxu0 %v886
  %2215 = vmatprep.subr.mxu0 %v891
  %2216 = vmatpush1.msra.mxu0 %v890
  %2217 = vmatprep.subr.mxu0 %v895
  %2218 = vmatpush1.msra.mxu0 %v894
  %2219 = vmatprep.subr.mxu0 %v899
  %2220 = vmatpush1.msra.mxu0 %v898
  %2221 = vmatprep.subr.mxu0 %v903
  %2222 = vmatpush1.msra.mxu0 %v902
  %2223 = vmatprep.subr.mxu0 %v907
  %2224 = vmatpush1.msra.mxu0 %v906
  %2225 = vmatprep.subr.mxu0 0.0
  %2226 = vmatpush1.msra.mxu0 0.0
  %2227 = vmatprep.subr.mxu0 0.0
  %2228 = vmatpush1.msra.mxu0 0.0
  %2229 = vmatprep.subr.mxu0 0.0
  %2230 = vmatpush1.msra.mxu0 0.0
  %2231 = vmatprep.subr.mxu0 0.0
  %2232 = vmatpush1.msra.mxu0 0.0
  %2233 = vmatprep.subr.mxu0 0.0
  %2234 = vmatpush1.msra.mxu0 0.0
  %2235 = vmatprep.subr.mxu0 0.0
  %2236 = vmatpush1.msra.mxu0 0.0
  %2237 = vmatprep.subr.mxu0 0.0
  %2238 = vmatpush1.msra.mxu0 0.0
  %2239 = vmatprep.subr.mxu0 0.0
  %2240 = vmatpush1.msra.mxu0 0.0
  %2241 = vmatprep.subr.mxu0 0.0
  %2242 = vmatpush1.msra.mxu0 0.0
  %2243 = vmatprep.subr.mxu0 0.0
  %2244 = vmatpush1.msra.mxu0 0.0
  %2245 = vmatprep.subr.mxu0 0.0
  %2246 = vmatpush1.msra.mxu0 0.0
  %2247 = vmatprep.subr.mxu0 0.0
  %2248 = vmatpush1.msra.mxu0 0.0
  %2249 = vmatprep.subr.mxu0 0.0
  %2250 = vmatpush1.msra.mxu0 0.0
  %2251 = vmatprep.subr.mxu0 0.0
  %2252 = vmatpush1.msra.mxu0 0.0
  %2253 = vmatprep.subr.mxu0 0.0
  %2254 = vmatpush1.msra.mxu0 0.0
  %2255 = vmatprep.subr.mxu0 0.0
  %2256 = vmatpush1.msra.mxu0 0.0
  %2257 = vmatprep.mubr.f32.mxu0 0.0
  %2258 = vmatmul.mubr.f32.gmra.mrb[0].mxu0 %v2191
  %v2259 = vpop.f32.mrb[0].mxu0
  %v2260 = vadd.f32 0.0, %v2259
  %v2261 = vpop.f32.mrb[0].mxu0
  %v2262 = vadd.f32 0.0, %v2261
  %2263 = vdwg.mxu0
  %2264 = vmatprep.subr.mxu0 %v849
  %2265 = vmatpush1.msra.mxu0 %v848
  %2266 = vmatprep.subr.mxu0 %v853
  %2267 = vmatpush1.msra.mxu0 %v852
  %2268 = vmatprep.subr.mxu0 %v857
  %2269 = vmatpush1.msra.mxu0 %v856
  %2270 = vmatprep.subr.mxu0 %v861
  %2271 = vmatpush1.msra.mxu0 %v860
  %2272 = vmatprep.subr.mxu0 %v865
  %2273 = vmatpush1.msra.mxu0 %v864
  %2274 = vmatprep.subr.mxu0 %v869
  %2275 = vmatpush1.msra.mxu0 %v868
  %2276 = vmatprep.subr.mxu0 %v873
  %2277 = vmatpush1.msra.mxu0 %v872
  %2278 = vmatprep.subr.mxu0 %v877
  %2279 = vmatpush1.msra.mxu0 %v876
  %2280 = vmatprep.subr.mxu0 %v881
  %2281 = vmatpush1.msra.mxu0 %v880
  %2282 = vmatprep.subr.mxu0 %v885
  %2283 = vmatpush1.msra.mxu0 %v884
  %2284 = vmatprep.subr.mxu0 %v889
  %2285 = vmatpush1.msra.mxu0 %v888
  %2286 = vmatprep.subr.mxu0 %v893
  %2287 = vmatpush1.msra.mxu0 %v892
  %2288 = vmatprep.subr.mxu0 %v897
  %2289 = vmatpush1.msra.mxu0 %v896
  %2290 = vmatprep.subr.mxu0 %v901
  %2291 = vmatpush1.msra.mxu0 %v900
  %2292 = vmatprep.subr.mxu0 %v905
  %2293 = vmatpush1.msra.mxu0 %v904
  %2294 = vmatprep.subr.mxu0 %v909
  %2295 = vmatpush1.msra.mxu0 %v908
  %2296 = vmatprep.subr.mxu0 0.0
  %2297 = vmatpush1.msra.mxu0 0.0
  %2298 = vmatprep.subr.mxu0 0.0
  %2299 = vmatpush1.msra.mxu0 0.0
  %2300 = vmatprep.subr.mxu0 0.0
  %2301 = vmatpush1.msra.mxu0 0.0
  %2302 = vmatprep.subr.mxu0 0.0
  %2303 = vmatpush1.msra.mxu0 0.0
  %2304 = vmatprep.subr.mxu0 0.0
  %2305 = vmatpush1.msra.mxu0 0.0
  %2306 = vmatprep.subr.mxu0 0.0
  %2307 = vmatpush1.msra.mxu0 0.0
  %2308 = vmatprep.subr.mxu0 0.0
  %2309 = vmatpush1.msra.mxu0 0.0
  %2310 = vmatprep.subr.mxu0 0.0
  %2311 = vmatpush1.msra.mxu0 0.0
  %2312 = vmatprep.subr.mxu0 0.0
  %2313 = vmatpush1.msra.mxu0 0.0
  %2314 = vmatprep.subr.mxu0 0.0
  %2315 = vmatpush1.msra.mxu0 0.0
  %2316 = vmatprep.subr.mxu0 0.0
  %2317 = vmatpush1.msra.mxu0 0.0
  %2318 = vmatprep.subr.mxu0 0.0
  %2319 = vmatpush1.msra.mxu0 0.0
  %2320 = vmatprep.subr.mxu0 0.0
  %2321 = vmatpush1.msra.mxu0 0.0
  %2322 = vmatprep.subr.mxu0 0.0
  %2323 = vmatpush1.msra.mxu0 0.0
  %2324 = vmatprep.subr.mxu0 0.0
  %2325 = vmatpush1.msra.mxu0 0.0
  %2326 = vmatprep.subr.mxu0 0.0
  %2327 = vmatpush1.msra.mxu0 0.0
  %2328 = vmatprep.mubr.f32.mxu0 0.0
  %2329 = vmatmul.mubr.f32.gmra.mrb[0].mxu0 %v2191
  %v2330 = vpop.f32.mrb[0].mxu0
  %v2331 = vadd.f32 0.0, %v2330
  %v2332 = vpop.f32.mrb[0].mxu0
  %v2333 = vadd.f32 0.0, %v2332
  %2334 = vdwg.mxu0
  %v2339 = vrot.slane %v2260, 2
  %v2340 = vrot.slane %v2262, 2
  %v2341 = vrot.slane %v2331, 2
  %v2342 = vrot.slane %v2333, 2
  %v2347 = vadd.f32 %v842, %v2339
  %v2348 = vadd.f32 %v843, %v2340
  %v2349 = vadd.f32 %v844, %v2341
  %v2350 = vadd.f32 %v845, %v2342
  %v2351 = vxor.u32 %v2347, 2147483648
  %v2352 = vmul.f32 %v2351, 1.442695
  %v2353 = vpow.pop %v2352
  %v2354 = vadd.f32 %v2353, 1.0
  %v2355 = vrcp.pop %v2354
  %v2356 = vmul.f32 1.0, %v2355
  %v2357 = vxor.u32 %v2348, 2147483648
  %v2358 = vmul.f32 %v2357, 1.442695
  %v2359 = vpow.pop %v2358
  %v2360 = vadd.f32 %v2359, 1.0
  %v2361 = vrcp.pop %v2360
  %v2362 = vmul.f32 1.0, %v2361
  %v2363 = vtanh.pop %v2349
  %v2364 = vxor.u32 %v2350, 2147483648
  %v2365 = vmul.f32 %v2364, 1.442695
  %v2366 = vpow.pop %v2365
  %v2367 = vadd.f32 %v2366, 1.0
  %v2368 = vrcp.pop %v2367
  %v2369 = vmul.f32 1.0, %v2368
  %v2371 = vrot.slane %v2187, 6
  %v2373 = vmul.f32 %v2362, %v2371
  %v2374 = vmul.f32 %v2356, %v2363
  %v2375 = vadd.f32 %v2373, %v2374
  %v2376 = vtanh.pop %v2375
  %v2377 = vmul.f32 %v2369, %v2376
  %v2378 = vsel %vm92, %v1079, %v1264
  %v2379 = vsel %vm192, %v2378, %v1452
  %vm2380 = vcmask 1045504
  %v2381 = vsel %vm2380, %v2379, %v1640
  %v2382 = vsel %vm92, %v1816, %v2001
  %v2383 = vsel %vm192, %v2382, %v2189
  %v2384 = vsel %vm2380, %v2383, %v2377
  %v2385 = vld [vmem:[%s14] sm:$0xff]
  %v2386 = vld [vmem:[%s14 + $0x8] sm:$0xff]
  %v2387 = vld [vmem:[%s14 + $0x10] sm:$0xff]
  %v2388 = vld [vmem:[%s14 + $0x18] sm:$0xff]
  %v2389 = vld [vmem:[%s14 + $0x20] sm:$0xff]
  %v2390 = vld [vmem:[%s14 + $0x28] sm:$0xff]
  %v2391 = vld [vmem:[%s14 + $0x30] sm:$0xff]
  %v2392 = vld [vmem:[%s14 + $0x38] sm:$0xff]
  %v2393 = vld [vmem:[%s14 + $0x40] sm:$0xff]
  %v2394 = vld [vmem:[%s14 + $0x48] sm:$0xff]
  %v2395 = vld [vmem:[%s14 + $0x50] sm:$0xff]
  %v2396 = vld [vmem:[%s14 + $0x58] sm:$0xff]
  %v2397 = vld [vmem:[%s14 + $0x60] sm:$0xff]
  %v2398 = vld [vmem:[%s14 + $0x68] sm:$0xff]
  %v2399 = vld [vmem:[%s14 + $0x70] sm:$0xff]
  %v2400 = vld [vmem:[%s14 + $0x78] sm:$0xff]
  %v2401 = vld [vmem:[%s15] sm:$0x1]
  %v2403 = vlaneseq
  %v2404 = vshrl.u32 %v2403, 7
  %v2405 = vsub.s32 0, %v2404
  %v2406 = vrot.slane %v2401, %v2405
  %2408 = vmatprep.subr.mxu0 0.0
  %2409 = vmatpush1.msra.mxu0 %v2385
  %2410 = vmatprep.subr.mxu0 0.0
  %2411 = vmatpush1.msra.mxu0 %v2386
  %2412 = vmatprep.subr.mxu0 0.0
  %2413 = vmatpush1.msra.mxu0 %v2387
  %2414 = vmatprep.subr.mxu0 0.0
  %2415 = vmatpush1.msra.mxu0 %v2388
  %2416 = vmatprep.subr.mxu0 0.0
  %2417 = vmatpush1.msra.mxu0 %v2389
  %2418 = vmatprep.subr.mxu0 0.0
  %2419 = vmatpush1.msra.mxu0 %v2390
  %2420 = vmatprep.subr.mxu0 0.0
  %2421 = vmatpush1.msra.mxu0 %v2391
  %2422 = vmatprep.subr.mxu0 0.0
  %2423 = vmatpush1.msra.mxu0 %v2392
  %2424 = vmatprep.subr.mxu0 0.0
  %2425 = vmatpush1.msra.mxu0 %v2393
  %2426 = vmatprep.subr.mxu0 0.0
  %2427 = vmatpush1.msra.mxu0 %v2394
  %2428 = vmatprep.subr.mxu0 0.0
  %2429 = vmatpush1.msra.mxu0 %v2395
  %2430 = vmatprep.subr.mxu0 0.0
  %2431 = vmatpush1.msra.mxu0 %v2396
  %2432 = vmatprep.subr.mxu0 0.0
  %2433 = vmatpush1.msra.mxu0 %v2397
  %2434 = vmatprep.subr.mxu0 0.0
  %2435 = vmatpush1.msra.mxu0 %v2398
  %2436 = vmatprep.subr.mxu0 0.0
  %2437 = vmatpush1.msra.mxu0 %v2399
  %2438 = vmatprep.subr.mxu0 0.0
  %2439 = vmatpush1.msra.mxu0 %v2400
  %2440 = vmatprep.subr.mxu0 0.0
  %2441 = vmatpush1.msra.mxu0 0.0
  %2442 = vmatprep.subr.mxu0 0.0
  %2443 = vmatpush1.msra.mxu0 0.0
  %2444 = vmatprep.subr.mxu0 0.0
  %2445 = vmatpush1.msra.mxu0 0.0
  %2446 = vmatprep.subr.mxu0 0.0
  %2447 = vmatpush1.msra.mxu0 0.0
  %2448 = vmatprep.subr.mxu0 0.0
  %2449 = vmatpush1.msra.mxu0 0.0
  %2450 = vmatprep.subr.mxu0 0.0
  %2451 = vmatpush1.msra.mxu0 0.0
  %2452 = vmatprep.subr.mxu0 0.0
  %2453 = vmatpush1.msra.mxu0 0.0
  %2454 = vmatprep.subr.mxu0 0.0
  %2455 = vmatpush1.msra.mxu0 0.0
  %2456 = vmatprep.subr.mxu0 0.0
  %2457 = vmatpush1.msra.mxu0 0.0
  %2458 = vmatprep.subr.mxu0 0.0
  %2459 = vmatpush1.msra.mxu0 0.0
  %2460 = vmatprep.subr.mxu0 0.0
  %2461 = vmatpush1.msra.mxu0 0.0
  %2462 = vmatprep.subr.mxu0 0.0
  %2463 = vmatpush1.msra.mxu0 0.0
  %2464 = vmatprep.subr.mxu0 0.0
  %2465 = vmatpush1.msra.mxu0 0.0
  %2466 = vmatprep.subr.mxu0 0.0
  %2467 = vmatpush1.msra.mxu0 0.0
  %2468 = vmatprep.subr.mxu0 0.0
  %2469 = vmatpush1.msra.mxu0 0.0
  %2470 = vmatprep.subr.mxu0 0.0
  %2471 = vmatpush1.msra.mxu0 0.0
  %2472 = vmatprep.mubr.f32.mxu0 0.0
  %2473 = vmatmul.mubr.f32.gmra.mrb[0].mxu0 %v2381
  %v2474 = vpop.f32.mrb[0].mxu0
  %v2475 = vadd.f32 %v2406, %v2474
  %v2476 = vpop.f32.mrb[0].mxu0
  %2477 = vmatprep.mubr.f32.mxu0 0.0
  %2478 = vmatmul.mubr.f32.gmra.mrb[0].mxu0 %v2384
  %v2479 = vpop.f32.mrb[0].mxu0
  %v2480 = vadd.f32 %v2406, %v2479
  %v2481 = vpop.f32.mrb[0].mxu0
  %2482 = vdwg.mxu0
  %2483 = vst.msk [vmem:[%s16] sm:$0xff] %vm474, %v2475
  %2484 = vst.msk [vmem:[%s16 + $0x8] sm:$0xff] %vm474, %v2480
  // Predicated region
  $region66: #{conv_recurrent_forward.3} parent=0 // pred_check
    _
  $region67: #{conv_recurrent_forward.3} parent=0 // pred_check_branch
    %2486 = sbr.rel (0) target = $region69
  $region68: #{conv_recurrent_forward.3} parent=0 // pred_region
    _
  $region69: #{conv_recurrent_forward.3} parent=0 // pred_fallthru
    _
  // Predicated region
  $region70: #{conv_recurrent_forward.3} parent=0 // pred_check
    _
  $region71: #{conv_recurrent_forward.3} parent=0 // pred_check_branch
    %2488 = sbr.rel (0) target = $region73
  $region72: #{conv_recurrent_forward.3} parent=0 // pred_region
    _
  $region73: #{conv_recurrent_forward.3} parent=0 // pred_fallthru
    _

</llo_original>
